<compile_context>
chip_gen: v5e
topology: v5e:2x2
jax: 0.10.0
libtpu: 0.0.40
codegen_flags: <defaults>
</compile_context>

<pallas_src>
import functools

import jax
import jax.numpy as jnp
from jax import lax
from jax.experimental import pallas as pl
from jax.experimental.pallas import tpu as pltpu

MXU_DTYPE = jnp.bfloat16    # MXU input dtype (accumulation stays f32)
INTER_DTYPE = jnp.bfloat16  # dtype of inter-stage (hidden) activations in HBM

_MIB = 1 << 20


def _vmem_limit(est_bytes):
    # 2x headroom over the per-step tile estimate, clamped to sane bounds.
    return int(min(64 * _MIB, max(16 * _MIB, 2 * est_bytes)))


def _pick_tile_m(m, cap=512, floor=256, min_steps=8):
    """M tile for the pointwise matmuls: big (amortize per-step overhead) but
    capped so the grid keeps enough steps for pipelining / 2-TC sharding."""
    if m <= floor:
        return m
    tm = min(cap, m)
    while tm > floor and pl.cdiv(m, tm) < min_steps:
        tm = max(floor, tm // 2)
    return tm


def _lane_pad_channels(c):
    """Round the hidden channel count up to a multiple of 128 (lane-dense
    stores/loads) when the byte overhead is <= ~1/3, else keep as-is."""
    cp = ((c + 127) // 128) * 128
    return cp if 3 * cp <= 4 * c else c


# ----------------------------------------------------------------------------
# 1x1 conv (pointwise) + folded BN + optional ReLU6 + optional residual add
# ----------------------------------------------------------------------------
def _pw_kernel(x_ref, w_ref, shift_ref, *rest, relu6, add_residual):
    if add_residual:
        res_ref, o_ref = rest
    else:
        (o_ref,) = rest
    x = x_ref[...]
    if x.dtype != w_ref.dtype:           # no-op when the input is already bf16
        x = x.astype(w_ref.dtype)
    acc = jnp.dot(x, w_ref[...], preferred_element_type=jnp.float32)
    acc = acc + shift_ref[...]           # folded-BN shift, f32 (1, N)
    if relu6:
        acc = jnp.clip(acc, 0.0, 6.0)
    if add_residual:
        acc = acc + res_ref[...].astype(jnp.float32)
    o_ref[...] = acc.astype(o_ref.dtype)


def pointwise_conv_bn(x2d, w, shift, *, relu6, residual=None,
                      out_dtype=jnp.float32):
    """x2d: (M, Cin); w: (Cin, Cout) bf16 (BN scale folded); shift: (Cout,)."""
    M, K = x2d.shape
    N = w.shape[1]
    tile_m = _pick_tile_m(M)
    grid = (pl.cdiv(M, tile_m),)
    shift2 = shift.reshape(1, N).astype(jnp.float32)

    in_specs = [
        pl.BlockSpec((tile_m, K), lambda i: (i, 0)),   # activations (pipelined)
        pl.BlockSpec((K, N), lambda i: (0, 0)),        # weights: resident
        pl.BlockSpec((1, N), lambda i: (0, 0)),        # folded-BN shift
    ]
    args = [x2d, w, shift2]
    if residual is not None:
        in_specs.append(pl.BlockSpec((tile_m, N), lambda i: (i, 0)))
        args.append(residual)

    est = (2 * tile_m * K * x2d.dtype.itemsize
           + 2 * K * N * w.dtype.itemsize + 2 * 4 * N
           + 2 * tile_m * N * jnp.dtype(out_dtype).itemsize
           + (2 * tile_m * N * residual.dtype.itemsize
              if residual is not None else 0))

    return pl.pallas_call(
        functools.partial(_pw_kernel, relu6=relu6,
                          add_residual=residual is not None),
        out_shape=jax.ShapeDtypeStruct((M, N), out_dtype),
        grid=grid,
        in_specs=in_specs,
        out_specs=pl.BlockSpec((tile_m, N), lambda i: (i, 0)),
        compiler_params=pltpu.CompilerParams(
            dimension_semantics=("parallel",),
            vmem_limit_bytes=_vmem_limit(est)),
    )(*args)


# ----------------------------------------------------------------------------
# 3x3 depthwise conv (groups == channels), pad 1, stride 1 or 2, + BN + ReLU6
# ----------------------------------------------------------------------------
def _dw_s1_kernel(x_ref, w_ref, shift_ref, o_ref, acc_ref):
    # x_ref: (1, H, W, C) UNPADDED tile (bf16 or f32); w_ref: (9, C); shift: (1, C)
    # acc_ref: (H, W, C) f32 scratch.
    _, H, W, C = x_ref.shape
    x = x_ref[0].astype(jnp.float32)                    # upcast on load (v5e-safe)
    w = w_ref[...]                                      # (9, C) f32

    # W-neighbour taps via XLU rolls + single-column zero mask (no misaligned
    # sublane slices; the zero column reproduces the conv zero-padding).
    col = lax.broadcasted_iota(jnp.int32, (1, W, 1), 1)
    x_l = jnp.where(col == 0, 0.0, pltpu.roll(x, shift=1, axis=1))        # x[h, w-1]
    x_r = jnp.where(col == W - 1, 0.0, pltpu.roll(x, shift=W - 1, axis=1))  # x[h, w+1]
    taps = (x_l, x, x_r)

    acc_ref[...] = jnp.zeros_like(acc_ref)
    for kh in range(3):
        dh = kh - 1
        dst_lo, dst_hi = max(0, -dh), H - max(0, dh)    # output rows touched
        src_lo, src_hi = max(0, dh), H - max(0, -dh)    # input rows used
        if dst_hi <= dst_lo:
            continue
        for kw in range(3):
            acc_ref[dst_lo:dst_hi, :, :] = (
                acc_ref[dst_lo:dst_hi, :, :]
                + taps[kw][src_lo:src_hi, :, :] * w[kh * 3 + kw])

    out = acc_ref[...] + shift_ref[0]
    o_ref[0] = jnp.clip(out, 0.0, 6.0).astype(o_ref.dtype)


def _dw_s2_kernel(p00_ref, p01_ref, p10_ref, p11_ref, w_ref, shift_ref, o_ref):
    # Parity planes of the (virtually) zero-padded input:
    # plane[p][q] = x_pad[:, p::2, q::2, :].  Tap (kh, kw) of a stride-2 conv
    # is a contiguous slice of plane[kh%2][kw%2].
    _, Ho, Wo, C = o_ref.shape
    planes = ((p00_ref, p01_ref), (p10_ref, p11_ref))
    w = w_ref[...]
    acc = jnp.zeros((Ho, Wo, C), jnp.float32)
    for kh in range(3):
        for kw in range(3):
            pr = planes[kh % 2][kw % 2]
            r0, c0 = kh // 2, kw // 2
            tap = pr[0, r0:r0 + Ho, c0:c0 + Wo, :].astype(jnp.float32)
            acc = acc + tap * w[kh * 3 + kw]
    acc = acc + shift_ref[0]
    o_ref[0] = jnp.clip(acc, 0.0, 6.0).astype(o_ref.dtype)


def _parity_plane(x, p, q, dtype):
    """plane[p][q] = zero_pad_1(x)[:, p::2, q::2, :], built directly from the
    unpadded x (strided slice + small per-plane pad, fused by XLA into a
    single pass; no standalone padded copy of x in HBM)."""
    _, H, W, _ = x.shape
    hp = (H + 1 - p) // 2 + 1
    wp = (W + 1 - q) // 2 + 1
    core = x[:, (1 - p)::2, (1 - q)::2, :]
    top, left = 1 - p, 1 - q
    bot = hp - top - core.shape[1]
    right = wp - left - core.shape[2]
    return jnp.pad(core, ((0, 0), (top, bot), (left, right), (0, 0))).astype(dtype)


def depthwise_conv_bn_relu6(x_nhwc, w9c, shift, stride, *, out_dtype=INTER_DTYPE):
    """x_nhwc: (B,H,W,C) bf16/f32; w9c: (9, C) (BN scale folded); shift: (C,)."""
    B, H, W, C = x_nhwc.shape
    Ho = (H - 1) // stride + 1
    Wo = (W - 1) // stride + 1
    # Channel tiling: no halo needed for a depthwise conv, bounds VMEM and
    # gives grid steps for pipelining / megacore.
    tc = 128 if (C % 128 == 0 and C > 128) else C
    grid = (B, C // tc)
    shift2 = shift.reshape(1, C).astype(jnp.float32)
    w9c = w9c.astype(jnp.float32)
    out_bytes = jnp.dtype(out_dtype).itemsize

    if stride == 1:
        est = (2 * H * W * tc * x_nhwc.dtype.itemsize        # input tiles (x2 buf)
               + 2 * Ho * Wo * tc * out_bytes                 # output tiles
               + H * W * tc * 4                               # f32 acc scratch
               + 4 * 10 * tc)                                 # weights + shift
        return pl.pallas_call(
            _dw_s1_kernel,
            out_shape=jax.ShapeDtypeStruct((B, Ho, Wo, C), out_dtype),
            grid=grid,
            in_specs=[
                pl.BlockSpec((1, H, W, tc), lambda b, c: (b, 0, 0, c)),
                pl.BlockSpec((9, tc), lambda b, c: (0, c)),
                pl.BlockSpec((1, tc), lambda b, c: (0, c)),
            ],
            out_specs=pl.BlockSpec((1, Ho, Wo, tc), lambda b, c: (b, 0, 0, c)),
            scratch_shapes=[pltpu.VMEM((H, W, tc), jnp.float32)],
            compiler_params=pltpu.CompilerParams(
                dimension_semantics=("parallel", "parallel"),
                vmem_limit_bytes=_vmem_limit(est)),
        )(x_nhwc, w9c, shift2)

    # stride == 2: parity planes built straight from the unpadded input (bf16).
    # TODO(synk): an in-kernel strided-read formulation would remove the
    #             remaining plane-construction pass entirely.
    planes = [_parity_plane(x_nhwc, p, q, INTER_DTYPE) for p in (0, 1) for q in (0, 1)]
    plane_specs = [pl.BlockSpec((1,) + pln.shape[1:3] + (tc,),
                                lambda b, c: (b, 0, 0, c))
                   for pln in planes]
    est = (2 * sum(p.shape[1] * p.shape[2] for p in planes) * tc
           * jnp.dtype(INTER_DTYPE).itemsize
           + 2 * Ho * Wo * tc * out_bytes + 4 * 10 * tc)
    return pl.pallas_call(
        _dw_s2_kernel,
        out_shape=jax.ShapeDtypeStruct((B, Ho, Wo, C), out_dtype),
        grid=grid,
        in_specs=plane_specs + [
            pl.BlockSpec((9, tc), lambda b, c: (0, c)),
            pl.BlockSpec((1, tc), lambda b, c: (0, c)),
        ],
        out_specs=pl.BlockSpec((1, Ho, Wo, tc), lambda b, c: (b, 0, 0, c)),
        compiler_params=pltpu.CompilerParams(
            dimension_semantics=("parallel", "parallel"),
            vmem_limit_bytes=_vmem_limit(est)),
    )(*planes, w9c, shift2)


# ----------------------------------------------------------------------------
# InvertedResidual forward (eval-mode BN folded into conv weights)
# ----------------------------------------------------------------------------
def fold_bn(gamma, beta, mean, var, eps=1e-5):
    scale = gamma * lax.rsqrt(var + eps)
    shift = beta - mean * scale
    return scale, shift


def inverted_residual_forward(params, x_nchw, *, stride):
    B, inp, H, W = x_nchw.shape
    x = jnp.transpose(x_nchw, (0, 2, 3, 1))               # NCHW -> NHWC
    h = x

    if "expand" in params:                                 # ConvBNReLU(inp, hidden, 1)
        w, bn = params["expand"]
        scale, shift = fold_bn(*bn)
        hidden = w.shape[0]
        # Lane-dense hidden dim (padding lives only in folded weights/shifts).
        cdw = _lane_pad_channels(hidden)
        wmat = w[:, :, 0, 0].T * scale[None, :]            # (inp, hidden)
        if cdw != hidden:
            wmat = jnp.pad(wmat, ((0, 0), (0, cdw - hidden)))
            shift = jnp.pad(shift, (0, cdw - hidden))
        h2d = pointwise_conv_bn(h.reshape(B * H * W, inp), wmat.astype(MXU_DTYPE),
                                shift, relu6=True, out_dtype=INTER_DTYPE)
        h = h2d.reshape(B, H, W, cdw)
    else:
        hidden = inp
        cdw = inp

    # ConvBNReLU(hidden, hidden, 3, stride, groups=hidden) — depthwise
    w, bn = params["depthwise"]
    scale, shift = fold_bn(*bn)
    w9c = w[:, 0, :, :].reshape(hidden, 9).T * scale[None, :]   # (9, hidden)
    if cdw != hidden:
        w9c = jnp.pad(w9c, ((0, 0), (0, cdw - hidden)))
        shift = jnp.pad(shift, (0, cdw - hidden))
    h = depthwise_conv_bn_relu6(h, w9c, shift, stride, out_dtype=INTER_DTYPE)
    Ho, Wo = h.shape[1], h.shape[2]

    # Conv2d(hidden, oup, 1, bias=False) + BatchNorm2d(oup)  [+ residual]
    w, bn = params["project"]
    scale, shift = fold_bn(*bn)
    oup = w.shape[0]
    wmat = w[:, :, 0, 0].T * scale[None, :]                # (hidden, oup)
    if cdw != hidden:
        wmat = jnp.pad(wmat, ((0, cdw - hidden), (0, 0)))  # zero rows: no effect
    use_res = (stride == 1 and inp == oup)
    residual = x.reshape(B * H * W, inp) if use_res else None
    out2d = pointwise_conv_bn(h.reshape(B * Ho * Wo, cdw), wmat.astype(MXU_DTYPE),
                              shift, relu6=False, residual=residual,
                              out_dtype=jnp.float32)
    return jnp.transpose(out2d.reshape(B, Ho, Wo, oup), (0, 3, 1, 2))  # -> NCHW


# ----------------------------------------------------------------------------
# Deterministic parameter init (PyTorch layouts; randomized BN stats for eval)
# ----------------------------------------------------------------------------
def init_inverted_residual(key, inp, oup, stride, expand_ratio):
    hidden = int(round(inp * expand_ratio))

    def conv_w(k, shape, fan_in):
        b = 1.0 / float(fan_in ** 0.5)
        return jax.random.uniform(k, shape, jnp.float32, -b, b)

    def bn_params(k, c):
        k1, k2, k3, k4 = jax.random.split(k, 4)
        gamma = jax.random.uniform(k1, (c,), jnp.float32, 0.5, 1.5)
        beta = jax.random.uniform(k2, (c,), jnp.float32, -0.2, 0.2)
        mean = 0.1 * jax.random.normal(k3, (c,), jnp.float32)
        var = jax.random.uniform(k4, (c,), jnp.float32, 0.5, 1.5)
        return gamma, beta, mean, var

    ks = jax.random.split(key, 6)
    params = {}
    if expand_ratio != 1:
        params["expand"] = (conv_w(ks[0], (hidden, inp, 1, 1), inp),
                            bn_params(ks[1], hidden))
    params["depthwise"] = (conv_w(ks[2], (hidden, 1, 3, 3), 9),
                           bn_params(ks[3], hidden))
    params["project"] = (conv_w(ks[4], (oup, hidden, 1, 1), hidden),
                         bn_params(ks[5], oup))
    return params


# ----------------------------------------------------------------------------
# Pure-JAX reference (exact eval-mode PyTorch semantics, full f32)
# ----------------------------------------------------------------------------
def inverted_residual_ref(params, x, *, stride):
    inp = x.shape[1]

    def bn(y, p, eps=1e-5):
        gamma, beta, mean, var = (a.reshape(1, -1, 1, 1) for a in p)
        return (y - mean) * gamma * lax.rsqrt(var + eps) + beta

    def conv(y, w, s=1, groups=1):
        pad = (w.shape[-1] - 1) // 2
        return lax.conv_general_dilated(
            y, w, (s, s), [(pad, pad), (pad, pad)],
            dimension_numbers=("NCHW", "OIHW", "NCHW"),
            feature_group_count=groups)

    h = x
    if "expand" in params:
        w, bnp = params["expand"]
        h = jnp.clip(bn(conv(h, w), bnp), 0.0, 6.0)
    w, bnp = params["depthwise"]
    h = jnp.clip(bn(conv(h, w, s=stride, groups=w.shape[0]), bnp), 0.0, 6.0)
    w, bnp = params["project"]
    h = bn(conv(h, w), bnp)
    if stride == 1 and inp == w.shape[0]:
        h = x + h
    return h


if __name__ == "__main__":
    key = jax.random.PRNGKey(0)
    B, H, W = 2, 16, 16
    configs = [
        dict(inp=16, oup=16, stride=1, expand_ratio=6),   # residual path, hidden 96->128
        dict(inp=16, oup=24, stride=2, expand_ratio=6),   # stride-2, no residual
        dict(inp=16, oup=16, stride=1, expand_ratio=1),   # no expand conv
    ]
    for cfg in configs:
        kp, kx, key = jax.random.split(key, 3)
        params = init_inverted_residual(kp, **cfg)
        x = jax.random.normal(kx, (B, cfg["inp"], H, W), jnp.float32)

        fwd = jax.jit(functools.partial(inverted_residual_forward,
                                        stride=cfg["stride"]))
        out = jax.block_until_ready(fwd(params, x))
        ref = inverted_residual_ref(params, x, stride=cfg["stride"])

        Ho = (H - 1) // cfg["stride"] + 1
        assert out.shape == (B, cfg["oup"], Ho, Ho), out.shape
        assert bool(jnp.all(jnp.isfinite(out)))
        max_err = float(jnp.max(jnp.abs(out - ref)))
        assert bool(jnp.allclose(out, ref, rtol=6e-2, atol=6e-2)), (cfg, max_err)
    print("KERNEL_OK")
</pallas_src>

<mosaic_0001>
module attributes {stable_mosaic.version = 11 : i64} {
  func.func @_pw_kernel(%arg0: i32, %arg1: memref<256x128xbf16, #tpu.memory_space<vmem>>, %arg2: memref<128x16xbf16, #tpu.memory_space<vmem>>, %arg3: memref<1x16xf32, #tpu.memory_space<vmem>>, %arg4: memref<256x16xf32, #tpu.memory_space<vmem>>, %arg5: memref<256x16xf32, #tpu.memory_space<vmem>>) attributes {dimension_semantics = [#tpu.dimension_semantics<parallel>], iteration_bounds = array<i64: 2>, scalar_prefetch = 0 : i64, scratch_operands = 0 : i64, tpu.core_type = #tpu.core_type<tc>, window_params = [{transform_indices = @transform_0, window_bounds = array<i64: 256, 128>}, {pipeline_mode = #tpu.pipeline_mode<synchronous>, transform_indices = @transform_1, window_bounds = array<i64: 128, 16>}, {pipeline_mode = #tpu.pipeline_mode<synchronous>, transform_indices = @transform_2, window_bounds = array<i64: 1, 16>}, {transform_indices = @transform_3, window_bounds = array<i64: 256, 16>}, {transform_indices = @transform_4, window_bounds = array<i64: 256, 16>}]} {
    %c0 = arith.constant 0 : index
    %c0_0 = arith.constant 0 : index
    %0 = vector.load %arg1[%c0, %c0_0] : memref<256x128xbf16, #tpu.memory_space<vmem>>, vector<256x128xbf16>
    %c0_1 = arith.constant 0 : index
    %c0_2 = arith.constant 0 : index
    %1 = vector.load %arg2[%c0_1, %c0_2] : memref<128x16xbf16, #tpu.memory_space<vmem>>, vector<128x16xbf16>
    %cst = arith.constant dense<0.000000e+00> : vector<256x16xf32>
    %2 = tpu.matmul %0, %1, %cst {dimension_numbers = #tpu.dot_dimension_numbers<[1], [0], [0], [1], [0, 0, 1, 1], [], []>} : vector<256x128xbf16>, vector<128x16xbf16>, vector<256x16xf32> -> vector<256x16xf32>
    %c0_3 = arith.constant 0 : index
    %c0_4 = arith.constant 0 : index
    %3 = vector.load %arg3[%c0_3, %c0_4] : memref<1x16xf32, #tpu.memory_space<vmem>>, vector<1x16xf32>
    %4 = vector.broadcast %3 : vector<1x16xf32> to vector<256x16xf32>
    %5 = arith.addf %2, %4 : vector<256x16xf32>
    %c0_5 = arith.constant 0 : index
    %c0_6 = arith.constant 0 : index
    %6 = vector.load %arg4[%c0_5, %c0_6] : memref<256x16xf32, #tpu.memory_space<vmem>>, vector<256x16xf32>
    %7 = arith.addf %5, %6 : vector<256x16xf32>
    %c0_7 = arith.constant 0 : index
    %c0_8 = arith.constant 0 : index
    %8 = vector.load %arg5[%c0_7, %c0_8] : memref<256x16xf32, #tpu.memory_space<vmem>>, vector<256x16xf32>
    tpu.vector_store %arg5[%c0_7, %c0_8], %7 {strides = array<i32>} : memref<256x16xf32, #tpu.memory_space<vmem>>, vector<256x16xf32>,
    return
  }
  func.func @transform_0(%arg0: i32) -> (i32, i32) {
    %c0_i32 = arith.constant 0 : i32
    %c0_i32_0 = arith.constant 0 : i32
    return %arg0, %c0_i32 : i32, i32
  }
  func.func @transform_1(%arg0: i32) -> (i32, i32) {
    %c0_i32 = arith.constant 0 : i32
    %c0_i32_0 = arith.constant 0 : i32
    %c0_i32_1 = arith.constant 0 : i32
    return %c0_i32, %c0_i32_0 : i32, i32
  }
  func.func @transform_2(%arg0: i32) -> (i32, i32) {
    %c0_i32 = arith.constant 0 : i32
    %c0_i32_0 = arith.constant 0 : i32
    %c0_i32_1 = arith.constant 0 : i32
    return %c0_i32, %c0_i32_0 : i32, i32
  }
  func.func @transform_3(%arg0: i32) -> (i32, i32) {
    %c0_i32 = arith.constant 0 : i32
    %c0_i32_0 = arith.constant 0 : i32
    return %arg0, %c0_i32 : i32, i32
  }
  func.func @transform_4(%arg0: i32) -> (i32, i32) {
    %c0_i32 = arith.constant 0 : i32
    %c0_i32_0 = arith.constant 0 : i32
    return %arg0, %c0_i32 : i32, i32
  }
}

module attributes {stable_mosaic.version = 11 : i64} {
  func.func @_pw_kernel(%arg0: i32, %arg1: memref<256x16xf32, #tpu.memory_space<vmem>>, %arg2: memref<16x128xbf16, #tpu.memory_space<vmem>>, %arg3: memref<1x128xf32, #tpu.memory_space<vmem>>, %arg4: memref<256x128xbf16, #tpu.memory_space<vmem>>) attributes {dimension_semantics = [#tpu.dimension_semantics<parallel>], iteration_bounds = array<i64: 2>, scalar_prefetch = 0 : i64, scratch_operands = 0 : i64, tpu.core_type = #tpu.core_type<tc>, window_params = [{transform_indices = @transform_0, window_bounds = array<i64: 256, 16>}, {pipeline_mode = #tpu.pipeline_mode<synchronous>, transform_indices = @transform_1, window_bounds = array<i64: 16, 128>}, {pipeline_mode = #tpu.pipeline_mode<synchronous>, transform_indices = @transform_2, window_bounds = array<i64: 1, 128>}, {transform_indices = @transform_3, window_bounds = array<i64: 256, 128>}]} {
    %c0 = arith.constant 0 : index
    %c0_0 = arith.constant 0 : index
    %0 = vector.load %arg1[%c0, %c0_0] : memref<256x16xf32, #tpu.memory_space<vmem>>, vector<256x16xf32>
    %1 = arith.truncf %0 : vector<256x16xf32> to vector<256x16xbf16>
    %c0_1 = arith.constant 0 : index
    %c0_2 = arith.constant 0 : index
    %2 = vector.load %arg2[%c0_1, %c0_2] : memref<16x128xbf16, #tpu.memory_space<vmem>>, vector<16x128xbf16>
    %cst = arith.constant dense<0.000000e+00> : vector<256x128xf32>
    %3 = tpu.matmul %1, %2, %cst {dimension_numbers = #tpu.dot_dimension_numbers<[1], [0], [0], [1], [0, 0, 1, 1], [], []>} : vector<256x16xbf16>, vector<16x128xbf16>, vector<256x128xf32> -> vector<256x128xf32>
    %c0_3 = arith.constant 0 : index
    %c0_4 = arith.constant 0 : index
    %4 = vector.load %arg3[%c0_3, %c0_4] : memref<1x128xf32, #tpu.memory_space<vmem>>, vector<1x128xf32>
    %5 = vector.broadcast %4 : vector<1x128xf32> to vector<256x128xf32>
    %6 = arith.addf %3, %5 : vector<256x128xf32>
    %cst_5 = arith.constant 0.000000e+00 : f32
    %cst_6 = arith.constant 6.000000e+00 : f32
    %7 = vector.broadcast %cst_5 : f32 to vector<256x128xf32>
    %8 = arith.maximumf %7, %6 : vector<256x128xf32>
    %9 = vector.broadcast %cst_6 : f32 to vector<256x128xf32>
    %10 = arith.minimumf %9, %8 : vector<256x128xf32>
    %11 = arith.truncf %10 : vector<256x128xf32> to vector<256x128xbf16>
    %c0_7 = arith.constant 0 : index
    %c0_8 = arith.constant 0 : index
    %12 = vector.load %arg4[%c0_7, %c0_8] : memref<256x128xbf16, #tpu.memory_space<vmem>>, vector<256x128xbf16>
    tpu.vector_store %arg4[%c0_7, %c0_8], %11 {strides = array<i32>} : memref<256x128xbf16, #tpu.memory_space<vmem>>, vector<256x128xbf16>,
    return
  }
  func.func @transform_0(%arg0: i32) -> (i32, i32) {
    %c0_i32 = arith.constant 0 : i32
    %c0_i32_0 = arith.constant 0 : i32
    return %arg0, %c0_i32 : i32, i32
  }
  func.func @transform_1(%arg0: i32) -> (i32, i32) {
    %c0_i32 = arith.constant 0 : i32
    %c0_i32_0 = arith.constant 0 : i32
    %c0_i32_1 = arith.constant 0 : i32
    return %c0_i32, %c0_i32_0 : i32, i32
  }
  func.func @transform_2(%arg0: i32) -> (i32, i32) {
    %c0_i32 = arith.constant 0 : i32
    %c0_i32_0 = arith.constant 0 : i32
    %c0_i32_1 = arith.constant 0 : i32
    return %c0_i32, %c0_i32_0 : i32, i32
  }
  func.func @transform_3(%arg0: i32) -> (i32, i32) {
    %c0_i32 = arith.constant 0 : i32
    %c0_i32_0 = arith.constant 0 : i32
    return %arg0, %c0_i32 : i32, i32
  }
}

module attributes {stable_mosaic.version = 11 : i64} {
  func.func @_dw_s1_kernel(%arg0: i32, %arg1: i32, %arg2: memref<1x16x16x128xbf16, #tpu.memory_space<vmem>>, %arg3: memref<9x128xf32, #tpu.memory_space<vmem>>, %arg4: memref<1x128xf32, #tpu.memory_space<vmem>>, %arg5: memref<1x16x16x128xbf16, #tpu.memory_space<vmem>>, %arg6: memref<16x16x128xf32, #tpu.memory_space<vmem>>) attributes {dimension_semantics = [#tpu.dimension_semantics<parallel>, #tpu.dimension_semantics<parallel>], iteration_bounds = array<i64: 2, 1>, scalar_prefetch = 0 : i64, scratch_operands = 1 : i64, tpu.core_type = #tpu.core_type<tc>, window_params = [{transform_indices = @transform_0, window_bounds = array<i64: 1, 16, 16, 128>}, {transform_indices = @transform_1, window_bounds = array<i64: 9, 128>}, {transform_indices = @transform_2, window_bounds = array<i64: 1, 128>}, {transform_indices = @transform_3, window_bounds = array<i64: 1, 16, 16, 128>}]} {
    %c0 = arith.constant 0 : index
    %c0_0 = arith.constant 0 : index
    %c0_1 = arith.constant 0 : index
    %c0_2 = arith.constant 0 : index
    %0 = vector.load %arg2[%c0, %c0_0, %c0_1, %c0_2] : memref<1x16x16x128xbf16, #tpu.memory_space<vmem>>, vector<1x16x16x128xbf16>
    %1 = vector.shape_cast %0 : vector<1x16x16x128xbf16> to vector<16x16x128xbf16>
    %2 = arith.extf %1 : vector<16x16x128xbf16> to vector<16x16x128xf32>
    %c0_3 = arith.constant 0 : index
    %c0_4 = arith.constant 0 : index
    %3 = vector.load %arg3[%c0_3, %c0_4] : memref<9x128xf32, #tpu.memory_space<vmem>>, vector<9x128xf32>
    %4 = tpu.iota {dimensions = array<i32: 1>} : vector<1x16x1xi32>
    %c0_i32 = arith.constant 0 : i32
    %5 = vector.broadcast %c0_i32 : i32 to vector<1x16x1xi32>
    %6 = arith.cmpi eq, %4, %5 : vector<1x16x1xi32>
    %c1_i32 = arith.constant 1 : i32
    %7 = tpu.dynamic_rotate %2 by %c1_i32 dim 1 : vector<16x16x128xf32>, i32 -> vector<16x16x128xf32>
    %cst = arith.constant 0.000000e+00 : f32
    %8 = vector.shape_cast %6 : vector<1x16x1xi1> to vector<1x16x1xi1>
    %9 = vector.broadcast %8 : vector<1x16x1xi1> to vector<16x16x128xi1>
    %10 = vector.broadcast %cst : f32 to vector<16x16x128xf32>
    %11 = arith.select %9, %10, %7 : vector<16x16x128xi1>, vector<16x16x128xf32>
    %c15_i32 = arith.constant 15 : i32
    %12 = vector.broadcast %c15_i32 : i32 to vector<1x16x1xi32>
    %13 = arith.cmpi eq, %4, %12 : vector<1x16x1xi32>
    %c15_i32_5 = arith.constant 15 : i32
    %14 = tpu.dynamic_rotate %2 by %c15_i32_5 dim 1 : vector<16x16x128xf32>, i32 -> vector<16x16x128xf32>
    %cst_6 = arith.constant 0.000000e+00 : f32
    %15 = vector.shape_cast %13 : vector<1x16x1xi1> to vector<1x16x1xi1>
    %16 = vector.broadcast %15 : vector<1x16x1xi1> to vector<16x16x128xi1>
    %17 = vector.broadcast %cst_6 : f32 to vector<16x16x128xf32>
    %18 = arith.select %16, %17, %14 : vector<16x16x128xi1>, vector<16x16x128xf32>
    %cst_7 = arith.constant 0.000000e+00 : f32
    %19 = vector.broadcast %cst_7 : f32 to vector<16x16x128xf32>
    %c0_8 = arith.constant 0 : index
    %c0_9 = arith.constant 0 : index
    %c0_10 = arith.constant 0 : index
    %20 = vector.load %arg6[%c0_8, %c0_9, %c0_10] : memref<16x16x128xf32, #tpu.memory_space<vmem>>, vector<16x16x128xf32>
    tpu.vector_store %arg6[%c0_8, %c0_9, %c0_10], %19 {strides = array<i32>} : memref<16x16x128xf32, #tpu.memory_space<vmem>>, vector<16x16x128xf32>,
    %c1 = arith.constant 1 : index
    %c0_11 = arith.constant 0 : index
    %c0_12 = arith.constant 0 : index
    %21 = vector.load %arg6[%c1, %c0_11, %c0_12] : memref<16x16x128xf32, #tpu.memory_space<vmem>>, vector<15x16x128xf32>
    %22 = vector.extract_strided_slice %11 {offsets = [0, 0, 0], sizes = [15, 16, 128], strides = [1, 1, 1]} : vector<16x16x128xf32> to vector<15x16x128xf32>
    %23 = vector.extract_strided_slice %3 {offsets = [0, 0], sizes = [1, 128], strides = [1, 1]} : vector<9x128xf32> to vector<1x128xf32>
    %24 = vector.shape_cast %23 : vector<1x128xf32> to vector<128xf32>
    %25 = vector.shape_cast %24 : vector<128xf32> to vector<1x1x128xf32>
    %26 = vector.broadcast %25 : vector<1x1x128xf32> to vector<15x16x128xf32>
    %27 = arith.mulf %22, %26 : vector<15x16x128xf32>
    %28 = arith.addf %21, %27 : vector<15x16x128xf32>
    %c1_13 = arith.constant 1 : index
    %c0_14 = arith.constant 0 : index
    %c0_15 = arith.constant 0 : index
    %29 = vector.load %arg6[%c1_13, %c0_14, %c0_15] : memref<16x16x128xf32, #tpu.memory_space<vmem>>, vector<15x16x128xf32>
    tpu.vector_store %arg6[%c1_13, %c0_14, %c0_15], %28 {strides = array<i32>} : memref<16x16x128xf32, #tpu.memory_space<vmem>>, vector<15x16x128xf32>,
    %c1_16 = arith.constant 1 : index
    %c0_17 = arith.constant 0 : index
    %c0_18 = arith.constant 0 : index
    %30 = vector.load %arg6[%c1_16, %c0_17, %c0_18] : memref<16x16x128xf32, #tpu.memory_space<vmem>>, vector<15x16x128xf32>
    %31 = vector.extract_strided_slice %2 {offsets = [0, 0, 0], sizes = [15, 16, 128], strides = [1, 1, 1]} : vector<16x16x128xf32> to vector<15x16x128xf32>
    %32 = vector.extract_strided_slice %3 {offsets = [1, 0], sizes = [1, 128], strides = [1, 1]} : vector<9x128xf32> to vector<1x128xf32>
    %33 = vector.shape_cast %32 : vector<1x128xf32> to vector<128xf32>
    %34 = vector.shape_cast %33 : vector<128xf32> to vector<1x1x128xf32>
    %35 = vector.broadcast %34 : vector<1x1x128xf32> to vector<15x16x128xf32>
    %36 = arith.mulf %31, %35 : vector<15x16x128xf32>
    %37 = arith.addf %30, %36 : vector<15x16x128xf32>
    %c1_19 = arith.constant 1 : index
    %c0_20 = arith.constant 0 : index
    %c0_21 = arith.constant 0 : index
    %38 = vector.load %arg6[%c1_19, %c0_20, %c0_21] : memref<16x16x128xf32, #tpu.memory_space<vmem>>, vector<15x16x128xf32>
    tpu.vector_store %arg6[%c1_19, %c0_20, %c0_21], %37 {strides = array<i32>} : memref<16x16x128xf32, #tpu.memory_space<vmem>>, vector<15x16x128xf32>,
    %c1_22 = arith.constant 1 : index
    %c0_23 = arith.constant 0 : index
    %c0_24 = arith.constant 0 : index
    %39 = vector.load %arg6[%c1_22, %c0_23, %c0_24] : memref<16x16x128xf32, #tpu.memory_space<vmem>>, vector<15x16x128xf32>
    %40 = vector.extract_strided_slice %18 {offsets = [0, 0, 0], sizes = [15, 16, 128], strides = [1, 1, 1]} : vector<16x16x128xf32> to vector<15x16x128xf32>
    %41 = vector.extract_strided_slice %3 {offsets = [2, 0], sizes = [1, 128], strides = [1, 1]} : vector<9x128xf32> to vector<1x128xf32>
    %42 = vector.shape_cast %41 : vector<1x128xf32> to vector<128xf32>
    %43 = vector.shape_cast %42 : vector<128xf32> to vector<1x1x128xf32>
    %44 = vector.broadcast %43 : vector<1x1x128xf32> to vector<15x16x128xf32>
    %45 = arith.mulf %40, %44 : vector<15x16x128xf32>
    %46 = arith.addf %39, %45 : vector<15x16x128xf32>
    %c1_25 = arith.constant 1 : index
    %c0_26 = arith.constant 0 : index
    %c0_27 = arith.constant 0 : index
    %47 = vector.load %arg6[%c1_25, %c0_26, %c0_27] : memref<16x16x128xf32, #tpu.memory_space<vmem>>, vector<15x16x128xf32>
    tpu.vector_store %arg6[%c1_25, %c0_26, %c0_27], %46 {strides = array<i32>} : memref<16x16x128xf32, #tpu.memory_space<vmem>>, vector<15x16x128xf32>,
    %c0_28 = arith.constant 0 : index
    %c0_29 = arith.constant 0 : index
    %c0_30 = arith.constant 0 : index
    %48 = vector.load %arg6[%c0_28, %c0_29, %c0_30] : memref<16x16x128xf32, #tpu.memory_space<vmem>>, vector<16x16x128xf32>
    %49 = vector.extract_strided_slice %3 {offsets = [3, 0], sizes = [1, 128], strides = [1, 1]} : vector<9x128xf32> to vector<1x128xf32>
    %50 = vector.shape_cast %49 : vector<1x128xf32> to vector<128xf32>
    %51 = vector.shape_cast %50 : vector<128xf32> to vector<1x1x128xf32>
    %52 = vector.broadcast %51 : vector<1x1x128xf32> to vector<16x16x128xf32>
    %53 = arith.mulf %11, %52 : vector<16x16x128xf32>
    %54 = arith.addf %48, %53 : vector<16x16x128xf32>
    %c0_31 = arith.constant 0 : index
    %c0_32 = arith.constant 0 : index
    %c0_33 = arith.constant 0 : index
    %55 = vector.load %arg6[%c0_31, %c0_32, %c0_33] : memref<16x16x128xf32, #tpu.memory_space<vmem>>, vector<16x16x128xf32>
    tpu.vector_store %arg6[%c0_31, %c0_32, %c0_33], %54 {strides = array<i32>} : memref<16x16x128xf32, #tpu.memory_space<vmem>>, vector<16x16x128xf32>,
    %c0_34 = arith.constant 0 : index
    %c0_35 = arith.constant 0 : index
    %c0_36 = arith.constant 0 : index
    %56 = vector.load %arg6[%c0_34, %c0_35, %c0_36] : memref<16x16x128xf32, #tpu.memory_space<vmem>>, vector<16x16x128xf32>
    %57 = vector.extract_strided_slice %3 {offsets = [4, 0], sizes = [1, 128], strides = [1, 1]} : vector<9x128xf32> to vector<1x128xf32>
    %58 = vector.shape_cast %57 : vector<1x128xf32> to vector<128xf32>
    %59 = vector.shape_cast %58 : vector<128xf32> to vector<1x1x128xf32>
    %60 = vector.broadcast %59 : vector<1x1x128xf32> to vector<16x16x128xf32>
    %61 = arith.mulf %2, %60 : vector<16x16x128xf32>
    %62 = arith.addf %56, %61 : vector<16x16x128xf32>
    %c0_37 = arith.constant 0 : index
    %c0_38 = arith.constant 0 : index
    %c0_39 = arith.constant 0 : index
    %63 = vector.load %arg6[%c0_37, %c0_38, %c0_39] : memref<16x16x128xf32, #tpu.memory_space<vmem>>, vector<16x16x128xf32>
    tpu.vector_store %arg6[%c0_37, %c0_38, %c0_39], %62 {strides = array<i32>} : memref<16x16x128xf32, #tpu.memory_space<vmem>>, vector<16x16x128xf32>,
    %c0_40 = arith.constant 0 : index
    %c0_41 = arith.constant 0 : index
    %c0_42 = arith.constant 0 : index
    %64 = vector.load %arg6[%c0_40, %c0_41, %c0_42] : memref<16x16x128xf32, #tpu.memory_space<vmem>>, vector<16x16x128xf32>
    %65 = vector.extract_strided_slice %3 {offsets = [5, 0], sizes = [1, 128], strides = [1, 1]} : vector<9x128xf32> to vector<1x128xf32>
    %66 = vector.shape_cast %65 : vector<1x128xf32> to vector<128xf32>
    %67 = vector.shape_cast %66 : vector<128xf32> to vector<1x1x128xf32>
    %68 = vector.broadcast %67 : vector<1x1x128xf32> to vector<16x16x128xf32>
    %69 = arith.mulf %18, %68 : vector<16x16x128xf32>
    %70 = arith.addf %64, %69 : vector<16x16x128xf32>
    %c0_43 = arith.constant 0 : index
    %c0_44 = arith.constant 0 : index
    %c0_45 = arith.constant 0 : index
    %71 = vector.load %arg6[%c0_43, %c0_44, %c0_45] : memref<16x16x128xf32, #tpu.memory_space<vmem>>, vector<16x16x128xf32>
    tpu.vector_store %arg6[%c0_43, %c0_44, %c0_45], %70 {strides = array<i32>} : memref<16x16x128xf32, #tpu.memory_space<vmem>>, vector<16x16x128xf32>,
    %c0_46 = arith.constant 0 : index
    %c0_47 = arith.constant 0 : index
    %c0_48 = arith.constant 0 : index
    %72 = vector.load %arg6[%c0_46, %c0_47, %c0_48] : memref<16x16x128xf32, #tpu.memory_space<vmem>>, vector<15x16x128xf32>
    %73 = vector.extract_strided_slice %11 {offsets = [1, 0, 0], sizes = [15, 16, 128], strides = [1, 1, 1]} : vector<16x16x128xf32> to vector<15x16x128xf32>
    %74 = vector.extract_strided_slice %3 {offsets = [6, 0], sizes = [1, 128], strides = [1, 1]} : vector<9x128xf32> to vector<1x128xf32>
    %75 = vector.shape_cast %74 : vector<1x128xf32> to vector<128xf32>
    %76 = vector.shape_cast %75 : vector<128xf32> to vector<1x1x128xf32>
    %77 = vector.broadcast %76 : vector<1x1x128xf32> to vector<15x16x128xf32>
    %78 = arith.mulf %73, %77 : vector<15x16x128xf32>
    %79 = arith.addf %72, %78 : vector<15x16x128xf32>
    %c0_49 = arith.constant 0 : index
    %c0_50 = arith.constant 0 : index
    %c0_51 = arith.constant 0 : index
    %80 = vector.load %arg6[%c0_49, %c0_50, %c0_51] : memref<16x16x128xf32, #tpu.memory_space<vmem>>, vector<15x16x128xf32>
    tpu.vector_store %arg6[%c0_49, %c0_50, %c0_51], %79 {strides = array<i32>} : memref<16x16x128xf32, #tpu.memory_space<vmem>>, vector<15x16x128xf32>,
    %c0_52 = arith.constant 0 : index
    %c0_53 = arith.constant 0 : index
    %c0_54 = arith.constant 0 : index
    %81 = vector.load %arg6[%c0_52, %c0_53, %c0_54] : memref<16x16x128xf32, #tpu.memory_space<vmem>>, vector<15x16x128xf32>
    %82 = vector.extract_strided_slice %2 {offsets = [1, 0, 0], sizes = [15, 16, 128], strides = [1, 1, 1]} : vector<16x16x128xf32> to vector<15x16x128xf32>
    %83 = vector.extract_strided_slice %3 {offsets = [7, 0], sizes = [1, 128], strides = [1, 1]} : vector<9x128xf32> to vector<1x128xf32>
    %84 = vector.shape_cast %83 : vector<1x128xf32> to vector<128xf32>
    %85 = vector.shape_cast %84 : vector<128xf32> to vector<1x1x128xf32>
    %86 = vector.broadcast %85 : vector<1x1x128xf32> to vector<15x16x128xf32>
    %87 = arith.mulf %82, %86 : vector<15x16x128xf32>
    %88 = arith.addf %81, %87 : vector<15x16x128xf32>
    %c0_55 = arith.constant 0 : index
    %c0_56 = arith.constant 0 : index
    %c0_57 = arith.constant 0 : index
    %89 = vector.load %arg6[%c0_55, %c0_56, %c0_57] : memref<16x16x128xf32, #tpu.memory_space<vmem>>, vector<15x16x128xf32>
    tpu.vector_store %arg6[%c0_55, %c0_56, %c0_57], %88 {strides = array<i32>} : memref<16x16x128xf32, #tpu.memory_space<vmem>>, vector<15x16x128xf32>,
    %c0_58 = arith.constant 0 : index
    %c0_59 = arith.constant 0 : index
    %c0_60 = arith.constant 0 : index
    %90 = vector.load %arg6[%c0_58, %c0_59, %c0_60] : memref<16x16x128xf32, #tpu.memory_space<vmem>>, vector<15x16x128xf32>
    %91 = vector.extract_strided_slice %18 {offsets = [1, 0, 0], sizes = [15, 16, 128], strides = [1, 1, 1]} : vector<16x16x128xf32> to vector<15x16x128xf32>
    %92 = vector.extract_strided_slice %3 {offsets = [8, 0], sizes = [1, 128], strides = [1, 1]} : vector<9x128xf32> to vector<1x128xf32>
    %93 = vector.shape_cast %92 : vector<1x128xf32> to vector<128xf32>
    %94 = vector.shape_cast %93 : vector<128xf32> to vector<1x1x128xf32>
    %95 = vector.broadcast %94 : vector<1x1x128xf32> to vector<15x16x128xf32>
    %96 = arith.mulf %91, %95 : vector<15x16x128xf32>
    %97 = arith.addf %90, %96 : vector<15x16x128xf32>
    %c0_61 = arith.constant 0 : index
    %c0_62 = arith.constant 0 : index
    %c0_63 = arith.constant 0 : index
    %98 = vector.load %arg6[%c0_61, %c0_62, %c0_63] : memref<16x16x128xf32, #tpu.memory_space<vmem>>, vector<15x16x128xf32>
    tpu.vector_store %arg6[%c0_61, %c0_62, %c0_63], %97 {strides = array<i32>} : memref<16x16x128xf32, #tpu.memory_space<vmem>>, vector<15x16x128xf32>,
    %c0_64 = arith.constant 0 : index
    %c0_65 = arith.constant 0 : index
    %c0_66 = arith.constant 0 : index
    %99 = vector.load %arg6[%c0_64, %c0_65, %c0_66] : memref<16x16x128xf32, #tpu.memory_space<vmem>>, vector<16x16x128xf32>
    %c0_67 = arith.constant 0 : index
    %c0_68 = arith.constant 0 : index
    %100 = vector.load %arg4[%c0_67, %c0_68] : memref<1x128xf32, #tpu.memory_space<vmem>>, vector<1x128xf32>
    %101 = vector.shape_cast %100 : vector<1x128xf32> to vector<128xf32>
    %102 = vector.shape_cast %101 : vector<128xf32> to vector<1x1x128xf32>
    %103 = vector.broadcast %102 : vector<1x1x128xf32> to vector<16x16x128xf32>
    %104 = arith.addf %99, %103 : vector<16x16x128xf32>
    %cst_69 = arith.constant 0.000000e+00 : f32
    %cst_70 = arith.constant 6.000000e+00 : f32
    %105 = vector.broadcast %cst_69 : f32 to vector<16x16x128xf32>
    %106 = arith.maximumf %105, %104 : vector<16x16x128xf32>
    %107 = vector.broadcast %cst_70 : f32 to vector<16x16x128xf32>
    %108 = arith.minimumf %107, %106 : vector<16x16x128xf32>
    %109 = arith.truncf %108 : vector<16x16x128xf32> to vector<16x16x128xbf16>
    %c0_71 = arith.constant 0 : index
    %c0_72 = arith.constant 0 : index
    %c0_73 = arith.constant 0 : index
    %c0_74 = arith.constant 0 : index
    %110 = vector.load %arg5[%c0_71, %c0_72, %c0_73, %c0_74] : memref<1x16x16x128xbf16, #tpu.memory_space<vmem>>, vector<1x16x16x128xbf16>
    %111 = vector.shape_cast %110 : vector<1x16x16x128xbf16> to vector<16x16x128xbf16>
    %112 = vector.shape_cast %109 : vector<16x16x128xbf16> to vector<1x16x16x128xbf16>
    tpu.vector_store %arg5[%c0_71, %c0_72, %c0_73, %c0_74], %112 {strides = array<i32>} : memref<1x16x16x128xbf16, #tpu.memory_space<vmem>>, vector<1x16x16x128xbf16>,
    return
  }
  func.func @transform_0(%arg0: i32, %arg1: i32) -> (i32, i32, i32, i32) {
    %c0_i32 = arith.constant 0 : i32
    %c0_i32_0 = arith.constant 0 : i32
    %c0_i32_1 = arith.constant 0 : i32
    return %arg0, %c0_i32, %c0_i32_0, %arg1 : i32, i32, i32, i32
  }
  func.func @transform_1(%arg0: i32, %arg1: i32) -> (i32, i32) {
    %c0_i32 = arith.constant 0 : i32
    %c0_i32_0 = arith.constant 0 : i32
    return %c0_i32, %arg1 : i32, i32
  }
  func.func @transform_2(%arg0: i32, %arg1: i32) -> (i32, i32) {
    %c0_i32 = arith.constant 0 : i32
    %c0_i32_0 = arith.constant 0 : i32
    return %c0_i32, %arg1 : i32, i32
  }
  func.func @transform_3(%arg0: i32, %arg1: i32) -> (i32, i32, i32, i32) {
    %c0_i32 = arith.constant 0 : i32
    %c0_i32_0 = arith.constant 0 : i32
    %c0_i32_1 = arith.constant 0 : i32
    return %arg0, %c0_i32, %c0_i32_0, %arg1 : i32, i32, i32, i32
  }
}

</mosaic_0001>

<llo_original>
// kernel: squeeze.4
$region0: #{squeeze.4}
  %s0 = inlined_call_operand.vmem [shape: f32[96,3,3], index: 0, kind: input, shape index: {}]
  %s1 = inlined_call_operand.vmem [shape: f32[96,9], index: 1, kind: output, shape index: {}]
  $region1: #{squeeze.4} parent=0
    #allocation0 [shape = 'u8[12288]{0}', space=vmem, size = 0x3000, scoped, tag = 'scoped mem for input reshape']
    %s3 = ssub.s32 16, 1
    %s4 = scalar_lea.vmem %s0, 8
    %v5 = vld [vmem:[%s4] sm:%s3]
    %s6 = scalar_lea.vmem [#allocation0], 16
    %7 = vst [vmem:[%s6] sm:%s3] %v5
    %s8 = scalar_lea.vmem %s0, 4
    %v9 = vld [vmem:[%s8] sm:%s3]
    %s10 = scalar_lea.vmem [#allocation0], 8
    %11 = vst [vmem:[%s10] sm:%s3] %v9
    %v12 = vld [vmem:[%s0] sm:%s3]
    %13 = vst [vmem:[#allocation0] sm:%s3] %v12
    %v14 = vld [vmem:[#allocation0] sm:$0x7]
    %vm15 = vcmask 785408
    %16 = vst.msk [vmem:[%s1] sm:$0x7] %vm15, %v14
    %s17 = scalar_lea.vmem [#allocation0], 8
    %v18 = vld [vmem:[%s17] sm:$0x7]
    %vm19 = vcmask 785408
    %s20 = scalar_lea.vmem %s1, 3
    %21 = vst.msk [vmem:[%s20] sm:$0x7] %vm19, %v18
    %s22 = scalar_lea.vmem [#allocation0], 16
    %v23 = vld [vmem:[%s22] sm:$0x7]
    %vm24 = vcmask 785408
    %s25 = scalar_lea.vmem %s1, 6
    %26 = vst.msk [vmem:[%s25] sm:$0x7] %vm24, %v23

// kernel: inverted_residual_forward.5
$region0: #{inverted_residual_forward.5}
  #allocation0 [shape = 'u32[]', space=smem, size = 0x4, offset = 0x4, fixed_abs, tag = 'smem constant byte address 0x4 - core index']
  #allocation1 [shape = 'u32[72,128]{1,0:T(1,128)}', space=vmem, size = 0x9000, scoped, tag = 'internal scratch']
  %s0 = inlined_call_operand.vmem [shape: bf16[512,128], index: 0, kind: input, shape index: {}]
  %s1 = inlined_call_operand.vmem [shape: bf16[128,16], index: 1, kind: input, shape index: {}]
  %s2 = inlined_call_operand.vmem [shape: f32[1,16], index: 2, kind: input, shape index: {}]
  %s3 = inlined_call_operand.vmem [shape: f32[512,16], index: 3, kind: input, shape index: {}]
  %s4 = inlined_call_operand.vmem [shape: f32[512,16], index: 4, kind: output, shape index: {}]
  %s5 = sld [smem:[#allocation0]]
  $region49: #{inverted_residual_forward.5} parent=0
    _
  %s7 = ssub.s32 1, %s5
  %s8 = scalar_select 0, %s7, %s5
  loop: start=0, step=1, limit=4
  $region2: #{inverted_residual_forward.5} parent=0 // loop_pre_header
    _
  $region3: #{inverted_residual_forward.5} parent=0 // loop_header
    %s10 = sphi 0, %s14
    %p11 = scmp.ge.s32.totalorder %s10, 4
    %s20 = sphi 0, %s22
    %s23 = sphi 0, %s20
    %s24 = sphi 0, %s23
    %s40 = sphi 0, %s24
    %s44 = sphi 0, %s44
    %s46 = sphi 0, %s44
    %s47 = sphi 0, %s46
    %s61 = sphi 0, %s47
    %s65 = sphi 0, %s65
    %s67 = sphi 0, %s65
    %s68 = sphi 0, %s67
    %s82 = sphi 0, %s68
    %s88 = sphi 0, %s90
    %s91 = sphi 0, %s88
    %s92 = sphi 0, %s91
    %s108 = sphi 0, %s92
    %s114 = sphi 0, %s116
    %s117 = sphi 0, %s114
    %s118 = sphi 0, %s117
    %s134 = sphi 0, %s118
  $region4: #{inverted_residual_forward.5} parent=0 // loop_header_branch
    %13 = sbr.rel (%p11) target = $region8
  $region5: #{inverted_residual_forward.5} parent=0 // loop_body
    %s15 = ssub.s32 %s10, 1
    %s16 = ssub.s32 %s10, 2
    %s17 = sadd.s32 %s10, 1
    %s18 = ssub.s32 %s10, %s17
    %p19 = scmp.eq.s32.totalorder %s18, 0
    %s21 = sadd.s32 %s20, 1
    %s22 = scalar_select %p19, %s20, %s21
    %p25 = pneg %p19
    %p26 = scmp.eq.s32.totalorder %s10, 1
    %p27 = por %p25, %p26
    %p28 = scmp.ne.s32.totalorder %s20, %s23
    %p29 = scmp.eq.s32.totalorder %s10, 0
    %p30 = por %p28, %p29
    %p31 = scmp.ne.s32.totalorder %s20, %s23
    %p32 = scmp.eq.s32.totalorder %s15, 1
    %p33 = por %p31, %p32
    %p34 = scmp.ne.s32.totalorder %s23, %s24
    %p35 = scmp.eq.s32.totalorder %s15, 0
    %p36 = por %p34, %p35
    %p37 = scmp.ne.s32.totalorder %s23, %s24
    %p38 = scmp.eq.s32.totalorder %s16, 1
    %p39 = por %p37, %p38
    %p41 = scmp.ne.s32.totalorder %s24, %s40
    %p42 = scmp.eq.s32.totalorder %s16, 0
    %p43 = por %p41, %p42
    %s45 = sadd.s32 %s44, 1
    %p48 = scmp.eq.s32.totalorder %s10, 1
    %p49 = scmp.ne.s32.totalorder %s44, %s46
    %p50 = scmp.eq.s32.totalorder %s10, 0
    %p51 = por %p49, %p50
    %p52 = scmp.ne.s32.totalorder %s44, %s46
    %p53 = scmp.eq.s32.totalorder %s15, 1
    %p54 = por %p52, %p53
    %p55 = scmp.ne.s32.totalorder %s46, %s47
    %p56 = scmp.eq.s32.totalorder %s15, 0
    %p57 = por %p55, %p56
    %p58 = scmp.ne.s32.totalorder %s46, %s47
    %p59 = scmp.eq.s32.totalorder %s16, 1
    %p60 = por %p58, %p59
    %p62 = scmp.ne.s32.totalorder %s47, %s61
    %p63 = scmp.eq.s32.totalorder %s16, 0
    %p64 = por %p62, %p63
    %s66 = sadd.s32 %s65, 1
    %p69 = scmp.eq.s32.totalorder %s10, 1
    %p70 = scmp.ne.s32.totalorder %s65, %s67
    %p71 = scmp.eq.s32.totalorder %s10, 0
    %p72 = por %p70, %p71
    %p73 = scmp.ne.s32.totalorder %s65, %s67
    %p74 = scmp.eq.s32.totalorder %s15, 1
    %p75 = por %p73, %p74
    %p76 = scmp.ne.s32.totalorder %s67, %s68
    %p77 = scmp.eq.s32.totalorder %s15, 0
    %p78 = por %p76, %p77
    %p79 = scmp.ne.s32.totalorder %s67, %s68
    %p80 = scmp.eq.s32.totalorder %s16, 1
    %p81 = por %p79, %p80
    %p83 = scmp.ne.s32.totalorder %s68, %s82
    %p84 = scmp.eq.s32.totalorder %s16, 0
    %p85 = por %p83, %p84
    %s86 = ssub.s32 %s10, %s17
    %p87 = scmp.eq.s32.totalorder %s86, 0
    %s89 = sadd.s32 %s88, 1
    %s90 = scalar_select %p87, %s88, %s89
    %p93 = pneg %p87
    %p94 = scmp.eq.s32.totalorder %s10, 1
    %p95 = por %p93, %p94
    %p96 = scmp.ne.s32.totalorder %s88, %s91
    %p97 = scmp.eq.s32.totalorder %s10, 0
    %p98 = por %p96, %p97
    %p99 = scmp.ne.s32.totalorder %s88, %s91
    %p100 = scmp.eq.s32.totalorder %s15, 1
    %p101 = por %p99, %p100
    %p102 = scmp.ne.s32.totalorder %s91, %s92
    %p103 = scmp.eq.s32.totalorder %s15, 0
    %p104 = por %p102, %p103
    %p105 = scmp.ne.s32.totalorder %s91, %s92
    %p106 = scmp.eq.s32.totalorder %s16, 1
    %p107 = por %p105, %p106
    %p109 = scmp.ne.s32.totalorder %s92, %s108
    %p110 = scmp.eq.s32.totalorder %s16, 0
    %p111 = por %p109, %p110
    %s112 = ssub.s32 %s10, %s17
    %p113 = scmp.eq.s32.totalorder %s112, 0
    %s115 = sadd.s32 %s114, 1
    %s116 = scalar_select %p113, %s114, %s115
    %p119 = pneg %p113
    %p120 = scmp.eq.s32.totalorder %s10, 1
    %p121 = por %p119, %p120
    %p122 = scmp.ne.s32.totalorder %s114, %s117
    %p123 = scmp.eq.s32.totalorder %s10, 0
    %p124 = por %p122, %p123
    %p125 = scmp.ne.s32.totalorder %s114, %s117
    %p126 = scmp.eq.s32.totalorder %s15, 1
    %p127 = por %p125, %p126
    %p128 = scmp.ne.s32.totalorder %s117, %s118
    %p129 = scmp.eq.s32.totalorder %s15, 0
    %p130 = por %p128, %p129
    %p131 = scmp.ne.s32.totalorder %s117, %s118
    %p132 = scmp.eq.s32.totalorder %s16, 1
    %p133 = por %p131, %p132
    %p135 = scmp.ne.s32.totalorder %s118, %s134
    %p136 = scmp.eq.s32.totalorder %s16, 0
    %p137 = por %p135, %p136
    %p138 = scmp.le.s32.totalorder 1, %s10
    %p139 = scmp.lt.s32.totalorder %s10, 3
    %p140 = pnand %p138, %p139
    %p141 = pneg %p140
    // Predicated region
    $region9: #{inverted_residual_forward.5} parent=5 // pred_check
      _
    $region10: #{inverted_residual_forward.5} parent=5 // pred_check_branch
      %143 = sbr.rel (%p140) target = $region12
    $region11: #{inverted_residual_forward.5} parent=5 // pred_region
      %s144 = ssub.s32 %s10, 1
      // Predicated region
      $region13: #{inverted_residual_forward.5} parent=11 // pred_check
        %p145 = pneg %p57
      $region14: #{inverted_residual_forward.5} parent=11 // pred_check_branch
        %147 = sbr.rel (%p145) target = $region16
      $region15: #{inverted_residual_forward.5} parent=11 // pred_region
        _
      $region16: #{inverted_residual_forward.5} parent=11 // pred_fallthru
        _
      // Predicated region
      $region17: #{inverted_residual_forward.5} parent=11 // pred_check
        %p148 = pneg %p78
      $region18: #{inverted_residual_forward.5} parent=11 // pred_check_branch
        %150 = sbr.rel (%p148) target = $region20
      $region19: #{inverted_residual_forward.5} parent=11 // pred_region
        _
      $region20: #{inverted_residual_forward.5} parent=11 // pred_fallthru
        _
    $region12: #{inverted_residual_forward.5} parent=5 // pred_fallthru
      _
    %p151 = scmp.lt.s32.totalorder %s10, 2
    // Predicated region
    $region21: #{inverted_residual_forward.5} parent=5 // pred_check
      %p152 = pneg %p151
    $region22: #{inverted_residual_forward.5} parent=5 // pred_check_branch
      %154 = sbr.rel (%p152) target = $region24
    $region23: #{inverted_residual_forward.5} parent=5 // pred_region
      // Predicated region
      $region25: #{inverted_residual_forward.5} parent=23 // pred_check
        %p155 = pneg %p30
      $region26: #{inverted_residual_forward.5} parent=23 // pred_check_branch
        %157 = sbr.rel (%p155) target = $region28
      $region27: #{inverted_residual_forward.5} parent=23 // pred_region
        %s158 = smul.u32 32, %s10
        %p159 = scmp.lt.s32.totalorder %s158, 63
        %s160 = scalar_select %p159, %s158, 63
        %s161 = smul.addr %s160, 4
        %s162 = scalar_lea.vmem %s0, %s161
        %s163 = smul.u32 32, %s10
      $region28: #{inverted_residual_forward.5} parent=23 // pred_fallthru
        _
      // Predicated region
      $region29: #{inverted_residual_forward.5} parent=23 // pred_check
        %p164 = pneg %p98
      $region30: #{inverted_residual_forward.5} parent=23 // pred_check_branch
        %166 = sbr.rel (%p164) target = $region32
      $region31: #{inverted_residual_forward.5} parent=23 // pred_region
        %s167 = smul.u32 32, %s10
        %p168 = scmp.lt.s32.totalorder %s167, 63
        %s169 = scalar_select %p168, %s167, 63
        %s170 = smul.addr %s169, 8
        %s171 = scalar_lea.vmem %s3, %s170
        %s172 = smul.u32 32, %s10
      $region32: #{inverted_residual_forward.5} parent=23 // pred_fallthru
        _
    $region24: #{inverted_residual_forward.5} parent=5 // pred_fallthru
      _
    %p173 = scmp.le.s32.totalorder 1, %s10
    %p174 = scmp.lt.s32.totalorder %s10, 3
    %p175 = pnand %p173, %p174
    %p176 = pneg %p175
    // Predicated region
    $region33: #{inverted_residual_forward.5} parent=5 // pred_check
      _
    $region34: #{inverted_residual_forward.5} parent=5 // pred_check_branch
      %178 = sbr.rel (%p175) target = $region36
    $region35: #{inverted_residual_forward.5} parent=5 // pred_region
      %s179 = ssub.s32 %s10, 1
      %s180 = smul.u32 32, %s15
      %p181 = scmp.lt.s32.totalorder %s180, 63
      %s182 = scalar_select %p181, %s180, 63
      %s183 = smul.addr %s182, 4
      %s184 = scalar_lea.vmem %s0, %s183
      %p185 = pneg %p36
      %p186 = pneg %p33
      %p187 = pneg %p57
      %p188 = pneg %p54
      %p189 = pneg %p78
      %p190 = pneg %p75
      %s191 = smul.u32 32, %s15
      %p192 = scmp.lt.s32.totalorder %s191, 63
      %s193 = scalar_select %p192, %s191, 63
      %s194 = smul.addr %s193, 8
      %s195 = scalar_lea.vmem %s3, %s194
      %p196 = pneg %p104
      %p197 = pneg %p101
      %p198 = pneg %p130
      %p199 = pneg %p127
      %s200 = smul.u32 32, %s15
      %p201 = scmp.lt.s32.totalorder %s200, 63
      %s202 = scalar_select %p201, %s200, 63
      %s203 = smul.addr %s202, 8
      %s204 = scalar_lea.vmem %s4, %s203
      %s205 = smul.u32 32, %s15
      %p206 = scmp.lt.s32.totalorder %s205, 63
      %s207 = scalar_select %p206, %s205, 63
      %s208 = smul.addr %s207, 4
      %s209 = scalar_lea.vmem %s0, %s208
      %s210 = smul.u32 32, %s15
      %s211 = smul.u32 32, %s15
      %p212 = scmp.lt.s32.totalorder %s211, 63
      %s213 = scalar_select %p212, %s211, 63
      %s214 = smul.addr %s213, 8
      %s215 = scalar_lea.vmem %s3, %s214
      %s216 = smul.u32 32, %s15
      %s217 = smul.u32 32, %s15
      %p218 = scmp.lt.s32.totalorder %s217, 63
      %s219 = scalar_select %p218, %s217, 63
      %s220 = smul.addr %s219, 8
      %s221 = scalar_lea.vmem %s4, %s220
      %s222 = smul.u32 32, %s15
      %v223 = vld [vmem:[%s209] sm:$0xf]
      %v224 = vld [vmem:[%s209 + $0x4] sm:$0xf]
      %v225 = vld [vmem:[%s209 + $0x8] sm:$0xf]
      %v226 = vld [vmem:[%s209 + $0xc] sm:$0xf]
      %v227 = vld [vmem:[%s209 + $0x10] sm:$0xf]
      %v228 = vld [vmem:[%s209 + $0x14] sm:$0xf]
      %v229 = vld [vmem:[%s209 + $0x18] sm:$0xf]
      %v230 = vld [vmem:[%s209 + $0x1c] sm:$0xf]
      %v231 = vld [vmem:[%s209 + $0x20] sm:$0xf]
      %v232 = vld [vmem:[%s209 + $0x24] sm:$0xf]
      %v233 = vld [vmem:[%s209 + $0x28] sm:$0xf]
      %v234 = vld [vmem:[%s209 + $0x2c] sm:$0xf]
      %v235 = vld [vmem:[%s209 + $0x30] sm:$0xf]
      %v236 = vld [vmem:[%s209 + $0x34] sm:$0xf]
      %v237 = vld [vmem:[%s209 + $0x38] sm:$0xf]
      %v238 = vld [vmem:[%s209 + $0x3c] sm:$0xf]
      %v239 = vld [vmem:[%s209 + $0x40] sm:$0xf]
      %v240 = vld [vmem:[%s209 + $0x44] sm:$0xf]
      %v241 = vld [vmem:[%s209 + $0x48] sm:$0xf]
      %v242 = vld [vmem:[%s209 + $0x4c] sm:$0xf]
      %v243 = vld [vmem:[%s209 + $0x50] sm:$0xf]
      %v244 = vld [vmem:[%s209 + $0x54] sm:$0xf]
      %v245 = vld [vmem:[%s209 + $0x58] sm:$0xf]
      %v246 = vld [vmem:[%s209 + $0x5c] sm:$0xf]
      %v247 = vld [vmem:[%s209 + $0x60] sm:$0xf]
      %v248 = vld [vmem:[%s209 + $0x64] sm:$0xf]
      %v249 = vld [vmem:[%s209 + $0x68] sm:$0xf]
      %v250 = vld [vmem:[%s209 + $0x6c] sm:$0xf]
      %v251 = vld [vmem:[%s209 + $0x70] sm:$0xf]
      %v252 = vld [vmem:[%s209 + $0x74] sm:$0xf]
      %v253 = vld [vmem:[%s209 + $0x78] sm:$0xf]
      %v254 = vld [vmem:[%s209 + $0x7c] sm:$0xf]
      %v255 = vld [vmem:[%s1] sm:$0xf]
      %v256 = vld [vmem:[%s1 + $0x4] sm:$0xf]
      %v257 = vld [vmem:[%s1 + $0x8] sm:$0xf]
      %v258 = vld [vmem:[%s1 + $0xc] sm:$0xf]
      %v259 = vld [vmem:[%s1 + $0x10] sm:$0xf]
      %v260 = vld [vmem:[%s1 + $0x14] sm:$0xf]
      %v261 = vld [vmem:[%s1 + $0x18] sm:$0xf]
      %v262 = vld [vmem:[%s1 + $0x1c] sm:$0xf]
      %v263 = vld [vmem:[%s1 + $0x20] sm:$0xf]
      %v264 = vld [vmem:[%s1 + $0x24] sm:$0xf]
      %v265 = vld [vmem:[%s1 + $0x28] sm:$0xf]
      %v266 = vld [vmem:[%s1 + $0x2c] sm:$0xf]
      %v267 = vld [vmem:[%s1 + $0x30] sm:$0xf]
      %v268 = vld [vmem:[%s1 + $0x34] sm:$0xf]
      %v269 = vld [vmem:[%s1 + $0x38] sm:$0xf]
      %v270 = vld [vmem:[%s1 + $0x3c] sm:$0xf]
      %v271 = vld [vmem:[%s2] sm:$0x1]
      %v273 = vperm.slane %v271, 0
      %v307 = vunpack.c.l.b16 %v223
      %v308 = vunpack.c.l.b16 %v224
      %v309 = vunpack.c.l.b16 %v225
      %v310 = vunpack.c.l.b16 %v226
      %v311 = vunpack.c.l.b16 %v227
      %v312 = vunpack.c.l.b16 %v228
      %v313 = vunpack.c.l.b16 %v229
      %v314 = vunpack.c.l.b16 %v230
      %v315 = vunpack.c.l.b16 %v231
      %v316 = vunpack.c.l.b16 %v232
      %v317 = vunpack.c.l.b16 %v233
      %v318 = vunpack.c.l.b16 %v234
      %v319 = vunpack.c.l.b16 %v235
      %v320 = vunpack.c.l.b16 %v236
      %v321 = vunpack.c.l.b16 %v237
      %v322 = vunpack.c.l.b16 %v238
      %v323 = vunpack.c.l.b16 %v239
      %v324 = vunpack.c.l.b16 %v240
      %v325 = vunpack.c.l.b16 %v241
      %v326 = vunpack.c.l.b16 %v242
      %v327 = vunpack.c.l.b16 %v243
      %v328 = vunpack.c.l.b16 %v244
      %v329 = vunpack.c.l.b16 %v245
      %v330 = vunpack.c.l.b16 %v246
      %v331 = vunpack.c.l.b16 %v247
      %v332 = vunpack.c.l.b16 %v248
      %v333 = vunpack.c.l.b16 %v249
      %v334 = vunpack.c.l.b16 %v250
      %v335 = vunpack.c.l.b16 %v251
      %v336 = vunpack.c.l.b16 %v252
      %v337 = vunpack.c.l.b16 %v253
      %v338 = vunpack.c.l.b16 %v254
      %v339 = vpack.c.b16 %v308, %v307
      %v340 = vpack.c.b16 %v310, %v309
      %v341 = vpack.c.b16 %v312, %v311
      %v342 = vpack.c.b16 %v314, %v313
      %v343 = vpack.c.b16 %v316, %v315
      %v344 = vpack.c.b16 %v318, %v317
      %v345 = vpack.c.b16 %v320, %v319
      %v346 = vpack.c.b16 %v322, %v321
      %v347 = vpack.c.b16 %v324, %v323
      %v348 = vpack.c.b16 %v326, %v325
      %v349 = vpack.c.b16 %v328, %v327
      %v350 = vpack.c.b16 %v330, %v329
      %v351 = vpack.c.b16 %v332, %v331
      %v352 = vpack.c.b16 %v334, %v333
      %v353 = vpack.c.b16 %v336, %v335
      %v354 = vpack.c.b16 %v338, %v337
      %v387 = vunpack.c.l.b16 %v255
      %v388 = vunpack.c.l.b16 %v256
      %v389 = vunpack.c.l.b16 %v257
      %v390 = vunpack.c.l.b16 %v258
      %v391 = vunpack.c.l.b16 %v259
      %v392 = vunpack.c.l.b16 %v260
      %v393 = vunpack.c.l.b16 %v261
      %v394 = vunpack.c.l.b16 %v262
      %v395 = vunpack.c.l.b16 %v263
      %v396 = vunpack.c.l.b16 %v264
      %v397 = vunpack.c.l.b16 %v265
      %v398 = vunpack.c.l.b16 %v266
      %v399 = vunpack.c.l.b16 %v267
      %v400 = vunpack.c.l.b16 %v268
      %v401 = vunpack.c.l.b16 %v269
      %v402 = vunpack.c.l.b16 %v270
      %v403 = vpack.c.b16 %v388, %v387
      %v404 = vpack.c.b16 %v390, %v389
      %v405 = vpack.c.b16 %v392, %v391
      %v406 = vpack.c.b16 %v394, %v393
      %v407 = vpack.c.b16 %v396, %v395
      %v408 = vpack.c.b16 %v398, %v397
      %v409 = vpack.c.b16 %v400, %v399
      %v410 = vpack.c.b16 %v402, %v401
      %419 = vmatpush.bf16.msra.mxu0 %v410
      %420 = vmatpush.bf16.msra.mxu0 %v409
      %421 = vmatpush.bf16.msra.mxu0 %v408
      %422 = vmatpush.bf16.msra.mxu0 %v407
      %423 = vmatpush.bf16.msra.mxu0 %v406
      %424 = vmatpush.bf16.msra.mxu0 %v405
      %425 = vmatpush.bf16.msra.mxu0 %v404
      %426 = vmatpush.bf16.msra.mxu0 %v403
      %427 = vmatmul.bf16.gmra.mxu0 %v339
      %v428 = vpop.f32.mrf.mxu0
      %v429 = vadd.f32 %v273, %v428
      %v430 = vpop.f32.mrf.mxu0
      %v431 = vadd.f32 %v273, %v430
      %432 = vmatmul.bf16.gmra.mxu0 %v340
      %v433 = vpop.f32.mrf.mxu0
      %v434 = vadd.f32 %v273, %v433
      %v435 = vpop.f32.mrf.mxu0
      %v436 = vadd.f32 %v273, %v435
      %437 = vmatmul.bf16.gmra.mxu0 %v341
      %v438 = vpop.f32.mrf.mxu0
      %v439 = vadd.f32 %v273, %v438
      %v440 = vpop.f32.mrf.mxu0
      %v441 = vadd.f32 %v273, %v440
      %442 = vmatmul.bf16.gmra.mxu0 %v342
      %v443 = vpop.f32.mrf.mxu0
      %v444 = vadd.f32 %v273, %v443
      %v445 = vpop.f32.mrf.mxu0
      %v446 = vadd.f32 %v273, %v445
      %447 = vmatmul.bf16.gmra.mxu0 %v343
      %v448 = vpop.f32.mrf.mxu0
      %v449 = vadd.f32 %v273, %v448
      %v450 = vpop.f32.mrf.mxu0
      %v451 = vadd.f32 %v273, %v450
      %452 = vmatmul.bf16.gmra.mxu0 %v344
      %v453 = vpop.f32.mrf.mxu0
      %v454 = vadd.f32 %v273, %v453
      %v455 = vpop.f32.mrf.mxu0
      %v456 = vadd.f32 %v273, %v455
      %457 = vmatmul.bf16.gmra.mxu0 %v345
      %v458 = vpop.f32.mrf.mxu0
      %v459 = vadd.f32 %v273, %v458
      %v460 = vpop.f32.mrf.mxu0
      %v461 = vadd.f32 %v273, %v460
      %462 = vmatmul.bf16.gmra.mxu0 %v346
      %v463 = vpop.f32.mrf.mxu0
      %v464 = vadd.f32 %v273, %v463
      %v465 = vpop.f32.mrf.mxu0
      %v466 = vadd.f32 %v273, %v465
      %467 = vmatmul.bf16.gmra.mxu0 %v347
      %v468 = vpop.f32.mrf.mxu0
      %v469 = vadd.f32 %v273, %v468
      %v470 = vpop.f32.mrf.mxu0
      %v471 = vadd.f32 %v273, %v470
      %472 = vmatmul.bf16.gmra.mxu0 %v348
      %v473 = vpop.f32.mrf.mxu0
      %v474 = vadd.f32 %v273, %v473
      %v475 = vpop.f32.mrf.mxu0
      %v476 = vadd.f32 %v273, %v475
      %477 = vmatmul.bf16.gmra.mxu0 %v349
      %v478 = vpop.f32.mrf.mxu0
      %v479 = vadd.f32 %v273, %v478
      %v480 = vpop.f32.mrf.mxu0
      %v481 = vadd.f32 %v273, %v480
      %482 = vmatmul.bf16.gmra.mxu0 %v350
      %v483 = vpop.f32.mrf.mxu0
      %v484 = vadd.f32 %v273, %v483
      %v485 = vpop.f32.mrf.mxu0
      %v486 = vadd.f32 %v273, %v485
      %487 = vmatmul.bf16.gmra.mxu0 %v351
      %v488 = vpop.f32.mrf.mxu0
      %v489 = vadd.f32 %v273, %v488
      %v490 = vpop.f32.mrf.mxu0
      %v491 = vadd.f32 %v273, %v490
      %492 = vmatmul.bf16.gmra.mxu0 %v352
      %v493 = vpop.f32.mrf.mxu0
      %v494 = vadd.f32 %v273, %v493
      %v495 = vpop.f32.mrf.mxu0
      %v496 = vadd.f32 %v273, %v495
      %497 = vmatmul.bf16.gmra.mxu0 %v353
      %v498 = vpop.f32.mrf.mxu0
      %v499 = vadd.f32 %v273, %v498
      %v500 = vpop.f32.mrf.mxu0
      %v501 = vadd.f32 %v273, %v500
      %502 = vmatmul.bf16.gmra.mxu0 %v354
      %v503 = vpop.f32.mrf.mxu0
      %v504 = vadd.f32 %v273, %v503
      %v505 = vpop.f32.mrf.mxu0
      %v506 = vadd.f32 %v273, %v505
      %507 = vdwg.mxu0
      %v508 = vld [vmem:[%s215] sm:$0xff]
      %v509 = vld [vmem:[%s215 + $0x8] sm:$0xff]
      %v510 = vld [vmem:[%s215 + $0x10] sm:$0xff]
      %v511 = vld [vmem:[%s215 + $0x18] sm:$0xff]
      %v512 = vld [vmem:[%s215 + $0x20] sm:$0xff]
      %v513 = vld [vmem:[%s215 + $0x28] sm:$0xff]
      %v514 = vld [vmem:[%s215 + $0x30] sm:$0xff]
      %v515 = vld [vmem:[%s215 + $0x38] sm:$0xff]
      %v516 = vld [vmem:[%s215 + $0x40] sm:$0xff]
      %v517 = vld [vmem:[%s215 + $0x48] sm:$0xff]
      %v518 = vld [vmem:[%s215 + $0x50] sm:$0xff]
      %v519 = vld [vmem:[%s215 + $0x58] sm:$0xff]
      %v520 = vld [vmem:[%s215 + $0x60] sm:$0xff]
      %v521 = vld [vmem:[%s215 + $0x68] sm:$0xff]
      %v522 = vld [vmem:[%s215 + $0x70] sm:$0xff]
      %v523 = vld [vmem:[%s215 + $0x78] sm:$0xff]
      %v524 = vld [vmem:[%s215 + $0x80] sm:$0xff]
      %v525 = vld [vmem:[%s215 + $0x88] sm:$0xff]
      %v526 = vld [vmem:[%s215 + $0x90] sm:$0xff]
      %v527 = vld [vmem:[%s215 + $0x98] sm:$0xff]
      %v528 = vld [vmem:[%s215 + $0xa0] sm:$0xff]
      %v529 = vld [vmem:[%s215 + $0xa8] sm:$0xff]
      %v530 = vld [vmem:[%s215 + $0xb0] sm:$0xff]
      %v531 = vld [vmem:[%s215 + $0xb8] sm:$0xff]
      %v532 = vld [vmem:[%s215 + $0xc0] sm:$0xff]
      %v533 = vld [vmem:[%s215 + $0xc8] sm:$0xff]
      %v534 = vld [vmem:[%s215 + $0xd0] sm:$0xff]
      %v535 = vld [vmem:[%s215 + $0xd8] sm:$0xff]
      %v536 = vld [vmem:[%s215 + $0xe0] sm:$0xff]
      %v537 = vld [vmem:[%s215 + $0xe8] sm:$0xff]
      %v538 = vld [vmem:[%s215 + $0xf0] sm:$0xff]
      %v539 = vld [vmem:[%s215 + $0xf8] sm:$0xff]
      %v540 = vadd.f32 %v429, %v508
      %v541 = vadd.f32 %v431, %v509
      %v542 = vadd.f32 %v434, %v510
      %v543 = vadd.f32 %v436, %v511
      %v544 = vadd.f32 %v439, %v512
      %v545 = vadd.f32 %v441, %v513
      %v546 = vadd.f32 %v444, %v514
      %v547 = vadd.f32 %v446, %v515
      %v548 = vadd.f32 %v449, %v516
      %v549 = vadd.f32 %v451, %v517
      %v550 = vadd.f32 %v454, %v518
      %v551 = vadd.f32 %v456, %v519
      %v552 = vadd.f32 %v459, %v520
      %v553 = vadd.f32 %v461, %v521
      %v554 = vadd.f32 %v464, %v522
      %v555 = vadd.f32 %v466, %v523
      %v556 = vadd.f32 %v469, %v524
      %v557 = vadd.f32 %v471, %v525
      %v558 = vadd.f32 %v474, %v526
      %v559 = vadd.f32 %v476, %v527
      %v560 = vadd.f32 %v479, %v528
      %v561 = vadd.f32 %v481, %v529
      %v562 = vadd.f32 %v484, %v530
      %v563 = vadd.f32 %v486, %v531
      %v564 = vadd.f32 %v489, %v532
      %v565 = vadd.f32 %v491, %v533
      %v566 = vadd.f32 %v494, %v534
      %v567 = vadd.f32 %v496, %v535
      %v568 = vadd.f32 %v499, %v536
      %v569 = vadd.f32 %v501, %v537
      %v570 = vadd.f32 %v504, %v538
      %v571 = vadd.f32 %v506, %v539
      %vm572 = vcmask 130048
      %573 = vst.msk [vmem:[%s221] sm:$0xff] %vm572, %v540
      %574 = vst.msk [vmem:[%s221 + $0x8] sm:$0xff] %vm572, %v541
      %575 = vst.msk [vmem:[%s221 + $0x10] sm:$0xff] %vm572, %v542
      %576 = vst.msk [vmem:[%s221 + $0x18] sm:$0xff] %vm572, %v543
      %577 = vst.msk [vmem:[%s221 + $0x20] sm:$0xff] %vm572, %v544
      %578 = vst.msk [vmem:[%s221 + $0x28] sm:$0xff] %vm572, %v545
      %579 = vst.msk [vmem:[%s221 + $0x30] sm:$0xff] %vm572, %v546
      %580 = vst.msk [vmem:[%s221 + $0x38] sm:$0xff] %vm572, %v547
      %581 = vst.msk [vmem:[%s221 + $0x40] sm:$0xff] %vm572, %v548
      %582 = vst.msk [vmem:[%s221 + $0x48] sm:$0xff] %vm572, %v549
      %583 = vst.msk [vmem:[%s221 + $0x50] sm:$0xff] %vm572, %v550
      %584 = vst.msk [vmem:[%s221 + $0x58] sm:$0xff] %vm572, %v551
      %585 = vst.msk [vmem:[%s221 + $0x60] sm:$0xff] %vm572, %v552
      %586 = vst.msk [vmem:[%s221 + $0x68] sm:$0xff] %vm572, %v553
      %587 = vst.msk [vmem:[%s221 + $0x70] sm:$0xff] %vm572, %v554
      %588 = vst.msk [vmem:[%s221 + $0x78] sm:$0xff] %vm572, %v555
      %589 = vst.msk [vmem:[%s221 + $0x80] sm:$0xff] %vm572, %v556
      %590 = vst.msk [vmem:[%s221 + $0x88] sm:$0xff] %vm572, %v557
      %591 = vst.msk [vmem:[%s221 + $0x90] sm:$0xff] %vm572, %v558
      %592 = vst.msk [vmem:[%s221 + $0x98] sm:$0xff] %vm572, %v559
      %593 = vst.msk [vmem:[%s221 + $0xa0] sm:$0xff] %vm572, %v560
      %594 = vst.msk [vmem:[%s221 + $0xa8] sm:$0xff] %vm572, %v561
      %595 = vst.msk [vmem:[%s221 + $0xb0] sm:$0xff] %vm572, %v562
      %596 = vst.msk [vmem:[%s221 + $0xb8] sm:$0xff] %vm572, %v563
      %597 = vst.msk [vmem:[%s221 + $0xc0] sm:$0xff] %vm572, %v564
      %598 = vst.msk [vmem:[%s221 + $0xc8] sm:$0xff] %vm572, %v565
      %599 = vst.msk [vmem:[%s221 + $0xd0] sm:$0xff] %vm572, %v566
      %600 = vst.msk [vmem:[%s221 + $0xd8] sm:$0xff] %vm572, %v567
      %601 = vst.msk [vmem:[%s221 + $0xe0] sm:$0xff] %vm572, %v568
      %602 = vst.msk [vmem:[%s221 + $0xe8] sm:$0xff] %vm572, %v569
      %603 = vst.msk [vmem:[%s221 + $0xf0] sm:$0xff] %vm572, %v570
      %604 = vst.msk [vmem:[%s221 + $0xf8] sm:$0xff] %vm572, %v571
      %s605 = smul.u32 32, %s15
      %p606 = scmp.lt.s32.totalorder %s605, 63
      %s607 = scalar_select %p606, %s605, 63
      %s608 = smul.addr %s607, 8
      %s609 = scalar_lea.vmem %s4, %s608
      // Predicated region
      $region37: #{inverted_residual_forward.5} parent=35 // pred_check
        %p610 = pneg %p127
      $region38: #{inverted_residual_forward.5} parent=35 // pred_check_branch
        %612 = sbr.rel (%p610) target = $region40
      $region39: #{inverted_residual_forward.5} parent=35 // pred_region
        %s613 = smul.u32 32, %s15
      $region40: #{inverted_residual_forward.5} parent=35 // pred_fallthru
        _
    $region36: #{inverted_residual_forward.5} parent=5 // pred_fallthru
      _
    %p614 = scmp.le.s32.totalorder 2, %s10
    // Predicated region
    $region41: #{inverted_residual_forward.5} parent=5 // pred_check
      %p615 = pneg %p614
    $region42: #{inverted_residual_forward.5} parent=5 // pred_check_branch
      %617 = sbr.rel (%p615) target = $region44
    $region43: #{inverted_residual_forward.5} parent=5 // pred_region
      %s618 = ssub.s32 %s10, 2
      // Predicated region
      $region45: #{inverted_residual_forward.5} parent=43 // pred_check
        %p619 = pneg %p133
      $region46: #{inverted_residual_forward.5} parent=43 // pred_check_branch
        %621 = sbr.rel (%p619) target = $region48
      $region47: #{inverted_residual_forward.5} parent=43 // pred_region
        %s622 = smul.u32 32, %s16
        %p623 = scmp.lt.s32.totalorder %s622, 63
        %s624 = scalar_select %p623, %s622, 63
        %s625 = smul.addr %s624, 8
        %s626 = scalar_lea.vmem %s4, %s625
      $region48: #{inverted_residual_forward.5} parent=43 // pred_fallthru
        _
    $region44: #{inverted_residual_forward.5} parent=5 // pred_fallthru
      _
  $region6: #{inverted_residual_forward.5} parent=0 // loop_footer
    %s14 = sadd.s32 1, %s10
  $region7: #{inverted_residual_forward.5} parent=0 // loop_footer_branch
    %9 = sbr.rel target = $region3
  $region8: #{inverted_residual_forward.5} parent=0 // loop_exit
    _

// kernel: inverted_residual_forward.3
$region0: #{inverted_residual_forward.3}
  #allocation0 [shape = 'u32[]', space=smem, size = 0x4, offset = 0x4, fixed_abs, tag = 'smem constant byte address 0x4 - core index']
  #allocation1 [shape = 'u32[72,128]{1,0:T(1,128)}', space=vmem, size = 0x9000, scoped, tag = 'internal scratch']
  %s0 = inlined_call_operand.vmem [shape: f32[512,16], index: 0, kind: input, shape index: {}]
  %s1 = inlined_call_operand.vmem [shape: bf16[16,128], index: 1, kind: input, shape index: {}]
  %s2 = inlined_call_operand.vmem [shape: f32[1,128], index: 2, kind: input, shape index: {}]
  %s3 = inlined_call_operand.vmem [shape: bf16[512,128], index: 3, kind: output, shape index: {}]
  %s4 = sld [smem:[#allocation0]]
  $region45: #{inverted_residual_forward.3} parent=0
    _
  %s6 = ssub.s32 1, %s4
  %s7 = scalar_select 0, %s6, %s4
  loop: start=0, step=1, limit=4
  $region2: #{inverted_residual_forward.3} parent=0 // loop_pre_header
    _
  $region3: #{inverted_residual_forward.3} parent=0 // loop_header
    %s9 = sphi 0, %s13
    %p10 = scmp.ge.s32.totalorder %s9, 4
    %s19 = sphi 0, %s21
    %s22 = sphi 0, %s19
    %s23 = sphi 0, %s22
    %s39 = sphi 0, %s23
    %s43 = sphi 0, %s43
    %s45 = sphi 0, %s43
    %s46 = sphi 0, %s45
    %s60 = sphi 0, %s46
    %s64 = sphi 0, %s64
    %s66 = sphi 0, %s64
    %s67 = sphi 0, %s66
    %s81 = sphi 0, %s67
    %s87 = sphi 0, %s89
    %s90 = sphi 0, %s87
    %s91 = sphi 0, %s90
    %s107 = sphi 0, %s91
  $region4: #{inverted_residual_forward.3} parent=0 // loop_header_branch
    %12 = sbr.rel (%p10) target = $region8
  $region5: #{inverted_residual_forward.3} parent=0 // loop_body
    %s14 = ssub.s32 %s9, 1
    %s15 = ssub.s32 %s9, 2
    %s16 = sadd.s32 %s9, 1
    %s17 = ssub.s32 %s9, %s16
    %p18 = scmp.eq.s32.totalorder %s17, 0
    %s20 = sadd.s32 %s19, 1
    %s21 = scalar_select %p18, %s19, %s20
    %p24 = pneg %p18
    %p25 = scmp.eq.s32.totalorder %s9, 1
    %p26 = por %p24, %p25
    %p27 = scmp.ne.s32.totalorder %s19, %s22
    %p28 = scmp.eq.s32.totalorder %s9, 0
    %p29 = por %p27, %p28
    %p30 = scmp.ne.s32.totalorder %s19, %s22
    %p31 = scmp.eq.s32.totalorder %s14, 1
    %p32 = por %p30, %p31
    %p33 = scmp.ne.s32.totalorder %s22, %s23
    %p34 = scmp.eq.s32.totalorder %s14, 0
    %p35 = por %p33, %p34
    %p36 = scmp.ne.s32.totalorder %s22, %s23
    %p37 = scmp.eq.s32.totalorder %s15, 1
    %p38 = por %p36, %p37
    %p40 = scmp.ne.s32.totalorder %s23, %s39
    %p41 = scmp.eq.s32.totalorder %s15, 0
    %p42 = por %p40, %p41
    %s44 = sadd.s32 %s43, 1
    %p47 = scmp.eq.s32.totalorder %s9, 1
    %p48 = scmp.ne.s32.totalorder %s43, %s45
    %p49 = scmp.eq.s32.totalorder %s9, 0
    %p50 = por %p48, %p49
    %p51 = scmp.ne.s32.totalorder %s43, %s45
    %p52 = scmp.eq.s32.totalorder %s14, 1
    %p53 = por %p51, %p52
    %p54 = scmp.ne.s32.totalorder %s45, %s46
    %p55 = scmp.eq.s32.totalorder %s14, 0
    %p56 = por %p54, %p55
    %p57 = scmp.ne.s32.totalorder %s45, %s46
    %p58 = scmp.eq.s32.totalorder %s15, 1
    %p59 = por %p57, %p58
    %p61 = scmp.ne.s32.totalorder %s46, %s60
    %p62 = scmp.eq.s32.totalorder %s15, 0
    %p63 = por %p61, %p62
    %s65 = sadd.s32 %s64, 1
    %p68 = scmp.eq.s32.totalorder %s9, 1
    %p69 = scmp.ne.s32.totalorder %s64, %s66
    %p70 = scmp.eq.s32.totalorder %s9, 0
    %p71 = por %p69, %p70
    %p72 = scmp.ne.s32.totalorder %s64, %s66
    %p73 = scmp.eq.s32.totalorder %s14, 1
    %p74 = por %p72, %p73
    %p75 = scmp.ne.s32.totalorder %s66, %s67
    %p76 = scmp.eq.s32.totalorder %s14, 0
    %p77 = por %p75, %p76
    %p78 = scmp.ne.s32.totalorder %s66, %s67
    %p79 = scmp.eq.s32.totalorder %s15, 1
    %p80 = por %p78, %p79
    %p82 = scmp.ne.s32.totalorder %s67, %s81
    %p83 = scmp.eq.s32.totalorder %s15, 0
    %p84 = por %p82, %p83
    %s85 = ssub.s32 %s9, %s16
    %p86 = scmp.eq.s32.totalorder %s85, 0
    %s88 = sadd.s32 %s87, 1
    %s89 = scalar_select %p86, %s87, %s88
    %p92 = pneg %p86
    %p93 = scmp.eq.s32.totalorder %s9, 1
    %p94 = por %p92, %p93
    %p95 = scmp.ne.s32.totalorder %s87, %s90
    %p96 = scmp.eq.s32.totalorder %s9, 0
    %p97 = por %p95, %p96
    %p98 = scmp.ne.s32.totalorder %s87, %s90
    %p99 = scmp.eq.s32.totalorder %s14, 1
    %p100 = por %p98, %p99
    %p101 = scmp.ne.s32.totalorder %s90, %s91
    %p102 = scmp.eq.s32.totalorder %s14, 0
    %p103 = por %p101, %p102
    %p104 = scmp.ne.s32.totalorder %s90, %s91
    %p105 = scmp.eq.s32.totalorder %s15, 1
    %p106 = por %p104, %p105
    %p108 = scmp.ne.s32.totalorder %s91, %s107
    %p109 = scmp.eq.s32.totalorder %s15, 0
    %p110 = por %p108, %p109
    %p111 = scmp.le.s32.totalorder 1, %s9
    %p112 = scmp.lt.s32.totalorder %s9, 3
    %p113 = pnand %p111, %p112
    %p114 = pneg %p113
    // Predicated region
    $region9: #{inverted_residual_forward.3} parent=5 // pred_check
      _
    $region10: #{inverted_residual_forward.3} parent=5 // pred_check_branch
      %116 = sbr.rel (%p113) target = $region12
    $region11: #{inverted_residual_forward.3} parent=5 // pred_region
      %s117 = ssub.s32 %s9, 1
      // Predicated region
      $region13: #{inverted_residual_forward.3} parent=11 // pred_check
        %p118 = pneg %p56
      $region14: #{inverted_residual_forward.3} parent=11 // pred_check_branch
        %120 = sbr.rel (%p118) target = $region16
      $region15: #{inverted_residual_forward.3} parent=11 // pred_region
        _
      $region16: #{inverted_residual_forward.3} parent=11 // pred_fallthru
        _
      // Predicated region
      $region17: #{inverted_residual_forward.3} parent=11 // pred_check
        %p121 = pneg %p77
      $region18: #{inverted_residual_forward.3} parent=11 // pred_check_branch
        %123 = sbr.rel (%p121) target = $region20
      $region19: #{inverted_residual_forward.3} parent=11 // pred_region
        _
      $region20: #{inverted_residual_forward.3} parent=11 // pred_fallthru
        _
    $region12: #{inverted_residual_forward.3} parent=5 // pred_fallthru
      _
    %p124 = scmp.lt.s32.totalorder %s9, 2
    // Predicated region
    $region21: #{inverted_residual_forward.3} parent=5 // pred_check
      %p125 = pneg %p124
    $region22: #{inverted_residual_forward.3} parent=5 // pred_check_branch
      %127 = sbr.rel (%p125) target = $region24
    $region23: #{inverted_residual_forward.3} parent=5 // pred_region
      // Predicated region
      $region25: #{inverted_residual_forward.3} parent=23 // pred_check
        %p128 = pneg %p29
      $region26: #{inverted_residual_forward.3} parent=23 // pred_check_branch
        %130 = sbr.rel (%p128) target = $region28
      $region27: #{inverted_residual_forward.3} parent=23 // pred_region
        %s131 = smul.u32 32, %s9
        %p132 = scmp.lt.s32.totalorder %s131, 63
        %s133 = scalar_select %p132, %s131, 63
        %s134 = smul.addr %s133, 8
        %s135 = scalar_lea.vmem %s0, %s134
        %s136 = smul.u32 32, %s9
      $region28: #{inverted_residual_forward.3} parent=23 // pred_fallthru
        _
    $region24: #{inverted_residual_forward.3} parent=5 // pred_fallthru
      _
    %p137 = scmp.le.s32.totalorder 1, %s9
    %p138 = scmp.lt.s32.totalorder %s9, 3
    %p139 = pnand %p137, %p138
    %p140 = pneg %p139
    // Predicated region
    $region29: #{inverted_residual_forward.3} parent=5 // pred_check
      _
    $region30: #{inverted_residual_forward.3} parent=5 // pred_check_branch
      %142 = sbr.rel (%p139) target = $region32
    $region31: #{inverted_residual_forward.3} parent=5 // pred_region
      %s143 = ssub.s32 %s9, 1
      %s144 = smul.u32 32, %s14
      %p145 = scmp.lt.s32.totalorder %s144, 63
      %s146 = scalar_select %p145, %s144, 63
      %s147 = smul.addr %s146, 8
      %s148 = scalar_lea.vmem %s0, %s147
      %p149 = pneg %p35
      %p150 = pneg %p32
      %p151 = pneg %p56
      %p152 = pneg %p53
      %p153 = pneg %p77
      %p154 = pneg %p74
      %p155 = pneg %p103
      %p156 = pneg %p100
      %s157 = smul.u32 32, %s14
      %p158 = scmp.lt.s32.totalorder %s157, 63
      %s159 = scalar_select %p158, %s157, 63
      %s160 = smul.addr %s159, 4
      %s161 = scalar_lea.vmem %s3, %s160
      %s162 = smul.u32 32, %s14
      %p163 = scmp.lt.s32.totalorder %s162, 63
      %s164 = scalar_select %p163, %s162, 63
      %s165 = smul.addr %s164, 8
      %s166 = scalar_lea.vmem %s0, %s165
      %s167 = smul.u32 32, %s14
      %s168 = smul.u32 32, %s14
      %p169 = scmp.lt.s32.totalorder %s168, 63
      %s170 = scalar_select %p169, %s168, 63
      %s171 = smul.addr %s170, 4
      %s172 = scalar_lea.vmem %s3, %s171
      %s173 = smul.u32 32, %s14
      %v175 = vld [vmem:[%s166] sm:$0xff]
      %v176 = vld [vmem:[%s166 + $0x8] sm:$0xff]
      %v177 = vld [vmem:[%s166 + $0x10] sm:$0xff]
      %v178 = vld [vmem:[%s166 + $0x18] sm:$0xff]
      %v179 = vld [vmem:[%s166 + $0x20] sm:$0xff]
      %v180 = vld [vmem:[%s166 + $0x28] sm:$0xff]
      %v181 = vld [vmem:[%s166 + $0x30] sm:$0xff]
      %v182 = vld [vmem:[%s166 + $0x38] sm:$0xff]
      %v183 = vld [vmem:[%s166 + $0x40] sm:$0xff]
      %v184 = vld [vmem:[%s166 + $0x48] sm:$0xff]
      %v185 = vld [vmem:[%s166 + $0x50] sm:$0xff]
      %v186 = vld [vmem:[%s166 + $0x58] sm:$0xff]
      %v187 = vld [vmem:[%s166 + $0x60] sm:$0xff]
      %v188 = vld [vmem:[%s166 + $0x68] sm:$0xff]
      %v189 = vld [vmem:[%s166 + $0x70] sm:$0xff]
      %v190 = vld [vmem:[%s166 + $0x78] sm:$0xff]
      %v191 = vld [vmem:[%s166 + $0x80] sm:$0xff]
      %v192 = vld [vmem:[%s166 + $0x88] sm:$0xff]
      %v193 = vld [vmem:[%s166 + $0x90] sm:$0xff]
      %v194 = vld [vmem:[%s166 + $0x98] sm:$0xff]
      %v195 = vld [vmem:[%s166 + $0xa0] sm:$0xff]
      %v196 = vld [vmem:[%s166 + $0xa8] sm:$0xff]
      %v197 = vld [vmem:[%s166 + $0xb0] sm:$0xff]
      %v198 = vld [vmem:[%s166 + $0xb8] sm:$0xff]
      %v199 = vld [vmem:[%s166 + $0xc0] sm:$0xff]
      %v200 = vld [vmem:[%s166 + $0xc8] sm:$0xff]
      %v201 = vld [vmem:[%s166 + $0xd0] sm:$0xff]
      %v202 = vld [vmem:[%s166 + $0xd8] sm:$0xff]
      %v203 = vld [vmem:[%s166 + $0xe0] sm:$0xff]
      %v204 = vld [vmem:[%s166 + $0xe8] sm:$0xff]
      %v205 = vld [vmem:[%s166 + $0xf0] sm:$0xff]
      %v206 = vld [vmem:[%s166 + $0xf8] sm:$0xff]
      %v207 = vpack.c.bf16 %v176, %v175
      %v208 = vpack.c.bf16 %v178, %v177
      %v209 = vpack.c.bf16 %v180, %v179
      %v210 = vpack.c.bf16 %v182, %v181
      %v211 = vpack.c.bf16 %v184, %v183
      %v212 = vpack.c.bf16 %v186, %v185
      %v213 = vpack.c.bf16 %v188, %v187
      %v214 = vpack.c.bf16 %v190, %v189
      %v215 = vpack.c.bf16 %v192, %v191
      %v216 = vpack.c.bf16 %v194, %v193
      %v217 = vpack.c.bf16 %v196, %v195
      %v218 = vpack.c.bf16 %v198, %v197
      %v219 = vpack.c.bf16 %v200, %v199
      %v220 = vpack.c.bf16 %v202, %v201
      %v221 = vpack.c.bf16 %v204, %v203
      %v222 = vpack.c.bf16 %v206, %v205
      %v223 = vld [vmem:[%s1] sm:$0xf]
      %v224 = vld [vmem:[%s1 + $0x4] sm:$0xf]
      %v225 = vld [vmem:[%s2] sm:$0x1]
      %v227 = vperm.slane %v225, 0
      %v231 = vunpack.c.l.b16 %v223
      %v232 = vunpack.c.l.b16 %v224
      %v233 = vpack.c.b16 %v232, %v231
      %vm235 = vcmask 130048
      %v237 = vsel %vm235, %v207, 0
      %v240 = vsel %vm235, %v208, 0
      %v243 = vsel %vm235, %v209, 0
      %v246 = vsel %vm235, %v210, 0
      %v249 = vsel %vm235, %v211, 0
      %v252 = vsel %vm235, %v212, 0
      %v255 = vsel %vm235, %v213, 0
      %v258 = vsel %vm235, %v214, 0
      %v261 = vsel %vm235, %v215, 0
      %v264 = vsel %vm235, %v216, 0
      %v267 = vsel %vm235, %v217, 0
      %v270 = vsel %vm235, %v218, 0
      %v273 = vsel %vm235, %v219, 0
      %v276 = vsel %vm235, %v220, 0
      %v279 = vsel %vm235, %v221, 0
      %v282 = vsel %vm235, %v222, 0
      %284 = vmatpush.bf16.msra.mxu0 0
      %285 = vmatpush.bf16.msra.mxu0 0
      %286 = vmatpush.bf16.msra.mxu0 0
      %287 = vmatpush.bf16.msra.mxu0 0
      %288 = vmatpush.bf16.msra.mxu0 0
      %289 = vmatpush.bf16.msra.mxu0 0
      %290 = vmatpush.bf16.msra.mxu0 0
      %291 = vmatpush.bf16.msra.mxu0 %v233
      %292 = vmatmul.bf16.gmra.mxu0 %v237
      %v293 = vpop.f32.mrf.mxu0
      %v294 = vadd.f32 %v227, %v293
      %v295 = vpop.f32.mrf.mxu0
      %v296 = vadd.f32 %v227, %v295
      %297 = vmatmul.bf16.gmra.mxu0 %v240
      %v298 = vpop.f32.mrf.mxu0
      %v299 = vadd.f32 %v227, %v298
      %v300 = vpop.f32.mrf.mxu0
      %v301 = vadd.f32 %v227, %v300
      %302 = vmatmul.bf16.gmra.mxu0 %v243
      %v303 = vpop.f32.mrf.mxu0
      %v304 = vadd.f32 %v227, %v303
      %v305 = vpop.f32.mrf.mxu0
      %v306 = vadd.f32 %v227, %v305
      %307 = vmatmul.bf16.gmra.mxu0 %v246
      %v308 = vpop.f32.mrf.mxu0
      %v309 = vadd.f32 %v227, %v308
      %v310 = vpop.f32.mrf.mxu0
      %v311 = vadd.f32 %v227, %v310
      %312 = vmatmul.bf16.gmra.mxu0 %v249
      %v313 = vpop.f32.mrf.mxu0
      %v314 = vadd.f32 %v227, %v313
      %v315 = vpop.f32.mrf.mxu0
      %v316 = vadd.f32 %v227, %v315
      %317 = vmatmul.bf16.gmra.mxu0 %v252
      %v318 = vpop.f32.mrf.mxu0
      %v319 = vadd.f32 %v227, %v318
      %v320 = vpop.f32.mrf.mxu0
      %v321 = vadd.f32 %v227, %v320
      %322 = vmatmul.bf16.gmra.mxu0 %v255
      %v323 = vpop.f32.mrf.mxu0
      %v324 = vadd.f32 %v227, %v323
      %v325 = vpop.f32.mrf.mxu0
      %v326 = vadd.f32 %v227, %v325
      %327 = vmatmul.bf16.gmra.mxu0 %v258
      %v328 = vpop.f32.mrf.mxu0
      %v329 = vadd.f32 %v227, %v328
      %v330 = vpop.f32.mrf.mxu0
      %v331 = vadd.f32 %v227, %v330
      %332 = vmatmul.bf16.gmra.mxu0 %v261
      %v333 = vpop.f32.mrf.mxu0
      %v334 = vadd.f32 %v227, %v333
      %v335 = vpop.f32.mrf.mxu0
      %v336 = vadd.f32 %v227, %v335
      %337 = vmatmul.bf16.gmra.mxu0 %v264
      %v338 = vpop.f32.mrf.mxu0
      %v339 = vadd.f32 %v227, %v338
      %v340 = vpop.f32.mrf.mxu0
      %v341 = vadd.f32 %v227, %v340
      %342 = vmatmul.bf16.gmra.mxu0 %v267
      %v343 = vpop.f32.mrf.mxu0
      %v344 = vadd.f32 %v227, %v343
      %v345 = vpop.f32.mrf.mxu0
      %v346 = vadd.f32 %v227, %v345
      %347 = vmatmul.bf16.gmra.mxu0 %v270
      %v348 = vpop.f32.mrf.mxu0
      %v349 = vadd.f32 %v227, %v348
      %v350 = vpop.f32.mrf.mxu0
      %v351 = vadd.f32 %v227, %v350
      %352 = vmatmul.bf16.gmra.mxu0 %v273
      %v353 = vpop.f32.mrf.mxu0
      %v354 = vadd.f32 %v227, %v353
      %v355 = vpop.f32.mrf.mxu0
      %v356 = vadd.f32 %v227, %v355
      %357 = vmatmul.bf16.gmra.mxu0 %v276
      %v358 = vpop.f32.mrf.mxu0
      %v359 = vadd.f32 %v227, %v358
      %v360 = vpop.f32.mrf.mxu0
      %v361 = vadd.f32 %v227, %v360
      %362 = vmatmul.bf16.gmra.mxu0 %v279
      %v363 = vpop.f32.mrf.mxu0
      %v364 = vadd.f32 %v227, %v363
      %v365 = vpop.f32.mrf.mxu0
      %v366 = vadd.f32 %v227, %v365
      %367 = vmatmul.bf16.gmra.mxu0 %v282
      %v368 = vpop.f32.mrf.mxu0
      %v369 = vadd.f32 %v227, %v368
      %v370 = vpop.f32.mrf.mxu0
      %v371 = vadd.f32 %v227, %v370
      %372 = vdwg.mxu0
      %v373 = vmax.f32 %v294, 0.0
      %v374 = vmax.f32 %v296, 0.0
      %v375 = vmax.f32 %v299, 0.0
      %v376 = vmax.f32 %v301, 0.0
      %v377 = vmax.f32 %v304, 0.0
      %v378 = vmax.f32 %v306, 0.0
      %v379 = vmax.f32 %v309, 0.0
      %v380 = vmax.f32 %v311, 0.0
      %v381 = vmax.f32 %v314, 0.0
      %v382 = vmax.f32 %v316, 0.0
      %v383 = vmax.f32 %v319, 0.0
      %v384 = vmax.f32 %v321, 0.0
      %v385 = vmax.f32 %v324, 0.0
      %v386 = vmax.f32 %v326, 0.0
      %v387 = vmax.f32 %v329, 0.0
      %v388 = vmax.f32 %v331, 0.0
      %v389 = vmax.f32 %v334, 0.0
      %v390 = vmax.f32 %v336, 0.0
      %v391 = vmax.f32 %v339, 0.0
      %v392 = vmax.f32 %v341, 0.0
      %v393 = vmax.f32 %v344, 0.0
      %v394 = vmax.f32 %v346, 0.0
      %v395 = vmax.f32 %v349, 0.0
      %v396 = vmax.f32 %v351, 0.0
      %v397 = vmax.f32 %v354, 0.0
      %v398 = vmax.f32 %v356, 0.0
      %v399 = vmax.f32 %v359, 0.0
      %v400 = vmax.f32 %v361, 0.0
      %v401 = vmax.f32 %v364, 0.0
      %v402 = vmax.f32 %v366, 0.0
      %v403 = vmax.f32 %v369, 0.0
      %v404 = vmax.f32 %v371, 0.0
      %v405 = vmin.f32 %v373, 6.0
      %v406 = vmin.f32 %v374, 6.0
      %v407 = vmin.f32 %v375, 6.0
      %v408 = vmin.f32 %v376, 6.0
      %v409 = vmin.f32 %v377, 6.0
      %v410 = vmin.f32 %v378, 6.0
      %v411 = vmin.f32 %v379, 6.0
      %v412 = vmin.f32 %v380, 6.0
      %v413 = vmin.f32 %v381, 6.0
      %v414 = vmin.f32 %v382, 6.0
      %v415 = vmin.f32 %v383, 6.0
      %v416 = vmin.f32 %v384, 6.0
      %v417 = vmin.f32 %v385, 6.0
      %v418 = vmin.f32 %v386, 6.0
      %v419 = vmin.f32 %v387, 6.0
      %v420 = vmin.f32 %v388, 6.0
      %v421 = vmin.f32 %v389, 6.0
      %v422 = vmin.f32 %v390, 6.0
      %v423 = vmin.f32 %v391, 6.0
      %v424 = vmin.f32 %v392, 6.0
      %v425 = vmin.f32 %v393, 6.0
      %v426 = vmin.f32 %v394, 6.0
      %v427 = vmin.f32 %v395, 6.0
      %v428 = vmin.f32 %v396, 6.0
      %v429 = vmin.f32 %v397, 6.0
      %v430 = vmin.f32 %v398, 6.0
      %v431 = vmin.f32 %v399, 6.0
      %v432 = vmin.f32 %v400, 6.0
      %v433 = vmin.f32 %v401, 6.0
      %v434 = vmin.f32 %v402, 6.0
      %v435 = vmin.f32 %v403, 6.0
      %v436 = vmin.f32 %v404, 6.0
      %v437 = vpack.c.bf16 %v405, %v405
      %v438 = vpack.c.bf16 %v406, %v406
      %v439 = vpack.c.bf16 %v407, %v407
      %v440 = vpack.c.bf16 %v408, %v408
      %v441 = vpack.c.bf16 %v409, %v409
      %v442 = vpack.c.bf16 %v410, %v410
      %v443 = vpack.c.bf16 %v411, %v411
      %v444 = vpack.c.bf16 %v412, %v412
      %v445 = vpack.c.bf16 %v413, %v413
      %v446 = vpack.c.bf16 %v414, %v414
      %v447 = vpack.c.bf16 %v415, %v415
      %v448 = vpack.c.bf16 %v416, %v416
      %v449 = vpack.c.bf16 %v417, %v417
      %v450 = vpack.c.bf16 %v418, %v418
      %v451 = vpack.c.bf16 %v419, %v419
      %v452 = vpack.c.bf16 %v420, %v420
      %v453 = vpack.c.bf16 %v421, %v421
      %v454 = vpack.c.bf16 %v422, %v422
      %v455 = vpack.c.bf16 %v423, %v423
      %v456 = vpack.c.bf16 %v424, %v424
      %v457 = vpack.c.bf16 %v425, %v425
      %v458 = vpack.c.bf16 %v426, %v426
      %v459 = vpack.c.bf16 %v427, %v427
      %v460 = vpack.c.bf16 %v428, %v428
      %v461 = vpack.c.bf16 %v429, %v429
      %v462 = vpack.c.bf16 %v430, %v430
      %v463 = vpack.c.bf16 %v431, %v431
      %v464 = vpack.c.bf16 %v432, %v432
      %v465 = vpack.c.bf16 %v433, %v433
      %v466 = vpack.c.bf16 %v434, %v434
      %v467 = vpack.c.bf16 %v435, %v435
      %v468 = vpack.c.bf16 %v436, %v436
      %469 = vst [vmem:[%s172] sm:$0xf] %v437
      %470 = vst [vmem:[%s172 + $0x4] sm:$0xf] %v438
      %471 = vst [vmem:[%s172 + $0x8] sm:$0xf] %v439
      %472 = vst [vmem:[%s172 + $0xc] sm:$0xf] %v440
      %473 = vst [vmem:[%s172 + $0x10] sm:$0xf] %v441
      %474 = vst [vmem:[%s172 + $0x14] sm:$0xf] %v442
      %475 = vst [vmem:[%s172 + $0x18] sm:$0xf] %v443
      %476 = vst [vmem:[%s172 + $0x1c] sm:$0xf] %v444
      %477 = vst [vmem:[%s172 + $0x20] sm:$0xf] %v445
      %478 = vst [vmem:[%s172 + $0x24] sm:$0xf] %v446
      %479 = vst [vmem:[%s172 + $0x28] sm:$0xf] %v447
      %480 = vst [vmem:[%s172 + $0x2c] sm:$0xf] %v448
      %481 = vst [vmem:[%s172 + $0x30] sm:$0xf] %v449
      %482 = vst [vmem:[%s172 + $0x34] sm:$0xf] %v450
      %483 = vst [vmem:[%s172 + $0x38] sm:$0xf] %v451
      %484 = vst [vmem:[%s172 + $0x3c] sm:$0xf] %v452
      %485 = vst [vmem:[%s172 + $0x40] sm:$0xf] %v453
      %486 = vst [vmem:[%s172 + $0x44] sm:$0xf] %v454
      %487 = vst [vmem:[%s172 + $0x48] sm:$0xf] %v455
      %488 = vst [vmem:[%s172 + $0x4c] sm:$0xf] %v456
      %489 = vst [vmem:[%s172 + $0x50] sm:$0xf] %v457
      %490 = vst [vmem:[%s172 + $0x54] sm:$0xf] %v458
      %491 = vst [vmem:[%s172 + $0x58] sm:$0xf] %v459
      %492 = vst [vmem:[%s172 + $0x5c] sm:$0xf] %v460
      %493 = vst [vmem:[%s172 + $0x60] sm:$0xf] %v461
      %494 = vst [vmem:[%s172 + $0x64] sm:$0xf] %v462
      %495 = vst [vmem:[%s172 + $0x68] sm:$0xf] %v463
      %496 = vst [vmem:[%s172 + $0x6c] sm:$0xf] %v464
      %497 = vst [vmem:[%s172 + $0x70] sm:$0xf] %v465
      %498 = vst [vmem:[%s172 + $0x74] sm:$0xf] %v466
      %499 = vst [vmem:[%s172 + $0x78] sm:$0xf] %v467
      %500 = vst [vmem:[%s172 + $0x7c] sm:$0xf] %v468
      %s501 = smul.u32 32, %s14
      %p502 = scmp.lt.s32.totalorder %s501, 63
      %s503 = scalar_select %p502, %s501, 63
      %s504 = smul.addr %s503, 4
      %s505 = scalar_lea.vmem %s3, %s504
      // Predicated region
      $region33: #{inverted_residual_forward.3} parent=31 // pred_check
        %p506 = pneg %p100
      $region34: #{inverted_residual_forward.3} parent=31 // pred_check_branch
        %508 = sbr.rel (%p506) target = $region36
      $region35: #{inverted_residual_forward.3} parent=31 // pred_region
        %s509 = smul.u32 32, %s14
      $region36: #{inverted_residual_forward.3} parent=31 // pred_fallthru
        _
    $region32: #{inverted_residual_forward.3} parent=5 // pred_fallthru
      _
    %p510 = scmp.le.s32.totalorder 2, %s9
    // Predicated region
    $region37: #{inverted_residual_forward.3} parent=5 // pred_check
      %p511 = pneg %p510
    $region38: #{inverted_residual_forward.3} parent=5 // pred_check_branch
      %513 = sbr.rel (%p511) target = $region40
    $region39: #{inverted_residual_forward.3} parent=5 // pred_region
      %s514 = ssub.s32 %s9, 2
      // Predicated region
      $region41: #{inverted_residual_forward.3} parent=39 // pred_check
        %p515 = pneg %p106
      $region42: #{inverted_residual_forward.3} parent=39 // pred_check_branch
        %517 = sbr.rel (%p515) target = $region44
      $region43: #{inverted_residual_forward.3} parent=39 // pred_region
        %s518 = smul.u32 32, %s15
        %p519 = scmp.lt.s32.totalorder %s518, 63
        %s520 = scalar_select %p519, %s518, 63
        %s521 = smul.addr %s520, 4
        %s522 = scalar_lea.vmem %s3, %s521
      $region44: #{inverted_residual_forward.3} parent=39 // pred_fallthru
        _
    $region40: #{inverted_residual_forward.3} parent=5 // pred_fallthru
      _
  $region6: #{inverted_residual_forward.3} parent=0 // loop_footer
    %s13 = sadd.s32 1, %s9
  $region7: #{inverted_residual_forward.3} parent=0 // loop_footer_branch
    %8 = sbr.rel target = $region3
  $region8: #{inverted_residual_forward.3} parent=0 // loop_exit
    _

// kernel: inverted_residual_forward.4
$region0: #{inverted_residual_forward.4}
  #allocation0 [shape = 'u32[]', space=smem, size = 0x4, offset = 0x4, fixed_abs, tag = 'smem constant byte address 0x4 - core index']
  #allocation1 [shape = 'u32[72,128]{1,0:T(1,128)}', space=vmem, size = 0x9000, scoped, tag = 'internal scratch']
  #allocation2 [shape = 'f32[16,16,128]{2,1,0:T(8,128)}', space=vmem, size = 0x20000, scoped, tag = 'scratch operand']
  %s0 = inlined_call_operand.vmem [shape: bf16[2,16,16,128], index: 0, kind: input, shape index: {}]
  %s1 = inlined_call_operand.vmem [shape: f32[9,128], index: 1, kind: input, shape index: {}]
  %s2 = inlined_call_operand.vmem [shape: f32[1,128], index: 2, kind: input, shape index: {}]
  %s3 = inlined_call_operand.vmem [shape: bf16[2,16,16,128], index: 3, kind: output, shape index: {}]
  %s4 = sld [smem:[#allocation0]]
  $region45: #{inverted_residual_forward.4} parent=0
    _
  %s6 = ssub.s32 1, %s4
  %s7 = scalar_select 0, %s6, %s4
  loop: start=0, step=1, limit=4
  $region2: #{inverted_residual_forward.4} parent=0 // loop_pre_header
    _
  $region3: #{inverted_residual_forward.4} parent=0 // loop_header
    %s9 = sphi 0, %s13
    %p10 = scmp.ge.s32.totalorder %s9, 4
    %s16 = sphi 0, %s28
    %s17 = sphi 0, %s24
    %s18 = sphi 0, %s16
    %s19 = sphi 0, %s17
    %s20 = sphi 0, %s18
    %s21 = sphi 0, %s19
    %s33 = sphi 0, %s35
    %s36 = sphi 0, %s33
    %s37 = sphi 0, %s36
    %s53 = sphi 0, %s37
    %s59 = sphi 0, %s61
    %s62 = sphi 0, %s59
    %s63 = sphi 0, %s62
    %s79 = sphi 0, %s63
    %s85 = sphi 0, %s87
    %s88 = sphi 0, %s85
    %s89 = sphi 0, %s88
    %s105 = sphi 0, %s89
    %s113 = sphi 0, %s115
    %s116 = sphi 0, %s113
    %s117 = sphi 0, %s116
    %s133 = sphi 0, %s117
  $region4: #{inverted_residual_forward.4} parent=0 // loop_header_branch
    %12 = sbr.rel (%p10) target = $region8
  $region5: #{inverted_residual_forward.4} parent=0 // loop_body
    %s14 = ssub.s32 %s9, 1
    %s15 = ssub.s32 %s9, 2
    %s22 = sadd.s32 1, %s17
    %p23 = scmp.ge.s32.totalorder %s22, 1
    %s24 = scalar_select %p23, 0, %s22
    %s25 = sadd.s32 1, %s16
    %s26 = scalar_select %p23, %s25, %s16
    %p27 = scmp.ge.s32.totalorder %s26, 2
    %s28 = scalar_select %p27, 0, %s26
    %s29 = ssub.s32 %s16, %s28
    %s30 = ssub.s32 %s17, %s24
    %s31 = sor.u32 %s29, %s30
    %p32 = scmp.eq.s32.totalorder %s31, 0
    %s34 = sadd.s32 %s33, 1
    %s35 = scalar_select %p32, %s33, %s34
    %p38 = pneg %p32
    %p39 = scmp.eq.s32.totalorder %s9, 1
    %p40 = por %p38, %p39
    %p41 = scmp.ne.s32.totalorder %s33, %s36
    %p42 = scmp.eq.s32.totalorder %s9, 0
    %p43 = por %p41, %p42
    %p44 = scmp.ne.s32.totalorder %s33, %s36
    %p45 = scmp.eq.s32.totalorder %s14, 1
    %p46 = por %p44, %p45
    %p47 = scmp.ne.s32.totalorder %s36, %s37
    %p48 = scmp.eq.s32.totalorder %s14, 0
    %p49 = por %p47, %p48
    %p50 = scmp.ne.s32.totalorder %s36, %s37
    %p51 = scmp.eq.s32.totalorder %s15, 1
    %p52 = por %p50, %p51
    %p54 = scmp.ne.s32.totalorder %s37, %s53
    %p55 = scmp.eq.s32.totalorder %s15, 0
    %p56 = por %p54, %p55
    %s57 = ssub.s32 %s17, %s24
    %p58 = scmp.eq.s32.totalorder %s57, 0
    %s60 = sadd.s32 %s59, 1
    %s61 = scalar_select %p58, %s59, %s60
    %p64 = pneg %p58
    %p65 = scmp.eq.s32.totalorder %s9, 1
    %p66 = por %p64, %p65
    %p67 = scmp.ne.s32.totalorder %s59, %s62
    %p68 = scmp.eq.s32.totalorder %s9, 0
    %p69 = por %p67, %p68
    %p70 = scmp.ne.s32.totalorder %s59, %s62
    %p71 = scmp.eq.s32.totalorder %s14, 1
    %p72 = por %p70, %p71
    %p73 = scmp.ne.s32.totalorder %s62, %s63
    %p74 = scmp.eq.s32.totalorder %s14, 0
    %p75 = por %p73, %p74
    %p76 = scmp.ne.s32.totalorder %s62, %s63
    %p77 = scmp.eq.s32.totalorder %s15, 1
    %p78 = por %p76, %p77
    %p80 = scmp.ne.s32.totalorder %s63, %s79
    %p81 = scmp.eq.s32.totalorder %s15, 0
    %p82 = por %p80, %p81
    %s83 = ssub.s32 %s17, %s24
    %p84 = scmp.eq.s32.totalorder %s83, 0
    %s86 = sadd.s32 %s85, 1
    %s87 = scalar_select %p84, %s85, %s86
    %p90 = pneg %p84
    %p91 = scmp.eq.s32.totalorder %s9, 1
    %p92 = por %p90, %p91
    %p93 = scmp.ne.s32.totalorder %s85, %s88
    %p94 = scmp.eq.s32.totalorder %s9, 0
    %p95 = por %p93, %p94
    %p96 = scmp.ne.s32.totalorder %s85, %s88
    %p97 = scmp.eq.s32.totalorder %s14, 1
    %p98 = por %p96, %p97
    %p99 = scmp.ne.s32.totalorder %s88, %s89
    %p100 = scmp.eq.s32.totalorder %s14, 0
    %p101 = por %p99, %p100
    %p102 = scmp.ne.s32.totalorder %s88, %s89
    %p103 = scmp.eq.s32.totalorder %s15, 1
    %p104 = por %p102, %p103
    %p106 = scmp.ne.s32.totalorder %s89, %s105
    %p107 = scmp.eq.s32.totalorder %s15, 0
    %p108 = por %p106, %p107
    %s109 = ssub.s32 %s16, %s28
    %s110 = ssub.s32 %s17, %s24
    %s111 = sor.u32 %s109, %s110
    %p112 = scmp.eq.s32.totalorder %s111, 0
    %s114 = sadd.s32 %s113, 1
    %s115 = scalar_select %p112, %s113, %s114
    %p118 = pneg %p112
    %p119 = scmp.eq.s32.totalorder %s9, 1
    %p120 = por %p118, %p119
    %p121 = scmp.ne.s32.totalorder %s113, %s116
    %p122 = scmp.eq.s32.totalorder %s9, 0
    %p123 = por %p121, %p122
    %p124 = scmp.ne.s32.totalorder %s113, %s116
    %p125 = scmp.eq.s32.totalorder %s14, 1
    %p126 = por %p124, %p125
    %p127 = scmp.ne.s32.totalorder %s116, %s117
    %p128 = scmp.eq.s32.totalorder %s14, 0
    %p129 = por %p127, %p128
    %p130 = scmp.ne.s32.totalorder %s116, %s117
    %p131 = scmp.eq.s32.totalorder %s15, 1
    %p132 = por %p130, %p131
    %p134 = scmp.ne.s32.totalorder %s117, %s133
    %p135 = scmp.eq.s32.totalorder %s15, 0
    %p136 = por %p134, %p135
    %p137 = scmp.le.s32.totalorder 1, %s9
    %p138 = scmp.lt.s32.totalorder %s9, 3
    %p139 = pnand %p137, %p138
    %p140 = pneg %p139
    // Predicated region
    $region9: #{inverted_residual_forward.4} parent=5 // pred_check
      _
    $region10: #{inverted_residual_forward.4} parent=5 // pred_check_branch
      %142 = sbr.rel (%p139) target = $region12
    $region11: #{inverted_residual_forward.4} parent=5 // pred_region
      %s143 = ssub.s32 %s9, 1
      // Predicated region
      $region13: #{inverted_residual_forward.4} parent=11 // pred_check
        %p144 = pneg %p75
      $region14: #{inverted_residual_forward.4} parent=11 // pred_check_branch
        %146 = sbr.rel (%p144) target = $region16
      $region15: #{inverted_residual_forward.4} parent=11 // pred_region
        %p147 = scmp.lt.s32.totalorder %s19, 0
        %s148 = scalar_select %p147, %s19, 0
        %s149 = smul.addr %s148, 8
        %s150 = scalar_lea.vmem %s1, %s149
      $region16: #{inverted_residual_forward.4} parent=11 // pred_fallthru
        _
      // Predicated region
      $region17: #{inverted_residual_forward.4} parent=11 // pred_check
        %p151 = pneg %p101
      $region18: #{inverted_residual_forward.4} parent=11 // pred_check_branch
        %153 = sbr.rel (%p151) target = $region20
      $region19: #{inverted_residual_forward.4} parent=11 // pred_region
        %p154 = scmp.lt.s32.totalorder %s19, 0
        %s155 = scalar_select %p154, %s19, 0
        %s156 = scalar_lea.vmem %s2, %s155
      $region20: #{inverted_residual_forward.4} parent=11 // pred_fallthru
        _
    $region12: #{inverted_residual_forward.4} parent=5 // pred_fallthru
      _
    %p157 = scmp.lt.s32.totalorder %s9, 2
    // Predicated region
    $region21: #{inverted_residual_forward.4} parent=5 // pred_check
      %p158 = pneg %p157
    $region22: #{inverted_residual_forward.4} parent=5 // pred_check_branch
      %160 = sbr.rel (%p158) target = $region24
    $region23: #{inverted_residual_forward.4} parent=5 // pred_region
      // Predicated region
      $region25: #{inverted_residual_forward.4} parent=23 // pred_check
        %p161 = pneg %p43
      $region26: #{inverted_residual_forward.4} parent=23 // pred_check_branch
        %163 = sbr.rel (%p161) target = $region28
      $region27: #{inverted_residual_forward.4} parent=23 // pred_region
        %p164 = scmp.lt.s32.totalorder %s16, 1
        %s165 = scalar_select %p164, %s16, 1
        %p166 = scmp.lt.s32.totalorder %s17, 0
        %s167 = scalar_select %p166, %s17, 0
        %s168 = smul.addr %s165, 32
        %s169 = sadd.s32 %s167, %s168
        %s170 = smul.addr %s169, 4
        %s171 = scalar_lea.vmem %s0, %s170
      $region28: #{inverted_residual_forward.4} parent=23 // pred_fallthru
        _
    $region24: #{inverted_residual_forward.4} parent=5 // pred_fallthru
      _
    %p172 = scmp.le.s32.totalorder 1, %s9
    %p173 = scmp.lt.s32.totalorder %s9, 3
    %p174 = pnand %p172, %p173
    %p175 = pneg %p174
    // Predicated region
    $region29: #{inverted_residual_forward.4} parent=5 // pred_check
      _
    $region30: #{inverted_residual_forward.4} parent=5 // pred_check_branch
      %177 = sbr.rel (%p174) target = $region32
    $region31: #{inverted_residual_forward.4} parent=5 // pred_region
      %s178 = ssub.s32 %s9, 1
      %p179 = scmp.lt.s32.totalorder %s18, 1
      %s180 = scalar_select %p179, %s18, 1
      %p181 = scmp.lt.s32.totalorder %s19, 0
      %s182 = scalar_select %p181, %s19, 0
      %s183 = smul.addr %s180, 32
      %s184 = sadd.s32 %s182, %s183
      %s185 = smul.addr %s184, 4
      %s186 = scalar_lea.vmem %s0, %s185
      %p187 = pneg %p49
      %p188 = pneg %p46
      %p189 = scmp.lt.s32.totalorder %s19, 0
      %s190 = scalar_select %p189, %s19, 0
      %s191 = smul.addr %s190, 8
      %s192 = scalar_lea.vmem %s1, %s191
      %p193 = pneg %p75
      %p194 = pneg %p72
      %p195 = scmp.lt.s32.totalorder %s19, 0
      %s196 = scalar_select %p195, %s19, 0
      %s197 = scalar_lea.vmem %s2, %s196
      %p198 = pneg %p101
      %p199 = pneg %p98
      %p200 = pneg %p129
      %p201 = pneg %p126
      %p202 = scmp.lt.s32.totalorder %s18, 1
      %s203 = scalar_select %p202, %s18, 1
      %p204 = scmp.lt.s32.totalorder %s19, 0
      %s205 = scalar_select %p204, %s19, 0
      %s206 = smul.addr %s203, 32
      %s207 = sadd.s32 %s205, %s206
      %s208 = smul.addr %s207, 4
      %s209 = scalar_lea.vmem %s3, %s208
      %p210 = scmp.lt.s32.totalorder %s18, 1
      %s211 = scalar_select %p210, %s18, 1
      %p212 = scmp.lt.s32.totalorder %s19, 0
      %s213 = scalar_select %p212, %s19, 0
      %s214 = smul.addr %s211, 32
      %s215 = sadd.s32 %s213, %s214
      %s216 = smul.addr %s215, 4
      %s217 = scalar_lea.vmem %s0, %s216
      %p218 = scmp.lt.s32.totalorder %s19, 0
      %s219 = scalar_select %p218, %s19, 0
      %s220 = smul.addr %s219, 8
      %s221 = scalar_lea.vmem %s1, %s220
      %p222 = scmp.lt.s32.totalorder %s19, 0
      %s223 = scalar_select %p222, %s19, 0
      %s224 = scalar_lea.vmem %s2, %s223
      %p225 = scmp.lt.s32.totalorder %s18, 1
      %s226 = scalar_select %p225, %s18, 1
      %p227 = scmp.lt.s32.totalorder %s19, 0
      %s228 = scalar_select %p227, %s19, 0
      %s229 = smul.addr %s226, 32
      %s230 = sadd.s32 %s228, %s229
      %s231 = smul.addr %s230, 4
      %s232 = scalar_lea.vmem %s3, %s231
      %v233 = vld [vmem:[%s217] sm:$0xf]
      %v234 = vld [vmem:[%s217 + $0x4] sm:$0xf]
      %v235 = vld [vmem:[%s217 + $0x8] sm:$0xf]
      %v236 = vld [vmem:[%s217 + $0xc] sm:$0xf]
      %v237 = vld [vmem:[%s217 + $0x10] sm:$0xf]
      %v238 = vld [vmem:[%s217 + $0x14] sm:$0xf]
      %v239 = vld [vmem:[%s217 + $0x18] sm:$0xf]
      %v240 = vld [vmem:[%s217 + $0x1c] sm:$0xf]
      %v241 = vld [vmem:[%s217 + $0x20] sm:$0xf]
      %v242 = vld [vmem:[%s217 + $0x24] sm:$0xf]
      %v243 = vld [vmem:[%s217 + $0x28] sm:$0xf]
      %v244 = vld [vmem:[%s217 + $0x2c] sm:$0xf]
      %v245 = vld [vmem:[%s217 + $0x30] sm:$0xf]
      %v246 = vld [vmem:[%s217 + $0x34] sm:$0xf]
      %v247 = vld [vmem:[%s217 + $0x38] sm:$0xf]
      %v248 = vld [vmem:[%s217 + $0x3c] sm:$0xf]
      %v249 = vld [vmem:[%s217 + $0x40] sm:$0xf]
      %v250 = vld [vmem:[%s217 + $0x44] sm:$0xf]
      %v251 = vld [vmem:[%s217 + $0x48] sm:$0xf]
      %v252 = vld [vmem:[%s217 + $0x4c] sm:$0xf]
      %v253 = vld [vmem:[%s217 + $0x50] sm:$0xf]
      %v254 = vld [vmem:[%s217 + $0x54] sm:$0xf]
      %v255 = vld [vmem:[%s217 + $0x58] sm:$0xf]
      %v256 = vld [vmem:[%s217 + $0x5c] sm:$0xf]
      %v257 = vld [vmem:[%s217 + $0x60] sm:$0xf]
      %v258 = vld [vmem:[%s217 + $0x64] sm:$0xf]
      %v259 = vld [vmem:[%s217 + $0x68] sm:$0xf]
      %v260 = vld [vmem:[%s217 + $0x6c] sm:$0xf]
      %v261 = vld [vmem:[%s217 + $0x70] sm:$0xf]
      %v262 = vld [vmem:[%s217 + $0x74] sm:$0xf]
      %v263 = vld [vmem:[%s217 + $0x78] sm:$0xf]
      %v264 = vld [vmem:[%s217 + $0x7c] sm:$0xf]
      %v265 = vunpack.c.l.bf16 %v233
      %v266 = vunpack.c.l.bf16 %v234
      %v267 = vunpack.c.l.bf16 %v235
      %v268 = vunpack.c.l.bf16 %v236
      %v269 = vunpack.c.l.bf16 %v237
      %v270 = vunpack.c.l.bf16 %v238
      %v271 = vunpack.c.l.bf16 %v239
      %v272 = vunpack.c.l.bf16 %v240
      %v273 = vunpack.c.l.bf16 %v241
      %v274 = vunpack.c.l.bf16 %v242
      %v275 = vunpack.c.l.bf16 %v243
      %v276 = vunpack.c.l.bf16 %v244
      %v277 = vunpack.c.l.bf16 %v245
      %v278 = vunpack.c.l.bf16 %v246
      %v279 = vunpack.c.l.bf16 %v247
      %v280 = vunpack.c.l.bf16 %v248
      %v281 = vunpack.c.l.bf16 %v249
      %v282 = vunpack.c.l.bf16 %v250
      %v283 = vunpack.c.l.bf16 %v251
      %v284 = vunpack.c.l.bf16 %v252
      %v285 = vunpack.c.l.bf16 %v253
      %v286 = vunpack.c.l.bf16 %v254
      %v287 = vunpack.c.l.bf16 %v255
      %v288 = vunpack.c.l.bf16 %v256
      %v289 = vunpack.c.l.bf16 %v257
      %v290 = vunpack.c.l.bf16 %v258
      %v291 = vunpack.c.l.bf16 %v259
      %v292 = vunpack.c.l.bf16 %v260
      %v293 = vunpack.c.l.bf16 %v261
      %v294 = vunpack.c.l.bf16 %v262
      %v295 = vunpack.c.l.bf16 %v263
      %v296 = vunpack.c.l.bf16 %v264
      %v297 = vld [vmem:[%s221] sm:$0xff]
      %v298 = vld [vmem:[%s221 + $0x8] sm:$0x1]
      %v299 = vlaneseq
      %v300 = vshrl.u32 %v299, 7
      %v301 = vadd.s32 %v300, 8
      %vm302 = vcmp.eq.s32.totalorder %v300, 0
      %vm303 = vcmp.eq.s32.totalorder %v301, 0
      %v304 = vrot.slane %v265, 7
      %v305 = vrot.slane %v267, 7
      %v306 = vrot.slane %v269, 7
      %v307 = vrot.slane %v271, 7
      %v308 = vrot.slane %v273, 7
      %v309 = vrot.slane %v275, 7
      %v310 = vrot.slane %v277, 7
      %v311 = vrot.slane %v279, 7
      %v312 = vrot.slane %v281, 7
      %v313 = vrot.slane %v283, 7
      %v314 = vrot.slane %v285, 7
      %v315 = vrot.slane %v287, 7
      %v316 = vrot.slane %v289, 7
      %v317 = vrot.slane %v291, 7
      %v318 = vrot.slane %v293, 7
      %v319 = vrot.slane %v295, 7
      %v320 = vrot.slane %v266, 7
      %v321 = vrot.slane %v268, 7
      %v322 = vrot.slane %v270, 7
      %v323 = vrot.slane %v272, 7
      %v324 = vrot.slane %v274, 7
      %v325 = vrot.slane %v276, 7
      %v326 = vrot.slane %v278, 7
      %v327 = vrot.slane %v280, 7
      %v328 = vrot.slane %v282, 7
      %v329 = vrot.slane %v284, 7
      %v330 = vrot.slane %v286, 7
      %v331 = vrot.slane %v288, 7
      %v332 = vrot.slane %v290, 7
      %v333 = vrot.slane %v292, 7
      %v334 = vrot.slane %v294, 7
      %v335 = vrot.slane %v296, 7
      %vm336 = vcmp.lt.s32.totalorder %v300, 1
      %v337 = vsel %vm336, %v304, %v320
      %v338 = vsel %vm336, %v305, %v321
      %v339 = vsel %vm336, %v306, %v322
      %v340 = vsel %vm336, %v307, %v323
      %v341 = vsel %vm336, %v308, %v324
      %v342 = vsel %vm336, %v309, %v325
      %v343 = vsel %vm336, %v310, %v326
      %v344 = vsel %vm336, %v311, %v327
      %v345 = vsel %vm336, %v312, %v328
      %v346 = vsel %vm336, %v313, %v329
      %v347 = vsel %vm336, %v314, %v330
      %v348 = vsel %vm336, %v315, %v331
      %v349 = vsel %vm336, %v316, %v332
      %v350 = vsel %vm336, %v317, %v333
      %v351 = vsel %vm336, %v318, %v334
      %v352 = vsel %vm336, %v319, %v335
      %v353 = vsel %vm336, %v320, %v304
      %v354 = vsel %vm336, %v321, %v305
      %v355 = vsel %vm336, %v322, %v306
      %v356 = vsel %vm336, %v323, %v307
      %v357 = vsel %vm336, %v324, %v308
      %v358 = vsel %vm336, %v325, %v309
      %v359 = vsel %vm336, %v326, %v310
      %v360 = vsel %vm336, %v327, %v311
      %v361 = vsel %vm336, %v328, %v312
      %v362 = vsel %vm336, %v329, %v313
      %v363 = vsel %vm336, %v330, %v314
      %v364 = vsel %vm336, %v331, %v315
      %v365 = vsel %vm336, %v332, %v316
      %v366 = vsel %vm336, %v333, %v317
      %v367 = vsel %vm336, %v334, %v318
      %v368 = vsel %vm336, %v335, %v319
      %v369 = vsel %vm302, 1, 0
      %v370 = vsel %vm303, 1, 0
      %vm371 = vcmp.eq.s32.totalorder %v369, 1
      %vm372 = vcmp.eq.s32.totalorder %v370, 1
      %v373 = vsel %vm371, 0.0, %v353
      %v374 = vsel %vm372, 0.0, %v337
      %v375 = vsel %vm371, 0.0, %v354
      %v376 = vsel %vm372, 0.0, %v338
      %v377 = vsel %vm371, 0.0, %v355
      %v378 = vsel %vm372, 0.0, %v339
      %v379 = vsel %vm371, 0.0, %v356
      %v380 = vsel %vm372, 0.0, %v340
      %v381 = vsel %vm371, 0.0, %v357
      %v382 = vsel %vm372, 0.0, %v341
      %v383 = vsel %vm371, 0.0, %v358
      %v384 = vsel %vm372, 0.0, %v342
      %v385 = vsel %vm371, 0.0, %v359
      %v386 = vsel %vm372, 0.0, %v343
      %v387 = vsel %vm371, 0.0, %v360
      %v388 = vsel %vm372, 0.0, %v344
      %v389 = vsel %vm371, 0.0, %v361
      %v390 = vsel %vm372, 0.0, %v345
      %v391 = vsel %vm371, 0.0, %v362
      %v392 = vsel %vm372, 0.0, %v346
      %v393 = vsel %vm371, 0.0, %v363
      %v394 = vsel %vm372, 0.0, %v347
      %v395 = vsel %vm371, 0.0, %v364
      %v396 = vsel %vm372, 0.0, %v348
      %v397 = vsel %vm371, 0.0, %v365
      %v398 = vsel %vm372, 0.0, %v349
      %v399 = vsel %vm371, 0.0, %v366
      %v400 = vsel %vm372, 0.0, %v350
      %v401 = vsel %vm371, 0.0, %v367
      %v402 = vsel %vm372, 0.0, %v351
      %v403 = vsel %vm371, 0.0, %v368
      %v404 = vsel %vm372, 0.0, %v352
      %vm405 = vcmp.eq.s32.totalorder %v300, 15
      %vm406 = vcmp.eq.s32.totalorder %v301, 15
      %v407 = vrot.slane %v265, 1
      %v408 = vrot.slane %v267, 1
      %v409 = vrot.slane %v269, 1
      %v410 = vrot.slane %v271, 1
      %v411 = vrot.slane %v273, 1
      %v412 = vrot.slane %v275, 1
      %v413 = vrot.slane %v277, 1
      %v414 = vrot.slane %v279, 1
      %v415 = vrot.slane %v281, 1
      %v416 = vrot.slane %v283, 1
      %v417 = vrot.slane %v285, 1
      %v418 = vrot.slane %v287, 1
      %v419 = vrot.slane %v289, 1
      %v420 = vrot.slane %v291, 1
      %v421 = vrot.slane %v293, 1
      %v422 = vrot.slane %v295, 1
      %v423 = vrot.slane %v266, 1
      %v424 = vrot.slane %v268, 1
      %v425 = vrot.slane %v270, 1
      %v426 = vrot.slane %v272, 1
      %v427 = vrot.slane %v274, 1
      %v428 = vrot.slane %v276, 1
      %v429 = vrot.slane %v278, 1
      %v430 = vrot.slane %v280, 1
      %v431 = vrot.slane %v282, 1
      %v432 = vrot.slane %v284, 1
      %v433 = vrot.slane %v286, 1
      %v434 = vrot.slane %v288, 1
      %v435 = vrot.slane %v290, 1
      %v436 = vrot.slane %v292, 1
      %v437 = vrot.slane %v294, 1
      %v438 = vrot.slane %v296, 1
      %vm439 = vcmp.lt.s32.totalorder %v300, 7
      %v440 = vsel %vm439, %v407, %v423
      %v441 = vsel %vm439, %v408, %v424
      %v442 = vsel %vm439, %v409, %v425
      %v443 = vsel %vm439, %v410, %v426
      %v444 = vsel %vm439, %v411, %v427
      %v445 = vsel %vm439, %v412, %v428
      %v446 = vsel %vm439, %v413, %v429
      %v447 = vsel %vm439, %v414, %v430
      %v448 = vsel %vm439, %v415, %v431
      %v449 = vsel %vm439, %v416, %v432
      %v450 = vsel %vm439, %v417, %v433
      %v451 = vsel %vm439, %v418, %v434
      %v452 = vsel %vm439, %v419, %v435
      %v453 = vsel %vm439, %v420, %v436
      %v454 = vsel %vm439, %v421, %v437
      %v455 = vsel %vm439, %v422, %v438
      %v456 = vsel %vm439, %v423, %v407
      %v457 = vsel %vm439, %v424, %v408
      %v458 = vsel %vm439, %v425, %v409
      %v459 = vsel %vm439, %v426, %v410
      %v460 = vsel %vm439, %v427, %v411
      %v461 = vsel %vm439, %v428, %v412
      %v462 = vsel %vm439, %v429, %v413
      %v463 = vsel %vm439, %v430, %v414
      %v464 = vsel %vm439, %v431, %v415
      %v465 = vsel %vm439, %v432, %v416
      %v466 = vsel %vm439, %v433, %v417
      %v467 = vsel %vm439, %v434, %v418
      %v468 = vsel %vm439, %v435, %v419
      %v469 = vsel %vm439, %v436, %v420
      %v470 = vsel %vm439, %v437, %v421
      %v471 = vsel %vm439, %v438, %v422
      %v472 = vsel %vm405, 1, 0
      %v473 = vsel %vm406, 1, 0
      %vm474 = vcmp.eq.s32.totalorder %v472, 1
      %vm475 = vcmp.eq.s32.totalorder %v473, 1
      %v476 = vsel %vm474, 0.0, %v440
      %v477 = vsel %vm475, 0.0, %v456
      %v478 = vsel %vm474, 0.0, %v441
      %v479 = vsel %vm475, 0.0, %v457
      %v480 = vsel %vm474, 0.0, %v442
      %v481 = vsel %vm475, 0.0, %v458
      %v482 = vsel %vm474, 0.0, %v443
      %v483 = vsel %vm475, 0.0, %v459
      %v484 = vsel %vm474, 0.0, %v444
      %v485 = vsel %vm475, 0.0, %v460
      %v486 = vsel %vm474, 0.0, %v445
      %v487 = vsel %vm475, 0.0, %v461
      %v488 = vsel %vm474, 0.0, %v446
      %v489 = vsel %vm475, 0.0, %v462
      %v490 = vsel %vm474, 0.0, %v447
      %v491 = vsel %vm475, 0.0, %v463
      %v492 = vsel %vm474, 0.0, %v448
      %v493 = vsel %vm475, 0.0, %v464
      %v494 = vsel %vm474, 0.0, %v449
      %v495 = vsel %vm475, 0.0, %v465
      %v496 = vsel %vm474, 0.0, %v450
      %v497 = vsel %vm475, 0.0, %v466
      %v498 = vsel %vm474, 0.0, %v451
      %v499 = vsel %vm475, 0.0, %v467
      %v500 = vsel %vm474, 0.0, %v452
      %v501 = vsel %vm475, 0.0, %v468
      %v502 = vsel %vm474, 0.0, %v453
      %v503 = vsel %vm475, 0.0, %v469
      %v504 = vsel %vm474, 0.0, %v454
      %v505 = vsel %vm475, 0.0, %v470
      %v506 = vsel %vm474, 0.0, %v455
      %v507 = vsel %vm475, 0.0, %v471
      %508 = vst [vmem:[#allocation2] sm:$0xff] 0.0
      %509 = vst [vmem:[#allocation2 + $0x8] sm:$0xff] 0.0
      %510 = vst [vmem:[#allocation2 + $0x10] sm:$0xff] 0.0
      %511 = vst [vmem:[#allocation2 + $0x18] sm:$0xff] 0.0
      %512 = vst [vmem:[#allocation2 + $0x20] sm:$0xff] 0.0
      %513 = vst [vmem:[#allocation2 + $0x28] sm:$0xff] 0.0
      %514 = vst [vmem:[#allocation2 + $0x30] sm:$0xff] 0.0
      %515 = vst [vmem:[#allocation2 + $0x38] sm:$0xff] 0.0
      %516 = vst [vmem:[#allocation2 + $0x40] sm:$0xff] 0.0
      %517 = vst [vmem:[#allocation2 + $0x48] sm:$0xff] 0.0
      %518 = vst [vmem:[#allocation2 + $0x50] sm:$0xff] 0.0
      %519 = vst [vmem:[#allocation2 + $0x58] sm:$0xff] 0.0
      %520 = vst [vmem:[#allocation2 + $0x60] sm:$0xff] 0.0
      %521 = vst [vmem:[#allocation2 + $0x68] sm:$0xff] 0.0
      %522 = vst [vmem:[#allocation2 + $0x70] sm:$0xff] 0.0
      %523 = vst [vmem:[#allocation2 + $0x78] sm:$0xff] 0.0
      %524 = vst [vmem:[#allocation2 + $0x80] sm:$0xff] 0.0
      %525 = vst [vmem:[#allocation2 + $0x88] sm:$0xff] 0.0
      %526 = vst [vmem:[#allocation2 + $0x90] sm:$0xff] 0.0
      %527 = vst [vmem:[#allocation2 + $0x98] sm:$0xff] 0.0
      %528 = vst [vmem:[#allocation2 + $0xa0] sm:$0xff] 0.0
      %529 = vst [vmem:[#allocation2 + $0xa8] sm:$0xff] 0.0
      %530 = vst [vmem:[#allocation2 + $0xb0] sm:$0xff] 0.0
      %531 = vst [vmem:[#allocation2 + $0xb8] sm:$0xff] 0.0
      %532 = vst [vmem:[#allocation2 + $0xc0] sm:$0xff] 0.0
      %533 = vst [vmem:[#allocation2 + $0xc8] sm:$0xff] 0.0
      %534 = vst [vmem:[#allocation2 + $0xd0] sm:$0xff] 0.0
      %535 = vst [vmem:[#allocation2 + $0xd8] sm:$0xff] 0.0
      %536 = vst [vmem:[#allocation2 + $0xe0] sm:$0xff] 0.0
      %537 = vst [vmem:[#allocation2 + $0xe8] sm:$0xff] 0.0
      %538 = vst [vmem:[#allocation2 + $0xf0] sm:$0xff] 0.0
      %539 = vst [vmem:[#allocation2 + $0xf8] sm:$0xff] 0.0
      %s540 = scalar_lea.vmem [#allocation2], 16
      %v541 = vld [vmem:[%s540] sm:$0xff]
      %v542 = vld [vmem:[%s540 + $0x8] sm:$0xff]
      %v543 = vld [vmem:[%s540 + $0x10] sm:$0xff]
      %v544 = vld [vmem:[%s540 + $0x18] sm:$0xff]
      %v545 = vld [vmem:[%s540 + $0x20] sm:$0xff]
      %v546 = vld [vmem:[%s540 + $0x28] sm:$0xff]
      %v547 = vld [vmem:[%s540 + $0x30] sm:$0xff]
      %v548 = vld [vmem:[%s540 + $0x38] sm:$0xff]
      %v549 = vld [vmem:[%s540 + $0x40] sm:$0xff]
      %v550 = vld [vmem:[%s540 + $0x48] sm:$0xff]
      %v551 = vld [vmem:[%s540 + $0x50] sm:$0xff]
      %v552 = vld [vmem:[%s540 + $0x58] sm:$0xff]
      %v553 = vld [vmem:[%s540 + $0x60] sm:$0xff]
      %v554 = vld [vmem:[%s540 + $0x68] sm:$0xff]
      %v555 = vld [vmem:[%s540 + $0x70] sm:$0xff]
      %v556 = vld [vmem:[%s540 + $0x78] sm:$0xff]
      %v557 = vld [vmem:[%s540 + $0x80] sm:$0xff]
      %v558 = vld [vmem:[%s540 + $0x88] sm:$0xff]
      %v559 = vld [vmem:[%s540 + $0x90] sm:$0xff]
      %v560 = vld [vmem:[%s540 + $0x98] sm:$0xff]
      %v561 = vld [vmem:[%s540 + $0xa0] sm:$0xff]
      %v562 = vld [vmem:[%s540 + $0xa8] sm:$0xff]
      %v563 = vld [vmem:[%s540 + $0xb0] sm:$0xff]
      %v564 = vld [vmem:[%s540 + $0xb8] sm:$0xff]
      %v565 = vld [vmem:[%s540 + $0xc0] sm:$0xff]
      %v566 = vld [vmem:[%s540 + $0xc8] sm:$0xff]
      %v567 = vld [vmem:[%s540 + $0xd0] sm:$0xff]
      %v568 = vld [vmem:[%s540 + $0xd8] sm:$0xff]
      %v569 = vld [vmem:[%s540 + $0xe0] sm:$0xff]
      %v570 = vld [vmem:[%s540 + $0xe8] sm:$0xff]
      %v571 = vperm.slane %v297, 0
      %v572 = vmul.f32 %v373, %v571
      %v573 = vmul.f32 %v374, %v571
      %v574 = vmul.f32 %v375, %v571
      %v575 = vmul.f32 %v376, %v571
      %v576 = vmul.f32 %v377, %v571
      %v577 = vmul.f32 %v378, %v571
      %v578 = vmul.f32 %v379, %v571
      %v579 = vmul.f32 %v380, %v571
      %v580 = vmul.f32 %v381, %v571
      %v581 = vmul.f32 %v382, %v571
      %v582 = vmul.f32 %v383, %v571
      %v583 = vmul.f32 %v384, %v571
      %v584 = vmul.f32 %v385, %v571
      %v585 = vmul.f32 %v386, %v571
      %v586 = vmul.f32 %v387, %v571
      %v587 = vmul.f32 %v388, %v571
      %v588 = vmul.f32 %v389, %v571
      %v589 = vmul.f32 %v390, %v571
      %v590 = vmul.f32 %v391, %v571
      %v591 = vmul.f32 %v392, %v571
      %v592 = vmul.f32 %v393, %v571
      %v593 = vmul.f32 %v394, %v571
      %v594 = vmul.f32 %v395, %v571
      %v595 = vmul.f32 %v396, %v571
      %v596 = vmul.f32 %v397, %v571
      %v597 = vmul.f32 %v398, %v571
      %v598 = vmul.f32 %v399, %v571
      %v599 = vmul.f32 %v400, %v571
      %v600 = vmul.f32 %v401, %v571
      %v601 = vmul.f32 %v402, %v571
      %v602 = vadd.f32 %v541, %v572
      %v603 = vadd.f32 %v542, %v573
      %v604 = vadd.f32 %v543, %v574
      %v605 = vadd.f32 %v544, %v575
      %v606 = vadd.f32 %v545, %v576
      %v607 = vadd.f32 %v546, %v577
      %v608 = vadd.f32 %v547, %v578
      %v609 = vadd.f32 %v548, %v579
      %v610 = vadd.f32 %v549, %v580
      %v611 = vadd.f32 %v550, %v581
      %v612 = vadd.f32 %v551, %v582
      %v613 = vadd.f32 %v552, %v583
      %v614 = vadd.f32 %v553, %v584
      %v615 = vadd.f32 %v554, %v585
      %v616 = vadd.f32 %v555, %v586
      %v617 = vadd.f32 %v556, %v587
      %v618 = vadd.f32 %v557, %v588
      %v619 = vadd.f32 %v558, %v589
      %v620 = vadd.f32 %v559, %v590
      %v621 = vadd.f32 %v560, %v591
      %v622 = vadd.f32 %v561, %v592
      %v623 = vadd.f32 %v562, %v593
      %v624 = vadd.f32 %v563, %v594
      %v625 = vadd.f32 %v564, %v595
      %v626 = vadd.f32 %v565, %v596
      %v627 = vadd.f32 %v566, %v597
      %v628 = vadd.f32 %v567, %v598
      %v629 = vadd.f32 %v568, %v599
      %v630 = vadd.f32 %v569, %v600
      %v631 = vadd.f32 %v570, %v601
      %632 = vst [vmem:[%s540] sm:$0xff] %v602
      %633 = vst [vmem:[%s540 + $0x8] sm:$0xff] %v603
      %634 = vst [vmem:[%s540 + $0x10] sm:$0xff] %v604
      %635 = vst [vmem:[%s540 + $0x18] sm:$0xff] %v605
      %636 = vst [vmem:[%s540 + $0x20] sm:$0xff] %v606
      %637 = vst [vmem:[%s540 + $0x28] sm:$0xff] %v607
      %638 = vst [vmem:[%s540 + $0x30] sm:$0xff] %v608
      %639 = vst [vmem:[%s540 + $0x38] sm:$0xff] %v609
      %640 = vst [vmem:[%s540 + $0x40] sm:$0xff] %v610
      %641 = vst [vmem:[%s540 + $0x48] sm:$0xff] %v611
      %642 = vst [vmem:[%s540 + $0x50] sm:$0xff] %v612
      %643 = vst [vmem:[%s540 + $0x58] sm:$0xff] %v613
      %644 = vst [vmem:[%s540 + $0x60] sm:$0xff] %v614
      %645 = vst [vmem:[%s540 + $0x68] sm:$0xff] %v615
      %646 = vst [vmem:[%s540 + $0x70] sm:$0xff] %v616
      %647 = vst [vmem:[%s540 + $0x78] sm:$0xff] %v617
      %648 = vst [vmem:[%s540 + $0x80] sm:$0xff] %v618
      %649 = vst [vmem:[%s540 + $0x88] sm:$0xff] %v619
      %650 = vst [vmem:[%s540 + $0x90] sm:$0xff] %v620
      %651 = vst [vmem:[%s540 + $0x98] sm:$0xff] %v621
      %652 = vst [vmem:[%s540 + $0xa0] sm:$0xff] %v622
      %653 = vst [vmem:[%s540 + $0xa8] sm:$0xff] %v623
      %654 = vst [vmem:[%s540 + $0xb0] sm:$0xff] %v624
      %655 = vst [vmem:[%s540 + $0xb8] sm:$0xff] %v625
      %656 = vst [vmem:[%s540 + $0xc0] sm:$0xff] %v626
      %657 = vst [vmem:[%s540 + $0xc8] sm:$0xff] %v627
      %658 = vst [vmem:[%s540 + $0xd0] sm:$0xff] %v628
      %659 = vst [vmem:[%s540 + $0xd8] sm:$0xff] %v629
      %660 = vst [vmem:[%s540 + $0xe0] sm:$0xff] %v630
      %661 = vst [vmem:[%s540 + $0xe8] sm:$0xff] %v631
      %v662 = vld [vmem:[%s540] sm:$0xff]
      %v663 = vld [vmem:[%s540 + $0x8] sm:$0xff]
      %v664 = vld [vmem:[%s540 + $0x10] sm:$0xff]
      %v665 = vld [vmem:[%s540 + $0x18] sm:$0xff]
      %v666 = vld [vmem:[%s540 + $0x20] sm:$0xff]
      %v667 = vld [vmem:[%s540 + $0x28] sm:$0xff]
      %v668 = vld [vmem:[%s540 + $0x30] sm:$0xff]
      %v669 = vld [vmem:[%s540 + $0x38] sm:$0xff]
      %v670 = vld [vmem:[%s540 + $0x40] sm:$0xff]
      %v671 = vld [vmem:[%s540 + $0x48] sm:$0xff]
      %v672 = vld [vmem:[%s540 + $0x50] sm:$0xff]
      %v673 = vld [vmem:[%s540 + $0x58] sm:$0xff]
      %v674 = vld [vmem:[%s540 + $0x60] sm:$0xff]
      %v675 = vld [vmem:[%s540 + $0x68] sm:$0xff]
      %v676 = vld [vmem:[%s540 + $0x70] sm:$0xff]
      %v677 = vld [vmem:[%s540 + $0x78] sm:$0xff]
      %v678 = vld [vmem:[%s540 + $0x80] sm:$0xff]
      %v679 = vld [vmem:[%s540 + $0x88] sm:$0xff]
      %v680 = vld [vmem:[%s540 + $0x90] sm:$0xff]
      %v681 = vld [vmem:[%s540 + $0x98] sm:$0xff]
      %v682 = vld [vmem:[%s540 + $0xa0] sm:$0xff]
      %v683 = vld [vmem:[%s540 + $0xa8] sm:$0xff]
      %v684 = vld [vmem:[%s540 + $0xb0] sm:$0xff]
      %v685 = vld [vmem:[%s540 + $0xb8] sm:$0xff]
      %v686 = vld [vmem:[%s540 + $0xc0] sm:$0xff]
      %v687 = vld [vmem:[%s540 + $0xc8] sm:$0xff]
      %v688 = vld [vmem:[%s540 + $0xd0] sm:$0xff]
      %v689 = vld [vmem:[%s540 + $0xd8] sm:$0xff]
      %v690 = vld [vmem:[%s540 + $0xe0] sm:$0xff]
      %v691 = vld [vmem:[%s540 + $0xe8] sm:$0xff]
      %v692 = vperm.slane %v297, 1
      %v693 = vmul.f32 %v265, %v692
      %v694 = vmul.f32 %v266, %v692
      %v695 = vmul.f32 %v267, %v692
      %v696 = vmul.f32 %v268, %v692
      %v697 = vmul.f32 %v269, %v692
      %v698 = vmul.f32 %v270, %v692
      %v699 = vmul.f32 %v271, %v692
      %v700 = vmul.f32 %v272, %v692
      %v701 = vmul.f32 %v273, %v692
      %v702 = vmul.f32 %v274, %v692
      %v703 = vmul.f32 %v275, %v692
      %v704 = vmul.f32 %v276, %v692
      %v705 = vmul.f32 %v277, %v692
      %v706 = vmul.f32 %v278, %v692
      %v707 = vmul.f32 %v279, %v692
      %v708 = vmul.f32 %v280, %v692
      %v709 = vmul.f32 %v281, %v692
      %v710 = vmul.f32 %v282, %v692
      %v711 = vmul.f32 %v283, %v692
      %v712 = vmul.f32 %v284, %v692
      %v713 = vmul.f32 %v285, %v692
      %v714 = vmul.f32 %v286, %v692
      %v715 = vmul.f32 %v287, %v692
      %v716 = vmul.f32 %v288, %v692
      %v717 = vmul.f32 %v289, %v692
      %v718 = vmul.f32 %v290, %v692
      %v719 = vmul.f32 %v291, %v692
      %v720 = vmul.f32 %v292, %v692
      %v721 = vmul.f32 %v293, %v692
      %v722 = vmul.f32 %v294, %v692
      %v723 = vadd.f32 %v662, %v693
      %v724 = vadd.f32 %v663, %v694
      %v725 = vadd.f32 %v664, %v695
      %v726 = vadd.f32 %v665, %v696
      %v727 = vadd.f32 %v666, %v697
      %v728 = vadd.f32 %v667, %v698
      %v729 = vadd.f32 %v668, %v699
      %v730 = vadd.f32 %v669, %v700
      %v731 = vadd.f32 %v670, %v701
      %v732 = vadd.f32 %v671, %v702
      %v733 = vadd.f32 %v672, %v703
      %v734 = vadd.f32 %v673, %v704
      %v735 = vadd.f32 %v674, %v705
      %v736 = vadd.f32 %v675, %v706
      %v737 = vadd.f32 %v676, %v707
      %v738 = vadd.f32 %v677, %v708
      %v739 = vadd.f32 %v678, %v709
      %v740 = vadd.f32 %v679, %v710
      %v741 = vadd.f32 %v680, %v711
      %v742 = vadd.f32 %v681, %v712
      %v743 = vadd.f32 %v682, %v713
      %v744 = vadd.f32 %v683, %v714
      %v745 = vadd.f32 %v684, %v715
      %v746 = vadd.f32 %v685, %v716
      %v747 = vadd.f32 %v686, %v717
      %v748 = vadd.f32 %v687, %v718
      %v749 = vadd.f32 %v688, %v719
      %v750 = vadd.f32 %v689, %v720
      %v751 = vadd.f32 %v690, %v721
      %v752 = vadd.f32 %v691, %v722
      %753 = vst [vmem:[%s540] sm:$0xff] %v723
      %754 = vst [vmem:[%s540 + $0x8] sm:$0xff] %v724
      %755 = vst [vmem:[%s540 + $0x10] sm:$0xff] %v725
      %756 = vst [vmem:[%s540 + $0x18] sm:$0xff] %v726
      %757 = vst [vmem:[%s540 + $0x20] sm:$0xff] %v727
      %758 = vst [vmem:[%s540 + $0x28] sm:$0xff] %v728
      %759 = vst [vmem:[%s540 + $0x30] sm:$0xff] %v729
      %760 = vst [vmem:[%s540 + $0x38] sm:$0xff] %v730
      %761 = vst [vmem:[%s540 + $0x40] sm:$0xff] %v731
      %762 = vst [vmem:[%s540 + $0x48] sm:$0xff] %v732
      %763 = vst [vmem:[%s540 + $0x50] sm:$0xff] %v733
      %764 = vst [vmem:[%s540 + $0x58] sm:$0xff] %v734
      %765 = vst [vmem:[%s540 + $0x60] sm:$0xff] %v735
      %766 = vst [vmem:[%s540 + $0x68] sm:$0xff] %v736
      %767 = vst [vmem:[%s540 + $0x70] sm:$0xff] %v737
      %768 = vst [vmem:[%s540 + $0x78] sm:$0xff] %v738
      %769 = vst [vmem:[%s540 + $0x80] sm:$0xff] %v739
      %770 = vst [vmem:[%s540 + $0x88] sm:$0xff] %v740
      %771 = vst [vmem:[%s540 + $0x90] sm:$0xff] %v741
      %772 = vst [vmem:[%s540 + $0x98] sm:$0xff] %v742
      %773 = vst [vmem:[%s540 + $0xa0] sm:$0xff] %v743
      %774 = vst [vmem:[%s540 + $0xa8] sm:$0xff] %v744
      %775 = vst [vmem:[%s540 + $0xb0] sm:$0xff] %v745
      %776 = vst [vmem:[%s540 + $0xb8] sm:$0xff] %v746
      %777 = vst [vmem:[%s540 + $0xc0] sm:$0xff] %v747
      %778 = vst [vmem:[%s540 + $0xc8] sm:$0xff] %v748
      %779 = vst [vmem:[%s540 + $0xd0] sm:$0xff] %v749
      %780 = vst [vmem:[%s540 + $0xd8] sm:$0xff] %v750
      %781 = vst [vmem:[%s540 + $0xe0] sm:$0xff] %v751
      %782 = vst [vmem:[%s540 + $0xe8] sm:$0xff] %v752
      %v783 = vld [vmem:[%s540] sm:$0xff]
      %v784 = vld [vmem:[%s540 + $0x8] sm:$0xff]
      %v785 = vld [vmem:[%s540 + $0x10] sm:$0xff]
      %v786 = vld [vmem:[%s540 + $0x18] sm:$0xff]
      %v787 = vld [vmem:[%s540 + $0x20] sm:$0xff]
      %v788 = vld [vmem:[%s540 + $0x28] sm:$0xff]
      %v789 = vld [vmem:[%s540 + $0x30] sm:$0xff]
      %v790 = vld [vmem:[%s540 + $0x38] sm:$0xff]
      %v791 = vld [vmem:[%s540 + $0x40] sm:$0xff]
      %v792 = vld [vmem:[%s540 + $0x48] sm:$0xff]
      %v793 = vld [vmem:[%s540 + $0x50] sm:$0xff]
      %v794 = vld [vmem:[%s540 + $0x58] sm:$0xff]
      %v795 = vld [vmem:[%s540 + $0x60] sm:$0xff]
      %v796 = vld [vmem:[%s540 + $0x68] sm:$0xff]
      %v797 = vld [vmem:[%s540 + $0x70] sm:$0xff]
      %v798 = vld [vmem:[%s540 + $0x78] sm:$0xff]
      %v799 = vld [vmem:[%s540 + $0x80] sm:$0xff]
      %v800 = vld [vmem:[%s540 + $0x88] sm:$0xff]
      %v801 = vld [vmem:[%s540 + $0x90] sm:$0xff]
      %v802 = vld [vmem:[%s540 + $0x98] sm:$0xff]
      %v803 = vld [vmem:[%s540 + $0xa0] sm:$0xff]
      %v804 = vld [vmem:[%s540 + $0xa8] sm:$0xff]
      %v805 = vld [vmem:[%s540 + $0xb0] sm:$0xff]
      %v806 = vld [vmem:[%s540 + $0xb8] sm:$0xff]
      %v807 = vld [vmem:[%s540 + $0xc0] sm:$0xff]
      %v808 = vld [vmem:[%s540 + $0xc8] sm:$0xff]
      %v809 = vld [vmem:[%s540 + $0xd0] sm:$0xff]
      %v810 = vld [vmem:[%s540 + $0xd8] sm:$0xff]
      %v811 = vld [vmem:[%s540 + $0xe0] sm:$0xff]
      %v812 = vld [vmem:[%s540 + $0xe8] sm:$0xff]
      %v813 = vperm.slane %v297, 2
      %v814 = vmul.f32 %v476, %v813
      %v815 = vmul.f32 %v477, %v813
      %v816 = vmul.f32 %v478, %v813
      %v817 = vmul.f32 %v479, %v813
      %v818 = vmul.f32 %v480, %v813
      %v819 = vmul.f32 %v481, %v813
      %v820 = vmul.f32 %v482, %v813
      %v821 = vmul.f32 %v483, %v813
      %v822 = vmul.f32 %v484, %v813
      %v823 = vmul.f32 %v485, %v813
      %v824 = vmul.f32 %v486, %v813
      %v825 = vmul.f32 %v487, %v813
      %v826 = vmul.f32 %v488, %v813
      %v827 = vmul.f32 %v489, %v813
      %v828 = vmul.f32 %v490, %v813
      %v829 = vmul.f32 %v491, %v813
      %v830 = vmul.f32 %v492, %v813
      %v831 = vmul.f32 %v493, %v813
      %v832 = vmul.f32 %v494, %v813
      %v833 = vmul.f32 %v495, %v813
      %v834 = vmul.f32 %v496, %v813
      %v835 = vmul.f32 %v497, %v813
      %v836 = vmul.f32 %v498, %v813
      %v837 = vmul.f32 %v499, %v813
      %v838 = vmul.f32 %v500, %v813
      %v839 = vmul.f32 %v501, %v813
      %v840 = vmul.f32 %v502, %v813
      %v841 = vmul.f32 %v503, %v813
      %v842 = vmul.f32 %v504, %v813
      %v843 = vmul.f32 %v505, %v813
      %v844 = vadd.f32 %v783, %v814
      %v845 = vadd.f32 %v784, %v815
      %v846 = vadd.f32 %v785, %v816
      %v847 = vadd.f32 %v786, %v817
      %v848 = vadd.f32 %v787, %v818
      %v849 = vadd.f32 %v788, %v819
      %v850 = vadd.f32 %v789, %v820
      %v851 = vadd.f32 %v790, %v821
      %v852 = vadd.f32 %v791, %v822
      %v853 = vadd.f32 %v792, %v823
      %v854 = vadd.f32 %v793, %v824
      %v855 = vadd.f32 %v794, %v825
      %v856 = vadd.f32 %v795, %v826
      %v857 = vadd.f32 %v796, %v827
      %v858 = vadd.f32 %v797, %v828
      %v859 = vadd.f32 %v798, %v829
      %v860 = vadd.f32 %v799, %v830
      %v861 = vadd.f32 %v800, %v831
      %v862 = vadd.f32 %v801, %v832
      %v863 = vadd.f32 %v802, %v833
      %v864 = vadd.f32 %v803, %v834
      %v865 = vadd.f32 %v804, %v835
      %v866 = vadd.f32 %v805, %v836
      %v867 = vadd.f32 %v806, %v837
      %v868 = vadd.f32 %v807, %v838
      %v869 = vadd.f32 %v808, %v839
      %v870 = vadd.f32 %v809, %v840
      %v871 = vadd.f32 %v810, %v841
      %v872 = vadd.f32 %v811, %v842
      %v873 = vadd.f32 %v812, %v843
      %874 = vst [vmem:[%s540] sm:$0xff] %v844
      %875 = vst [vmem:[%s540 + $0x8] sm:$0xff] %v845
      %876 = vst [vmem:[%s540 + $0x10] sm:$0xff] %v846
      %877 = vst [vmem:[%s540 + $0x18] sm:$0xff] %v847
      %878 = vst [vmem:[%s540 + $0x20] sm:$0xff] %v848
      %879 = vst [vmem:[%s540 + $0x28] sm:$0xff] %v849
      %880 = vst [vmem:[%s540 + $0x30] sm:$0xff] %v850
      %881 = vst [vmem:[%s540 + $0x38] sm:$0xff] %v851
      %882 = vst [vmem:[%s540 + $0x40] sm:$0xff] %v852
      %883 = vst [vmem:[%s540 + $0x48] sm:$0xff] %v853
      %884 = vst [vmem:[%s540 + $0x50] sm:$0xff] %v854
      %885 = vst [vmem:[%s540 + $0x58] sm:$0xff] %v855
      %886 = vst [vmem:[%s540 + $0x60] sm:$0xff] %v856
      %887 = vst [vmem:[%s540 + $0x68] sm:$0xff] %v857
      %888 = vst [vmem:[%s540 + $0x70] sm:$0xff] %v858
      %889 = vst [vmem:[%s540 + $0x78] sm:$0xff] %v859
      %890 = vst [vmem:[%s540 + $0x80] sm:$0xff] %v860
      %891 = vst [vmem:[%s540 + $0x88] sm:$0xff] %v861
      %892 = vst [vmem:[%s540 + $0x90] sm:$0xff] %v862
      %893 = vst [vmem:[%s540 + $0x98] sm:$0xff] %v863
      %894 = vst [vmem:[%s540 + $0xa0] sm:$0xff] %v864
      %895 = vst [vmem:[%s540 + $0xa8] sm:$0xff] %v865
      %896 = vst [vmem:[%s540 + $0xb0] sm:$0xff] %v866
      %897 = vst [vmem:[%s540 + $0xb8] sm:$0xff] %v867
      %898 = vst [vmem:[%s540 + $0xc0] sm:$0xff] %v868
      %899 = vst [vmem:[%s540 + $0xc8] sm:$0xff] %v869
      %900 = vst [vmem:[%s540 + $0xd0] sm:$0xff] %v870
      %901 = vst [vmem:[%s540 + $0xd8] sm:$0xff] %v871
      %902 = vst [vmem:[%s540 + $0xe0] sm:$0xff] %v872
      %903 = vst [vmem:[%s540 + $0xe8] sm:$0xff] %v873
      %v904 = vld [vmem:[#allocation2] sm:$0xff]
      %v905 = vld [vmem:[#allocation2 + $0x8] sm:$0xff]
      %v906 = vld [vmem:[#allocation2 + $0x10] sm:$0xff]
      %v907 = vld [vmem:[#allocation2 + $0x18] sm:$0xff]
      %v908 = vld [vmem:[#allocation2 + $0x20] sm:$0xff]
      %v909 = vld [vmem:[#allocation2 + $0x28] sm:$0xff]
      %v910 = vld [vmem:[#allocation2 + $0x30] sm:$0xff]
      %v911 = vld [vmem:[#allocation2 + $0x38] sm:$0xff]
      %v912 = vld [vmem:[#allocation2 + $0x40] sm:$0xff]
      %v913 = vld [vmem:[#allocation2 + $0x48] sm:$0xff]
      %v914 = vld [vmem:[#allocation2 + $0x50] sm:$0xff]
      %v915 = vld [vmem:[#allocation2 + $0x58] sm:$0xff]
      %v916 = vld [vmem:[#allocation2 + $0x60] sm:$0xff]
      %v917 = vld [vmem:[#allocation2 + $0x68] sm:$0xff]
      %v918 = vld [vmem:[#allocation2 + $0x70] sm:$0xff]
      %v919 = vld [vmem:[#allocation2 + $0x78] sm:$0xff]
      %v920 = vld [vmem:[#allocation2 + $0x80] sm:$0xff]
      %v921 = vld [vmem:[#allocation2 + $0x88] sm:$0xff]
      %v922 = vld [vmem:[#allocation2 + $0x90] sm:$0xff]
      %v923 = vld [vmem:[#allocation2 + $0x98] sm:$0xff]
      %v924 = vld [vmem:[#allocation2 + $0xa0] sm:$0xff]
      %v925 = vld [vmem:[#allocation2 + $0xa8] sm:$0xff]
      %v926 = vld [vmem:[#allocation2 + $0xb0] sm:$0xff]
      %v927 = vld [vmem:[#allocation2 + $0xb8] sm:$0xff]
      %v928 = vld [vmem:[#allocation2 + $0xc0] sm:$0xff]
      %v929 = vld [vmem:[#allocation2 + $0xc8] sm:$0xff]
      %v930 = vld [vmem:[#allocation2 + $0xd0] sm:$0xff]
      %v931 = vld [vmem:[#allocation2 + $0xd8] sm:$0xff]
      %v932 = vld [vmem:[#allocation2 + $0xe0] sm:$0xff]
      %v933 = vld [vmem:[#allocation2 + $0xe8] sm:$0xff]
      %v934 = vld [vmem:[#allocation2 + $0xf0] sm:$0xff]
      %v935 = vld [vmem:[#allocation2 + $0xf8] sm:$0xff]
      %v936 = vperm.slane %v297, 3
      %v937 = vmul.f32 %v373, %v936
      %v938 = vmul.f32 %v374, %v936
      %v939 = vmul.f32 %v375, %v936
      %v940 = vmul.f32 %v376, %v936
      %v941 = vmul.f32 %v377, %v936
      %v942 = vmul.f32 %v378, %v936
      %v943 = vmul.f32 %v379, %v936
      %v944 = vmul.f32 %v380, %v936
      %v945 = vmul.f32 %v381, %v936
      %v946 = vmul.f32 %v382, %v936
      %v947 = vmul.f32 %v383, %v936
      %v948 = vmul.f32 %v384, %v936
      %v949 = vmul.f32 %v385, %v936
      %v950 = vmul.f32 %v386, %v936
      %v951 = vmul.f32 %v387, %v936
      %v952 = vmul.f32 %v388, %v936
      %v953 = vmul.f32 %v389, %v936
      %v954 = vmul.f32 %v390, %v936
      %v955 = vmul.f32 %v391, %v936
      %v956 = vmul.f32 %v392, %v936
      %v957 = vmul.f32 %v393, %v936
      %v958 = vmul.f32 %v394, %v936
      %v959 = vmul.f32 %v395, %v936
      %v960 = vmul.f32 %v396, %v936
      %v961 = vmul.f32 %v397, %v936
      %v962 = vmul.f32 %v398, %v936
      %v963 = vmul.f32 %v399, %v936
      %v964 = vmul.f32 %v400, %v936
      %v965 = vmul.f32 %v401, %v936
      %v966 = vmul.f32 %v402, %v936
      %v967 = vmul.f32 %v403, %v936
      %v968 = vmul.f32 %v404, %v936
      %v969 = vadd.f32 %v904, %v937
      %v970 = vadd.f32 %v905, %v938
      %v971 = vadd.f32 %v906, %v939
      %v972 = vadd.f32 %v907, %v940
      %v973 = vadd.f32 %v908, %v941
      %v974 = vadd.f32 %v909, %v942
      %v975 = vadd.f32 %v910, %v943
      %v976 = vadd.f32 %v911, %v944
      %v977 = vadd.f32 %v912, %v945
      %v978 = vadd.f32 %v913, %v946
      %v979 = vadd.f32 %v914, %v947
      %v980 = vadd.f32 %v915, %v948
      %v981 = vadd.f32 %v916, %v949
      %v982 = vadd.f32 %v917, %v950
      %v983 = vadd.f32 %v918, %v951
      %v984 = vadd.f32 %v919, %v952
      %v985 = vadd.f32 %v920, %v953
      %v986 = vadd.f32 %v921, %v954
      %v987 = vadd.f32 %v922, %v955
      %v988 = vadd.f32 %v923, %v956
      %v989 = vadd.f32 %v924, %v957
      %v990 = vadd.f32 %v925, %v958
      %v991 = vadd.f32 %v926, %v959
      %v992 = vadd.f32 %v927, %v960
      %v993 = vadd.f32 %v928, %v961
      %v994 = vadd.f32 %v929, %v962
      %v995 = vadd.f32 %v930, %v963
      %v996 = vadd.f32 %v931, %v964
      %v997 = vadd.f32 %v932, %v965
      %v998 = vadd.f32 %v933, %v966
      %v999 = vadd.f32 %v934, %v967
      %v1000 = vadd.f32 %v935, %v968
      %1001 = vst [vmem:[#allocation2] sm:$0xff] %v969
      %1002 = vst [vmem:[#allocation2 + $0x8] sm:$0xff] %v970
      %1003 = vst [vmem:[#allocation2 + $0x10] sm:$0xff] %v971
      %1004 = vst [vmem:[#allocation2 + $0x18] sm:$0xff] %v972
      %1005 = vst [vmem:[#allocation2 + $0x20] sm:$0xff] %v973
      %1006 = vst [vmem:[#allocation2 + $0x28] sm:$0xff] %v974
      %1007 = vst [vmem:[#allocation2 + $0x30] sm:$0xff] %v975
      %1008 = vst [vmem:[#allocation2 + $0x38] sm:$0xff] %v976
      %1009 = vst [vmem:[#allocation2 + $0x40] sm:$0xff] %v977
      %1010 = vst [vmem:[#allocation2 + $0x48] sm:$0xff] %v978
      %1011 = vst [vmem:[#allocation2 + $0x50] sm:$0xff] %v979
      %1012 = vst [vmem:[#allocation2 + $0x58] sm:$0xff] %v980
      %1013 = vst [vmem:[#allocation2 + $0x60] sm:$0xff] %v981
      %1014 = vst [vmem:[#allocation2 + $0x68] sm:$0xff] %v982
      %1015 = vst [vmem:[#allocation2 + $0x70] sm:$0xff] %v983
      %1016 = vst [vmem:[#allocation2 + $0x78] sm:$0xff] %v984
      %1017 = vst [vmem:[#allocation2 + $0x80] sm:$0xff] %v985
      %1018 = vst [vmem:[#allocation2 + $0x88] sm:$0xff] %v986
      %1019 = vst [vmem:[#allocation2 + $0x90] sm:$0xff] %v987
      %1020 = vst [vmem:[#allocation2 + $0x98] sm:$0xff] %v988
      %1021 = vst [vmem:[#allocation2 + $0xa0] sm:$0xff] %v989
      %1022 = vst [vmem:[#allocation2 + $0xa8] sm:$0xff] %v990
      %1023 = vst [vmem:[#allocation2 + $0xb0] sm:$0xff] %v991
      %1024 = vst [vmem:[#allocation2 + $0xb8] sm:$0xff] %v992
      %1025 = vst [vmem:[#allocation2 + $0xc0] sm:$0xff] %v993
      %1026 = vst [vmem:[#allocation2 + $0xc8] sm:$0xff] %v994
      %1027 = vst [vmem:[#allocation2 + $0xd0] sm:$0xff] %v995
      %1028 = vst [vmem:[#allocation2 + $0xd8] sm:$0xff] %v996
      %1029 = vst [vmem:[#allocation2 + $0xe0] sm:$0xff] %v997
      %1030 = vst [vmem:[#allocation2 + $0xe8] sm:$0xff] %v998
      %1031 = vst [vmem:[#allocation2 + $0xf0] sm:$0xff] %v999
      %1032 = vst [vmem:[#allocation2 + $0xf8] sm:$0xff] %v1000
      %v1033 = vld [vmem:[#allocation2] sm:$0xff]
      %v1034 = vld [vmem:[#allocation2 + $0x8] sm:$0xff]
      %v1035 = vld [vmem:[#allocation2 + $0x10] sm:$0xff]
      %v1036 = vld [vmem:[#allocation2 + $0x18] sm:$0xff]
      %v1037 = vld [vmem:[#allocation2 + $0x20] sm:$0xff]
      %v1038 = vld [vmem:[#allocation2 + $0x28] sm:$0xff]
      %v1039 = vld [vmem:[#allocation2 + $0x30] sm:$0xff]
      %v1040 = vld [vmem:[#allocation2 + $0x38] sm:$0xff]
      %v1041 = vld [vmem:[#allocation2 + $0x40] sm:$0xff]
      %v1042 = vld [vmem:[#allocation2 + $0x48] sm:$0xff]
      %v1043 = vld [vmem:[#allocation2 + $0x50] sm:$0xff]
      %v1044 = vld [vmem:[#allocation2 + $0x58] sm:$0xff]
      %v1045 = vld [vmem:[#allocation2 + $0x60] sm:$0xff]
      %v1046 = vld [vmem:[#allocation2 + $0x68] sm:$0xff]
      %v1047 = vld [vmem:[#allocation2 + $0x70] sm:$0xff]
      %v1048 = vld [vmem:[#allocation2 + $0x78] sm:$0xff]
      %v1049 = vld [vmem:[#allocation2 + $0x80] sm:$0xff]
      %v1050 = vld [vmem:[#allocation2 + $0x88] sm:$0xff]
      %v1051 = vld [vmem:[#allocation2 + $0x90] sm:$0xff]
      %v1052 = vld [vmem:[#allocation2 + $0x98] sm:$0xff]
      %v1053 = vld [vmem:[#allocation2 + $0xa0] sm:$0xff]
      %v1054 = vld [vmem:[#allocation2 + $0xa8] sm:$0xff]
      %v1055 = vld [vmem:[#allocation2 + $0xb0] sm:$0xff]
      %v1056 = vld [vmem:[#allocation2 + $0xb8] sm:$0xff]
      %v1057 = vld [vmem:[#allocation2 + $0xc0] sm:$0xff]
      %v1058 = vld [vmem:[#allocation2 + $0xc8] sm:$0xff]
      %v1059 = vld [vmem:[#allocation2 + $0xd0] sm:$0xff]
      %v1060 = vld [vmem:[#allocation2 + $0xd8] sm:$0xff]
      %v1061 = vld [vmem:[#allocation2 + $0xe0] sm:$0xff]
      %v1062 = vld [vmem:[#allocation2 + $0xe8] sm:$0xff]
      %v1063 = vld [vmem:[#allocation2 + $0xf0] sm:$0xff]
      %v1064 = vld [vmem:[#allocation2 + $0xf8] sm:$0xff]
      %v1065 = vperm.slane %v297, 4
      %v1066 = vmul.f32 %v265, %v1065
      %v1067 = vmul.f32 %v266, %v1065
      %v1068 = vmul.f32 %v267, %v1065
      %v1069 = vmul.f32 %v268, %v1065
      %v1070 = vmul.f32 %v269, %v1065
      %v1071 = vmul.f32 %v270, %v1065
      %v1072 = vmul.f32 %v271, %v1065
      %v1073 = vmul.f32 %v272, %v1065
      %v1074 = vmul.f32 %v273, %v1065
      %v1075 = vmul.f32 %v274, %v1065
      %v1076 = vmul.f32 %v275, %v1065
      %v1077 = vmul.f32 %v276, %v1065
      %v1078 = vmul.f32 %v277, %v1065
      %v1079 = vmul.f32 %v278, %v1065
      %v1080 = vmul.f32 %v279, %v1065
      %v1081 = vmul.f32 %v280, %v1065
      %v1082 = vmul.f32 %v281, %v1065
      %v1083 = vmul.f32 %v282, %v1065
      %v1084 = vmul.f32 %v283, %v1065
      %v1085 = vmul.f32 %v284, %v1065
      %v1086 = vmul.f32 %v285, %v1065
      %v1087 = vmul.f32 %v286, %v1065
      %v1088 = vmul.f32 %v287, %v1065
      %v1089 = vmul.f32 %v288, %v1065
      %v1090 = vmul.f32 %v289, %v1065
      %v1091 = vmul.f32 %v290, %v1065
      %v1092 = vmul.f32 %v291, %v1065
      %v1093 = vmul.f32 %v292, %v1065
      %v1094 = vmul.f32 %v293, %v1065
      %v1095 = vmul.f32 %v294, %v1065
      %v1096 = vmul.f32 %v295, %v1065
      %v1097 = vmul.f32 %v296, %v1065
      %v1098 = vadd.f32 %v1033, %v1066
      %v1099 = vadd.f32 %v1034, %v1067
      %v1100 = vadd.f32 %v1035, %v1068
      %v1101 = vadd.f32 %v1036, %v1069
      %v1102 = vadd.f32 %v1037, %v1070
      %v1103 = vadd.f32 %v1038, %v1071
      %v1104 = vadd.f32 %v1039, %v1072
      %v1105 = vadd.f32 %v1040, %v1073
      %v1106 = vadd.f32 %v1041, %v1074
      %v1107 = vadd.f32 %v1042, %v1075
      %v1108 = vadd.f32 %v1043, %v1076
      %v1109 = vadd.f32 %v1044, %v1077
      %v1110 = vadd.f32 %v1045, %v1078
      %v1111 = vadd.f32 %v1046, %v1079
      %v1112 = vadd.f32 %v1047, %v1080
      %v1113 = vadd.f32 %v1048, %v1081
      %v1114 = vadd.f32 %v1049, %v1082
      %v1115 = vadd.f32 %v1050, %v1083
      %v1116 = vadd.f32 %v1051, %v1084
      %v1117 = vadd.f32 %v1052, %v1085
      %v1118 = vadd.f32 %v1053, %v1086
      %v1119 = vadd.f32 %v1054, %v1087
      %v1120 = vadd.f32 %v1055, %v1088
      %v1121 = vadd.f32 %v1056, %v1089
      %v1122 = vadd.f32 %v1057, %v1090
      %v1123 = vadd.f32 %v1058, %v1091
      %v1124 = vadd.f32 %v1059, %v1092
      %v1125 = vadd.f32 %v1060, %v1093
      %v1126 = vadd.f32 %v1061, %v1094
      %v1127 = vadd.f32 %v1062, %v1095
      %v1128 = vadd.f32 %v1063, %v1096
      %v1129 = vadd.f32 %v1064, %v1097
      %1130 = vst [vmem:[#allocation2] sm:$0xff] %v1098
      %1131 = vst [vmem:[#allocation2 + $0x8] sm:$0xff] %v1099
      %1132 = vst [vmem:[#allocation2 + $0x10] sm:$0xff] %v1100
      %1133 = vst [vmem:[#allocation2 + $0x18] sm:$0xff] %v1101
      %1134 = vst [vmem:[#allocation2 + $0x20] sm:$0xff] %v1102
      %1135 = vst [vmem:[#allocation2 + $0x28] sm:$0xff] %v1103
      %1136 = vst [vmem:[#allocation2 + $0x30] sm:$0xff] %v1104
      %1137 = vst [vmem:[#allocation2 + $0x38] sm:$0xff] %v1105
      %1138 = vst [vmem:[#allocation2 + $0x40] sm:$0xff] %v1106
      %1139 = vst [vmem:[#allocation2 + $0x48] sm:$0xff] %v1107
      %1140 = vst [vmem:[#allocation2 + $0x50] sm:$0xff] %v1108
      %1141 = vst [vmem:[#allocation2 + $0x58] sm:$0xff] %v1109
      %1142 = vst [vmem:[#allocation2 + $0x60] sm:$0xff] %v1110
      %1143 = vst [vmem:[#allocation2 + $0x68] sm:$0xff] %v1111
      %1144 = vst [vmem:[#allocation2 + $0x70] sm:$0xff] %v1112
      %1145 = vst [vmem:[#allocation2 + $0x78] sm:$0xff] %v1113
      %1146 = vst [vmem:[#allocation2 + $0x80] sm:$0xff] %v1114
      %1147 = vst [vmem:[#allocation2 + $0x88] sm:$0xff] %v1115
      %1148 = vst [vmem:[#allocation2 + $0x90] sm:$0xff] %v1116
      %1149 = vst [vmem:[#allocation2 + $0x98] sm:$0xff] %v1117
      %1150 = vst [vmem:[#allocation2 + $0xa0] sm:$0xff] %v1118
      %1151 = vst [vmem:[#allocation2 + $0xa8] sm:$0xff] %v1119
      %1152 = vst [vmem:[#allocation2 + $0xb0] sm:$0xff] %v1120
      %1153 = vst [vmem:[#allocation2 + $0xb8] sm:$0xff] %v1121
      %1154 = vst [vmem:[#allocation2 + $0xc0] sm:$0xff] %v1122
      %1155 = vst [vmem:[#allocation2 + $0xc8] sm:$0xff] %v1123
      %1156 = vst [vmem:[#allocation2 + $0xd0] sm:$0xff] %v1124
      %1157 = vst [vmem:[#allocation2 + $0xd8] sm:$0xff] %v1125
      %1158 = vst [vmem:[#allocation2 + $0xe0] sm:$0xff] %v1126
      %1159 = vst [vmem:[#allocation2 + $0xe8] sm:$0xff] %v1127
      %1160 = vst [vmem:[#allocation2 + $0xf0] sm:$0xff] %v1128
      %1161 = vst [vmem:[#allocation2 + $0xf8] sm:$0xff] %v1129
      %v1162 = vld [vmem:[#allocation2] sm:$0xff]
      %v1163 = vld [vmem:[#allocation2 + $0x8] sm:$0xff]
      %v1164 = vld [vmem:[#allocation2 + $0x10] sm:$0xff]
      %v1165 = vld [vmem:[#allocation2 + $0x18] sm:$0xff]
      %v1166 = vld [vmem:[#allocation2 + $0x20] sm:$0xff]
      %v1167 = vld [vmem:[#allocation2 + $0x28] sm:$0xff]
      %v1168 = vld [vmem:[#allocation2 + $0x30] sm:$0xff]
      %v1169 = vld [vmem:[#allocation2 + $0x38] sm:$0xff]
      %v1170 = vld [vmem:[#allocation2 + $0x40] sm:$0xff]
      %v1171 = vld [vmem:[#allocation2 + $0x48] sm:$0xff]
      %v1172 = vld [vmem:[#allocation2 + $0x50] sm:$0xff]
      %v1173 = vld [vmem:[#allocation2 + $0x58] sm:$0xff]
      %v1174 = vld [vmem:[#allocation2 + $0x60] sm:$0xff]
      %v1175 = vld [vmem:[#allocation2 + $0x68] sm:$0xff]
      %v1176 = vld [vmem:[#allocation2 + $0x70] sm:$0xff]
      %v1177 = vld [vmem:[#allocation2 + $0x78] sm:$0xff]
      %v1178 = vld [vmem:[#allocation2 + $0x80] sm:$0xff]
      %v1179 = vld [vmem:[#allocation2 + $0x88] sm:$0xff]
      %v1180 = vld [vmem:[#allocation2 + $0x90] sm:$0xff]
      %v1181 = vld [vmem:[#allocation2 + $0x98] sm:$0xff]
      %v1182 = vld [vmem:[#allocation2 + $0xa0] sm:$0xff]
      %v1183 = vld [vmem:[#allocation2 + $0xa8] sm:$0xff]
      %v1184 = vld [vmem:[#allocation2 + $0xb0] sm:$0xff]
      %v1185 = vld [vmem:[#allocation2 + $0xb8] sm:$0xff]
      %v1186 = vld [vmem:[#allocation2 + $0xc0] sm:$0xff]
      %v1187 = vld [vmem:[#allocation2 + $0xc8] sm:$0xff]
      %v1188 = vld [vmem:[#allocation2 + $0xd0] sm:$0xff]
      %v1189 = vld [vmem:[#allocation2 + $0xd8] sm:$0xff]
      %v1190 = vld [vmem:[#allocation2 + $0xe0] sm:$0xff]
      %v1191 = vld [vmem:[#allocation2 + $0xe8] sm:$0xff]
      %v1192 = vld [vmem:[#allocation2 + $0xf0] sm:$0xff]
      %v1193 = vld [vmem:[#allocation2 + $0xf8] sm:$0xff]
      %v1194 = vperm.slane %v297, 5
      %v1195 = vmul.f32 %v476, %v1194
      %v1196 = vmul.f32 %v477, %v1194
      %v1197 = vmul.f32 %v478, %v1194
      %v1198 = vmul.f32 %v479, %v1194
      %v1199 = vmul.f32 %v480, %v1194
      %v1200 = vmul.f32 %v481, %v1194
      %v1201 = vmul.f32 %v482, %v1194
      %v1202 = vmul.f32 %v483, %v1194
      %v1203 = vmul.f32 %v484, %v1194
      %v1204 = vmul.f32 %v485, %v1194
      %v1205 = vmul.f32 %v486, %v1194
      %v1206 = vmul.f32 %v487, %v1194
      %v1207 = vmul.f32 %v488, %v1194
      %v1208 = vmul.f32 %v489, %v1194
      %v1209 = vmul.f32 %v490, %v1194
      %v1210 = vmul.f32 %v491, %v1194
      %v1211 = vmul.f32 %v492, %v1194
      %v1212 = vmul.f32 %v493, %v1194
      %v1213 = vmul.f32 %v494, %v1194
      %v1214 = vmul.f32 %v495, %v1194
      %v1215 = vmul.f32 %v496, %v1194
      %v1216 = vmul.f32 %v497, %v1194
      %v1217 = vmul.f32 %v498, %v1194
      %v1218 = vmul.f32 %v499, %v1194
      %v1219 = vmul.f32 %v500, %v1194
      %v1220 = vmul.f32 %v501, %v1194
      %v1221 = vmul.f32 %v502, %v1194
      %v1222 = vmul.f32 %v503, %v1194
      %v1223 = vmul.f32 %v504, %v1194
      %v1224 = vmul.f32 %v505, %v1194
      %v1225 = vmul.f32 %v506, %v1194
      %v1226 = vmul.f32 %v507, %v1194
      %v1227 = vadd.f32 %v1162, %v1195
      %v1228 = vadd.f32 %v1163, %v1196
      %v1229 = vadd.f32 %v1164, %v1197
      %v1230 = vadd.f32 %v1165, %v1198
      %v1231 = vadd.f32 %v1166, %v1199
      %v1232 = vadd.f32 %v1167, %v1200
      %v1233 = vadd.f32 %v1168, %v1201
      %v1234 = vadd.f32 %v1169, %v1202
      %v1235 = vadd.f32 %v1170, %v1203
      %v1236 = vadd.f32 %v1171, %v1204
      %v1237 = vadd.f32 %v1172, %v1205
      %v1238 = vadd.f32 %v1173, %v1206
      %v1239 = vadd.f32 %v1174, %v1207
      %v1240 = vadd.f32 %v1175, %v1208
      %v1241 = vadd.f32 %v1176, %v1209
      %v1242 = vadd.f32 %v1177, %v1210
      %v1243 = vadd.f32 %v1178, %v1211
      %v1244 = vadd.f32 %v1179, %v1212
      %v1245 = vadd.f32 %v1180, %v1213
      %v1246 = vadd.f32 %v1181, %v1214
      %v1247 = vadd.f32 %v1182, %v1215
      %v1248 = vadd.f32 %v1183, %v1216
      %v1249 = vadd.f32 %v1184, %v1217
      %v1250 = vadd.f32 %v1185, %v1218
      %v1251 = vadd.f32 %v1186, %v1219
      %v1252 = vadd.f32 %v1187, %v1220
      %v1253 = vadd.f32 %v1188, %v1221
      %v1254 = vadd.f32 %v1189, %v1222
      %v1255 = vadd.f32 %v1190, %v1223
      %v1256 = vadd.f32 %v1191, %v1224
      %v1257 = vadd.f32 %v1192, %v1225
      %v1258 = vadd.f32 %v1193, %v1226
      %1259 = vst [vmem:[#allocation2] sm:$0xff] %v1227
      %1260 = vst [vmem:[#allocation2 + $0x8] sm:$0xff] %v1228
      %1261 = vst [vmem:[#allocation2 + $0x10] sm:$0xff] %v1229
      %1262 = vst [vmem:[#allocation2 + $0x18] sm:$0xff] %v1230
      %1263 = vst [vmem:[#allocation2 + $0x20] sm:$0xff] %v1231
      %1264 = vst [vmem:[#allocation2 + $0x28] sm:$0xff] %v1232
      %1265 = vst [vmem:[#allocation2 + $0x30] sm:$0xff] %v1233
      %1266 = vst [vmem:[#allocation2 + $0x38] sm:$0xff] %v1234
      %1267 = vst [vmem:[#allocation2 + $0x40] sm:$0xff] %v1235
      %1268 = vst [vmem:[#allocation2 + $0x48] sm:$0xff] %v1236
      %1269 = vst [vmem:[#allocation2 + $0x50] sm:$0xff] %v1237
      %1270 = vst [vmem:[#allocation2 + $0x58] sm:$0xff] %v1238
      %1271 = vst [vmem:[#allocation2 + $0x60] sm:$0xff] %v1239
      %1272 = vst [vmem:[#allocation2 + $0x68] sm:$0xff] %v1240
      %1273 = vst [vmem:[#allocation2 + $0x70] sm:$0xff] %v1241
      %1274 = vst [vmem:[#allocation2 + $0x78] sm:$0xff] %v1242
      %1275 = vst [vmem:[#allocation2 + $0x80] sm:$0xff] %v1243
      %1276 = vst [vmem:[#allocation2 + $0x88] sm:$0xff] %v1244
      %1277 = vst [vmem:[#allocation2 + $0x90] sm:$0xff] %v1245
      %1278 = vst [vmem:[#allocation2 + $0x98] sm:$0xff] %v1246
      %1279 = vst [vmem:[#allocation2 + $0xa0] sm:$0xff] %v1247
      %1280 = vst [vmem:[#allocation2 + $0xa8] sm:$0xff] %v1248
      %1281 = vst [vmem:[#allocation2 + $0xb0] sm:$0xff] %v1249
      %1282 = vst [vmem:[#allocation2 + $0xb8] sm:$0xff] %v1250
      %1283 = vst [vmem:[#allocation2 + $0xc0] sm:$0xff] %v1251
      %1284 = vst [vmem:[#allocation2 + $0xc8] sm:$0xff] %v1252
      %1285 = vst [vmem:[#allocation2 + $0xd0] sm:$0xff] %v1253
      %1286 = vst [vmem:[#allocation2 + $0xd8] sm:$0xff] %v1254
      %1287 = vst [vmem:[#allocation2 + $0xe0] sm:$0xff] %v1255
      %1288 = vst [vmem:[#allocation2 + $0xe8] sm:$0xff] %v1256
      %1289 = vst [vmem:[#allocation2 + $0xf0] sm:$0xff] %v1257
      %1290 = vst [vmem:[#allocation2 + $0xf8] sm:$0xff] %v1258
      %v1291 = vld [vmem:[#allocation2] sm:$0xff]
      %v1292 = vld [vmem:[#allocation2 + $0x8] sm:$0xff]
      %v1293 = vld [vmem:[#allocation2 + $0x10] sm:$0xff]
      %v1294 = vld [vmem:[#allocation2 + $0x18] sm:$0xff]
      %v1295 = vld [vmem:[#allocation2 + $0x20] sm:$0xff]
      %v1296 = vld [vmem:[#allocation2 + $0x28] sm:$0xff]
      %v1297 = vld [vmem:[#allocation2 + $0x30] sm:$0xff]
      %v1298 = vld [vmem:[#allocation2 + $0x38] sm:$0xff]
      %v1299 = vld [vmem:[#allocation2 + $0x40] sm:$0xff]
      %v1300 = vld [vmem:[#allocation2 + $0x48] sm:$0xff]
      %v1301 = vld [vmem:[#allocation2 + $0x50] sm:$0xff]
      %v1302 = vld [vmem:[#allocation2 + $0x58] sm:$0xff]
      %v1303 = vld [vmem:[#allocation2 + $0x60] sm:$0xff]
      %v1304 = vld [vmem:[#allocation2 + $0x68] sm:$0xff]
      %v1305 = vld [vmem:[#allocation2 + $0x70] sm:$0xff]
      %v1306 = vld [vmem:[#allocation2 + $0x78] sm:$0xff]
      %v1307 = vld [vmem:[#allocation2 + $0x80] sm:$0xff]
      %v1308 = vld [vmem:[#allocation2 + $0x88] sm:$0xff]
      %v1309 = vld [vmem:[#allocation2 + $0x90] sm:$0xff]
      %v1310 = vld [vmem:[#allocation2 + $0x98] sm:$0xff]
      %v1311 = vld [vmem:[#allocation2 + $0xa0] sm:$0xff]
      %v1312 = vld [vmem:[#allocation2 + $0xa8] sm:$0xff]
      %v1313 = vld [vmem:[#allocation2 + $0xb0] sm:$0xff]
      %v1314 = vld [vmem:[#allocation2 + $0xb8] sm:$0xff]
      %v1315 = vld [vmem:[#allocation2 + $0xc0] sm:$0xff]
      %v1316 = vld [vmem:[#allocation2 + $0xc8] sm:$0xff]
      %v1317 = vld [vmem:[#allocation2 + $0xd0] sm:$0xff]
      %v1318 = vld [vmem:[#allocation2 + $0xd8] sm:$0xff]
      %v1319 = vld [vmem:[#allocation2 + $0xe0] sm:$0xff]
      %v1320 = vld [vmem:[#allocation2 + $0xe8] sm:$0xff]
      %v1321 = vperm.slane %v297, 6
      %v1322 = vmul.f32 %v375, %v1321
      %v1323 = vmul.f32 %v376, %v1321
      %v1324 = vmul.f32 %v377, %v1321
      %v1325 = vmul.f32 %v378, %v1321
      %v1326 = vmul.f32 %v379, %v1321
      %v1327 = vmul.f32 %v380, %v1321
      %v1328 = vmul.f32 %v381, %v1321
      %v1329 = vmul.f32 %v382, %v1321
      %v1330 = vmul.f32 %v383, %v1321
      %v1331 = vmul.f32 %v384, %v1321
      %v1332 = vmul.f32 %v385, %v1321
      %v1333 = vmul.f32 %v386, %v1321
      %v1334 = vmul.f32 %v387, %v1321
      %v1335 = vmul.f32 %v388, %v1321
      %v1336 = vmul.f32 %v389, %v1321
      %v1337 = vmul.f32 %v390, %v1321
      %v1338 = vmul.f32 %v391, %v1321
      %v1339 = vmul.f32 %v392, %v1321
      %v1340 = vmul.f32 %v393, %v1321
      %v1341 = vmul.f32 %v394, %v1321
      %v1342 = vmul.f32 %v395, %v1321
      %v1343 = vmul.f32 %v396, %v1321
      %v1344 = vmul.f32 %v397, %v1321
      %v1345 = vmul.f32 %v398, %v1321
      %v1346 = vmul.f32 %v399, %v1321
      %v1347 = vmul.f32 %v400, %v1321
      %v1348 = vmul.f32 %v401, %v1321
      %v1349 = vmul.f32 %v402, %v1321
      %v1350 = vmul.f32 %v403, %v1321
      %v1351 = vmul.f32 %v404, %v1321
      %v1352 = vadd.f32 %v1291, %v1322
      %v1353 = vadd.f32 %v1292, %v1323
      %v1354 = vadd.f32 %v1293, %v1324
      %v1355 = vadd.f32 %v1294, %v1325
      %v1356 = vadd.f32 %v1295, %v1326
      %v1357 = vadd.f32 %v1296, %v1327
      %v1358 = vadd.f32 %v1297, %v1328
      %v1359 = vadd.f32 %v1298, %v1329
      %v1360 = vadd.f32 %v1299, %v1330
      %v1361 = vadd.f32 %v1300, %v1331
      %v1362 = vadd.f32 %v1301, %v1332
      %v1363 = vadd.f32 %v1302, %v1333
      %v1364 = vadd.f32 %v1303, %v1334
      %v1365 = vadd.f32 %v1304, %v1335
      %v1366 = vadd.f32 %v1305, %v1336
      %v1367 = vadd.f32 %v1306, %v1337
      %v1368 = vadd.f32 %v1307, %v1338
      %v1369 = vadd.f32 %v1308, %v1339
      %v1370 = vadd.f32 %v1309, %v1340
      %v1371 = vadd.f32 %v1310, %v1341
      %v1372 = vadd.f32 %v1311, %v1342
      %v1373 = vadd.f32 %v1312, %v1343
      %v1374 = vadd.f32 %v1313, %v1344
      %v1375 = vadd.f32 %v1314, %v1345
      %v1376 = vadd.f32 %v1315, %v1346
      %v1377 = vadd.f32 %v1316, %v1347
      %v1378 = vadd.f32 %v1317, %v1348
      %v1379 = vadd.f32 %v1318, %v1349
      %v1380 = vadd.f32 %v1319, %v1350
      %v1381 = vadd.f32 %v1320, %v1351
      %1382 = vst [vmem:[#allocation2] sm:$0xff] %v1352
      %1383 = vst [vmem:[#allocation2 + $0x8] sm:$0xff] %v1353
      %1384 = vst [vmem:[#allocation2 + $0x10] sm:$0xff] %v1354
      %1385 = vst [vmem:[#allocation2 + $0x18] sm:$0xff] %v1355
      %1386 = vst [vmem:[#allocation2 + $0x20] sm:$0xff] %v1356
      %1387 = vst [vmem:[#allocation2 + $0x28] sm:$0xff] %v1357
      %1388 = vst [vmem:[#allocation2 + $0x30] sm:$0xff] %v1358
      %1389 = vst [vmem:[#allocation2 + $0x38] sm:$0xff] %v1359
      %1390 = vst [vmem:[#allocation2 + $0x40] sm:$0xff] %v1360
      %1391 = vst [vmem:[#allocation2 + $0x48] sm:$0xff] %v1361
      %1392 = vst [vmem:[#allocation2 + $0x50] sm:$0xff] %v1362
      %1393 = vst [vmem:[#allocation2 + $0x58] sm:$0xff] %v1363
      %1394 = vst [vmem:[#allocation2 + $0x60] sm:$0xff] %v1364
      %1395 = vst [vmem:[#allocation2 + $0x68] sm:$0xff] %v1365
      %1396 = vst [vmem:[#allocation2 + $0x70] sm:$0xff] %v1366
      %1397 = vst [vmem:[#allocation2 + $0x78] sm:$0xff] %v1367
      %1398 = vst [vmem:[#allocation2 + $0x80] sm:$0xff] %v1368
      %1399 = vst [vmem:[#allocation2 + $0x88] sm:$0xff] %v1369
      %1400 = vst [vmem:[#allocation2 + $0x90] sm:$0xff] %v1370
      %1401 = vst [vmem:[#allocation2 + $0x98] sm:$0xff] %v1371
      %1402 = vst [vmem:[#allocation2 + $0xa0] sm:$0xff] %v1372
      %1403 = vst [vmem:[#allocation2 + $0xa8] sm:$0xff] %v1373
      %1404 = vst [vmem:[#allocation2 + $0xb0] sm:$0xff] %v1374
      %1405 = vst [vmem:[#allocation2 + $0xb8] sm:$0xff] %v1375
      %1406 = vst [vmem:[#allocation2 + $0xc0] sm:$0xff] %v1376
      %1407 = vst [vmem:[#allocation2 + $0xc8] sm:$0xff] %v1377
      %1408 = vst [vmem:[#allocation2 + $0xd0] sm:$0xff] %v1378
      %1409 = vst [vmem:[#allocation2 + $0xd8] sm:$0xff] %v1379
      %1410 = vst [vmem:[#allocation2 + $0xe0] sm:$0xff] %v1380
      %1411 = vst [vmem:[#allocation2 + $0xe8] sm:$0xff] %v1381
      %v1412 = vld [vmem:[#allocation2] sm:$0xff]
      %v1413 = vld [vmem:[#allocation2 + $0x8] sm:$0xff]
      %v1414 = vld [vmem:[#allocation2 + $0x10] sm:$0xff]
      %v1415 = vld [vmem:[#allocation2 + $0x18] sm:$0xff]
      %v1416 = vld [vmem:[#allocation2 + $0x20] sm:$0xff]
      %v1417 = vld [vmem:[#allocation2 + $0x28] sm:$0xff]
      %v1418 = vld [vmem:[#allocation2 + $0x30] sm:$0xff]
      %v1419 = vld [vmem:[#allocation2 + $0x38] sm:$0xff]
      %v1420 = vld [vmem:[#allocation2 + $0x40] sm:$0xff]
      %v1421 = vld [vmem:[#allocation2 + $0x48] sm:$0xff]
      %v1422 = vld [vmem:[#allocation2 + $0x50] sm:$0xff]
      %v1423 = vld [vmem:[#allocation2 + $0x58] sm:$0xff]
      %v1424 = vld [vmem:[#allocation2 + $0x60] sm:$0xff]
      %v1425 = vld [vmem:[#allocation2 + $0x68] sm:$0xff]
      %v1426 = vld [vmem:[#allocation2 + $0x70] sm:$0xff]
      %v1427 = vld [vmem:[#allocation2 + $0x78] sm:$0xff]
      %v1428 = vld [vmem:[#allocation2 + $0x80] sm:$0xff]
      %v1429 = vld [vmem:[#allocation2 + $0x88] sm:$0xff]
      %v1430 = vld [vmem:[#allocation2 + $0x90] sm:$0xff]
      %v1431 = vld [vmem:[#allocation2 + $0x98] sm:$0xff]
      %v1432 = vld [vmem:[#allocation2 + $0xa0] sm:$0xff]
      %v1433 = vld [vmem:[#allocation2 + $0xa8] sm:$0xff]
      %v1434 = vld [vmem:[#allocation2 + $0xb0] sm:$0xff]
      %v1435 = vld [vmem:[#allocation2 + $0xb8] sm:$0xff]
      %v1436 = vld [vmem:[#allocation2 + $0xc0] sm:$0xff]
      %v1437 = vld [vmem:[#allocation2 + $0xc8] sm:$0xff]
      %v1438 = vld [vmem:[#allocation2 + $0xd0] sm:$0xff]
      %v1439 = vld [vmem:[#allocation2 + $0xd8] sm:$0xff]
      %v1440 = vld [vmem:[#allocation2 + $0xe0] sm:$0xff]
      %v1441 = vld [vmem:[#allocation2 + $0xe8] sm:$0xff]
      %v1442 = vperm.slane %v297, 7
      %v1443 = vmul.f32 %v267, %v1442
      %v1444 = vmul.f32 %v268, %v1442
      %v1445 = vmul.f32 %v269, %v1442
      %v1446 = vmul.f32 %v270, %v1442
      %v1447 = vmul.f32 %v271, %v1442
      %v1448 = vmul.f32 %v272, %v1442
      %v1449 = vmul.f32 %v273, %v1442
      %v1450 = vmul.f32 %v274, %v1442
      %v1451 = vmul.f32 %v275, %v1442
      %v1452 = vmul.f32 %v276, %v1442
      %v1453 = vmul.f32 %v277, %v1442
      %v1454 = vmul.f32 %v278, %v1442
      %v1455 = vmul.f32 %v279, %v1442
      %v1456 = vmul.f32 %v280, %v1442
      %v1457 = vmul.f32 %v281, %v1442
      %v1458 = vmul.f32 %v282, %v1442
      %v1459 = vmul.f32 %v283, %v1442
      %v1460 = vmul.f32 %v284, %v1442
      %v1461 = vmul.f32 %v285, %v1442
      %v1462 = vmul.f32 %v286, %v1442
      %v1463 = vmul.f32 %v287, %v1442
      %v1464 = vmul.f32 %v288, %v1442
      %v1465 = vmul.f32 %v289, %v1442
      %v1466 = vmul.f32 %v290, %v1442
      %v1467 = vmul.f32 %v291, %v1442
      %v1468 = vmul.f32 %v292, %v1442
      %v1469 = vmul.f32 %v293, %v1442
      %v1470 = vmul.f32 %v294, %v1442
      %v1471 = vmul.f32 %v295, %v1442
      %v1472 = vmul.f32 %v296, %v1442
      %v1473 = vadd.f32 %v1412, %v1443
      %v1474 = vadd.f32 %v1413, %v1444
      %v1475 = vadd.f32 %v1414, %v1445
      %v1476 = vadd.f32 %v1415, %v1446
      %v1477 = vadd.f32 %v1416, %v1447
      %v1478 = vadd.f32 %v1417, %v1448
      %v1479 = vadd.f32 %v1418, %v1449
      %v1480 = vadd.f32 %v1419, %v1450
      %v1481 = vadd.f32 %v1420, %v1451
      %v1482 = vadd.f32 %v1421, %v1452
      %v1483 = vadd.f32 %v1422, %v1453
      %v1484 = vadd.f32 %v1423, %v1454
      %v1485 = vadd.f32 %v1424, %v1455
      %v1486 = vadd.f32 %v1425, %v1456
      %v1487 = vadd.f32 %v1426, %v1457
      %v1488 = vadd.f32 %v1427, %v1458
      %v1489 = vadd.f32 %v1428, %v1459
      %v1490 = vadd.f32 %v1429, %v1460
      %v1491 = vadd.f32 %v1430, %v1461
      %v1492 = vadd.f32 %v1431, %v1462
      %v1493 = vadd.f32 %v1432, %v1463
      %v1494 = vadd.f32 %v1433, %v1464
      %v1495 = vadd.f32 %v1434, %v1465
      %v1496 = vadd.f32 %v1435, %v1466
      %v1497 = vadd.f32 %v1436, %v1467
      %v1498 = vadd.f32 %v1437, %v1468
      %v1499 = vadd.f32 %v1438, %v1469
      %v1500 = vadd.f32 %v1439, %v1470
      %v1501 = vadd.f32 %v1440, %v1471
      %v1502 = vadd.f32 %v1441, %v1472
      %1503 = vst [vmem:[#allocation2] sm:$0xff] %v1473
      %1504 = vst [vmem:[#allocation2 + $0x8] sm:$0xff] %v1474
      %1505 = vst [vmem:[#allocation2 + $0x10] sm:$0xff] %v1475
      %1506 = vst [vmem:[#allocation2 + $0x18] sm:$0xff] %v1476
      %1507 = vst [vmem:[#allocation2 + $0x20] sm:$0xff] %v1477
      %1508 = vst [vmem:[#allocation2 + $0x28] sm:$0xff] %v1478
      %1509 = vst [vmem:[#allocation2 + $0x30] sm:$0xff] %v1479
      %1510 = vst [vmem:[#allocation2 + $0x38] sm:$0xff] %v1480
      %1511 = vst [vmem:[#allocation2 + $0x40] sm:$0xff] %v1481
      %1512 = vst [vmem:[#allocation2 + $0x48] sm:$0xff] %v1482
      %1513 = vst [vmem:[#allocation2 + $0x50] sm:$0xff] %v1483
      %1514 = vst [vmem:[#allocation2 + $0x58] sm:$0xff] %v1484
      %1515 = vst [vmem:[#allocation2 + $0x60] sm:$0xff] %v1485
      %1516 = vst [vmem:[#allocation2 + $0x68] sm:$0xff] %v1486
      %1517 = vst [vmem:[#allocation2 + $0x70] sm:$0xff] %v1487
      %1518 = vst [vmem:[#allocation2 + $0x78] sm:$0xff] %v1488
      %1519 = vst [vmem:[#allocation2 + $0x80] sm:$0xff] %v1489
      %1520 = vst [vmem:[#allocation2 + $0x88] sm:$0xff] %v1490
      %1521 = vst [vmem:[#allocation2 + $0x90] sm:$0xff] %v1491
      %1522 = vst [vmem:[#allocation2 + $0x98] sm:$0xff] %v1492
      %1523 = vst [vmem:[#allocation2 + $0xa0] sm:$0xff] %v1493
      %1524 = vst [vmem:[#allocation2 + $0xa8] sm:$0xff] %v1494
      %1525 = vst [vmem:[#allocation2 + $0xb0] sm:$0xff] %v1495
      %1526 = vst [vmem:[#allocation2 + $0xb8] sm:$0xff] %v1496
      %1527 = vst [vmem:[#allocation2 + $0xc0] sm:$0xff] %v1497
      %1528 = vst [vmem:[#allocation2 + $0xc8] sm:$0xff] %v1498
      %1529 = vst [vmem:[#allocation2 + $0xd0] sm:$0xff] %v1499
      %1530 = vst [vmem:[#allocation2 + $0xd8] sm:$0xff] %v1500
      %1531 = vst [vmem:[#allocation2 + $0xe0] sm:$0xff] %v1501
      %1532 = vst [vmem:[#allocation2 + $0xe8] sm:$0xff] %v1502
      %v1533 = vld [vmem:[#allocation2] sm:$0xff]
      %v1534 = vld [vmem:[#allocation2 + $0x8] sm:$0xff]
      %v1535 = vld [vmem:[#allocation2 + $0x10] sm:$0xff]
      %v1536 = vld [vmem:[#allocation2 + $0x18] sm:$0xff]
      %v1537 = vld [vmem:[#allocation2 + $0x20] sm:$0xff]
      %v1538 = vld [vmem:[#allocation2 + $0x28] sm:$0xff]
      %v1539 = vld [vmem:[#allocation2 + $0x30] sm:$0xff]
      %v1540 = vld [vmem:[#allocation2 + $0x38] sm:$0xff]
      %v1541 = vld [vmem:[#allocation2 + $0x40] sm:$0xff]
      %v1542 = vld [vmem:[#allocation2 + $0x48] sm:$0xff]
      %v1543 = vld [vmem:[#allocation2 + $0x50] sm:$0xff]
      %v1544 = vld [vmem:[#allocation2 + $0x58] sm:$0xff]
      %v1545 = vld [vmem:[#allocation2 + $0x60] sm:$0xff]
      %v1546 = vld [vmem:[#allocation2 + $0x68] sm:$0xff]
      %v1547 = vld [vmem:[#allocation2 + $0x70] sm:$0xff]
      %v1548 = vld [vmem:[#allocation2 + $0x78] sm:$0xff]
      %v1549 = vld [vmem:[#allocation2 + $0x80] sm:$0xff]
      %v1550 = vld [vmem:[#allocation2 + $0x88] sm:$0xff]
      %v1551 = vld [vmem:[#allocation2 + $0x90] sm:$0xff]
      %v1552 = vld [vmem:[#allocation2 + $0x98] sm:$0xff]
      %v1553 = vld [vmem:[#allocation2 + $0xa0] sm:$0xff]
      %v1554 = vld [vmem:[#allocation2 + $0xa8] sm:$0xff]
      %v1555 = vld [vmem:[#allocation2 + $0xb0] sm:$0xff]
      %v1556 = vld [vmem:[#allocation2 + $0xb8] sm:$0xff]
      %v1557 = vld [vmem:[#allocation2 + $0xc0] sm:$0xff]
      %v1558 = vld [vmem:[#allocation2 + $0xc8] sm:$0xff]
      %v1559 = vld [vmem:[#allocation2 + $0xd0] sm:$0xff]
      %v1560 = vld [vmem:[#allocation2 + $0xd8] sm:$0xff]
      %v1561 = vld [vmem:[#allocation2 + $0xe0] sm:$0xff]
      %v1562 = vld [vmem:[#allocation2 + $0xe8] sm:$0xff]
      %v1563 = vperm.slane %v298, 0
      %v1564 = vmul.f32 %v478, %v1563
      %v1565 = vmul.f32 %v479, %v1563
      %v1566 = vmul.f32 %v480, %v1563
      %v1567 = vmul.f32 %v481, %v1563
      %v1568 = vmul.f32 %v482, %v1563
      %v1569 = vmul.f32 %v483, %v1563
      %v1570 = vmul.f32 %v484, %v1563
      %v1571 = vmul.f32 %v485, %v1563
      %v1572 = vmul.f32 %v486, %v1563
      %v1573 = vmul.f32 %v487, %v1563
      %v1574 = vmul.f32 %v488, %v1563
      %v1575 = vmul.f32 %v489, %v1563
      %v1576 = vmul.f32 %v490, %v1563
      %v1577 = vmul.f32 %v491, %v1563
      %v1578 = vmul.f32 %v492, %v1563
      %v1579 = vmul.f32 %v493, %v1563
      %v1580 = vmul.f32 %v494, %v1563
      %v1581 = vmul.f32 %v495, %v1563
      %v1582 = vmul.f32 %v496, %v1563
      %v1583 = vmul.f32 %v497, %v1563
      %v1584 = vmul.f32 %v498, %v1563
      %v1585 = vmul.f32 %v499, %v1563
      %v1586 = vmul.f32 %v500, %v1563
      %v1587 = vmul.f32 %v501, %v1563
      %v1588 = vmul.f32 %v502, %v1563
      %v1589 = vmul.f32 %v503, %v1563
      %v1590 = vmul.f32 %v504, %v1563
      %v1591 = vmul.f32 %v505, %v1563
      %v1592 = vmul.f32 %v506, %v1563
      %v1593 = vmul.f32 %v507, %v1563
      %v1594 = vadd.f32 %v1533, %v1564
      %v1595 = vadd.f32 %v1534, %v1565
      %v1596 = vadd.f32 %v1535, %v1566
      %v1597 = vadd.f32 %v1536, %v1567
      %v1598 = vadd.f32 %v1537, %v1568
      %v1599 = vadd.f32 %v1538, %v1569
      %v1600 = vadd.f32 %v1539, %v1570
      %v1601 = vadd.f32 %v1540, %v1571
      %v1602 = vadd.f32 %v1541, %v1572
      %v1603 = vadd.f32 %v1542, %v1573
      %v1604 = vadd.f32 %v1543, %v1574
      %v1605 = vadd.f32 %v1544, %v1575
      %v1606 = vadd.f32 %v1545, %v1576
      %v1607 = vadd.f32 %v1546, %v1577
      %v1608 = vadd.f32 %v1547, %v1578
      %v1609 = vadd.f32 %v1548, %v1579
      %v1610 = vadd.f32 %v1549, %v1580
      %v1611 = vadd.f32 %v1550, %v1581
      %v1612 = vadd.f32 %v1551, %v1582
      %v1613 = vadd.f32 %v1552, %v1583
      %v1614 = vadd.f32 %v1553, %v1584
      %v1615 = vadd.f32 %v1554, %v1585
      %v1616 = vadd.f32 %v1555, %v1586
      %v1617 = vadd.f32 %v1556, %v1587
      %v1618 = vadd.f32 %v1557, %v1588
      %v1619 = vadd.f32 %v1558, %v1589
      %v1620 = vadd.f32 %v1559, %v1590
      %v1621 = vadd.f32 %v1560, %v1591
      %v1622 = vadd.f32 %v1561, %v1592
      %v1623 = vadd.f32 %v1562, %v1593
      %1624 = vst [vmem:[#allocation2] sm:$0xff] %v1594
      %1625 = vst [vmem:[#allocation2 + $0x8] sm:$0xff] %v1595
      %1626 = vst [vmem:[#allocation2 + $0x10] sm:$0xff] %v1596
      %1627 = vst [vmem:[#allocation2 + $0x18] sm:$0xff] %v1597
      %1628 = vst [vmem:[#allocation2 + $0x20] sm:$0xff] %v1598
      %1629 = vst [vmem:[#allocation2 + $0x28] sm:$0xff] %v1599
      %1630 = vst [vmem:[#allocation2 + $0x30] sm:$0xff] %v1600
      %1631 = vst [vmem:[#allocation2 + $0x38] sm:$0xff] %v1601
      %1632 = vst [vmem:[#allocation2 + $0x40] sm:$0xff] %v1602
      %1633 = vst [vmem:[#allocation2 + $0x48] sm:$0xff] %v1603
      %1634 = vst [vmem:[#allocation2 + $0x50] sm:$0xff] %v1604
      %1635 = vst [vmem:[#allocation2 + $0x58] sm:$0xff] %v1605
      %1636 = vst [vmem:[#allocation2 + $0x60] sm:$0xff] %v1606
      %1637 = vst [vmem:[#allocation2 + $0x68] sm:$0xff] %v1607
      %1638 = vst [vmem:[#allocation2 + $0x70] sm:$0xff] %v1608
      %1639 = vst [vmem:[#allocation2 + $0x78] sm:$0xff] %v1609
      %1640 = vst [vmem:[#allocation2 + $0x80] sm:$0xff] %v1610
      %1641 = vst [vmem:[#allocation2 + $0x88] sm:$0xff] %v1611
      %1642 = vst [vmem:[#allocation2 + $0x90] sm:$0xff] %v1612
      %1643 = vst [vmem:[#allocation2 + $0x98] sm:$0xff] %v1613
      %1644 = vst [vmem:[#allocation2 + $0xa0] sm:$0xff] %v1614
      %1645 = vst [vmem:[#allocation2 + $0xa8] sm:$0xff] %v1615
      %1646 = vst [vmem:[#allocation2 + $0xb0] sm:$0xff] %v1616
      %1647 = vst [vmem:[#allocation2 + $0xb8] sm:$0xff] %v1617
      %1648 = vst [vmem:[#allocation2 + $0xc0] sm:$0xff] %v1618
      %1649 = vst [vmem:[#allocation2 + $0xc8] sm:$0xff] %v1619
      %1650 = vst [vmem:[#allocation2 + $0xd0] sm:$0xff] %v1620
      %1651 = vst [vmem:[#allocation2 + $0xd8] sm:$0xff] %v1621
      %1652 = vst [vmem:[#allocation2 + $0xe0] sm:$0xff] %v1622
      %1653 = vst [vmem:[#allocation2 + $0xe8] sm:$0xff] %v1623
      %v1654 = vld [vmem:[#allocation2] sm:$0xff]
      %v1655 = vld [vmem:[#allocation2 + $0x8] sm:$0xff]
      %v1656 = vld [vmem:[#allocation2 + $0x10] sm:$0xff]
      %v1657 = vld [vmem:[#allocation2 + $0x18] sm:$0xff]
      %v1658 = vld [vmem:[#allocation2 + $0x20] sm:$0xff]
      %v1659 = vld [vmem:[#allocation2 + $0x28] sm:$0xff]
      %v1660 = vld [vmem:[#allocation2 + $0x30] sm:$0xff]
      %v1661 = vld [vmem:[#allocation2 + $0x38] sm:$0xff]
      %v1662 = vld [vmem:[#allocation2 + $0x40] sm:$0xff]
      %v1663 = vld [vmem:[#allocation2 + $0x48] sm:$0xff]
      %v1664 = vld [vmem:[#allocation2 + $0x50] sm:$0xff]
      %v1665 = vld [vmem:[#allocation2 + $0x58] sm:$0xff]
      %v1666 = vld [vmem:[#allocation2 + $0x60] sm:$0xff]
      %v1667 = vld [vmem:[#allocation2 + $0x68] sm:$0xff]
      %v1668 = vld [vmem:[#allocation2 + $0x70] sm:$0xff]
      %v1669 = vld [vmem:[#allocation2 + $0x78] sm:$0xff]
      %v1670 = vld [vmem:[#allocation2 + $0x80] sm:$0xff]
      %v1671 = vld [vmem:[#allocation2 + $0x88] sm:$0xff]
      %v1672 = vld [vmem:[#allocation2 + $0x90] sm:$0xff]
      %v1673 = vld [vmem:[#allocation2 + $0x98] sm:$0xff]
      %v1674 = vld [vmem:[#allocation2 + $0xa0] sm:$0xff]
      %v1675 = vld [vmem:[#allocation2 + $0xa8] sm:$0xff]
      %v1676 = vld [vmem:[#allocation2 + $0xb0] sm:$0xff]
      %v1677 = vld [vmem:[#allocation2 + $0xb8] sm:$0xff]
      %v1678 = vld [vmem:[#allocation2 + $0xc0] sm:$0xff]
      %v1679 = vld [vmem:[#allocation2 + $0xc8] sm:$0xff]
      %v1680 = vld [vmem:[#allocation2 + $0xd0] sm:$0xff]
      %v1681 = vld [vmem:[#allocation2 + $0xd8] sm:$0xff]
      %v1682 = vld [vmem:[#allocation2 + $0xe0] sm:$0xff]
      %v1683 = vld [vmem:[#allocation2 + $0xe8] sm:$0xff]
      %v1684 = vld [vmem:[#allocation2 + $0xf0] sm:$0xff]
      %v1685 = vld [vmem:[#allocation2 + $0xf8] sm:$0xff]
      %v1686 = vld [vmem:[%s224] sm:$0x1]
      %v1688 = vperm.slane %v1686, 0
      %v1690 = vadd.f32 %v1654, %v1688
      %v1691 = vadd.f32 %v1655, %v1688
      %v1692 = vadd.f32 %v1656, %v1688
      %v1693 = vadd.f32 %v1657, %v1688
      %v1694 = vadd.f32 %v1658, %v1688
      %v1695 = vadd.f32 %v1659, %v1688
      %v1696 = vadd.f32 %v1660, %v1688
      %v1697 = vadd.f32 %v1661, %v1688
      %v1698 = vadd.f32 %v1662, %v1688
      %v1699 = vadd.f32 %v1663, %v1688
      %v1700 = vadd.f32 %v1664, %v1688
      %v1701 = vadd.f32 %v1665, %v1688
      %v1702 = vadd.f32 %v1666, %v1688
      %v1703 = vadd.f32 %v1667, %v1688
      %v1704 = vadd.f32 %v1668, %v1688
      %v1705 = vadd.f32 %v1669, %v1688
      %v1706 = vadd.f32 %v1670, %v1688
      %v1707 = vadd.f32 %v1671, %v1688
      %v1708 = vadd.f32 %v1672, %v1688
      %v1709 = vadd.f32 %v1673, %v1688
      %v1710 = vadd.f32 %v1674, %v1688
      %v1711 = vadd.f32 %v1675, %v1688
      %v1712 = vadd.f32 %v1676, %v1688
      %v1713 = vadd.f32 %v1677, %v1688
      %v1714 = vadd.f32 %v1678, %v1688
      %v1715 = vadd.f32 %v1679, %v1688
      %v1716 = vadd.f32 %v1680, %v1688
      %v1717 = vadd.f32 %v1681, %v1688
      %v1718 = vadd.f32 %v1682, %v1688
      %v1719 = vadd.f32 %v1683, %v1688
      %v1720 = vadd.f32 %v1684, %v1688
      %v1721 = vadd.f32 %v1685, %v1688
      %v1722 = vmax.f32 %v1690, 0.0
      %v1723 = vmax.f32 %v1691, 0.0
      %v1724 = vmax.f32 %v1692, 0.0
      %v1725 = vmax.f32 %v1693, 0.0
      %v1726 = vmax.f32 %v1694, 0.0
      %v1727 = vmax.f32 %v1695, 0.0
      %v1728 = vmax.f32 %v1696, 0.0
      %v1729 = vmax.f32 %v1697, 0.0
      %v1730 = vmax.f32 %v1698, 0.0
      %v1731 = vmax.f32 %v1699, 0.0
      %v1732 = vmax.f32 %v1700, 0.0
      %v1733 = vmax.f32 %v1701, 0.0
      %v1734 = vmax.f32 %v1702, 0.0
      %v1735 = vmax.f32 %v1703, 0.0
      %v1736 = vmax.f32 %v1704, 0.0
      %v1737 = vmax.f32 %v1705, 0.0
      %v1738 = vmax.f32 %v1706, 0.0
      %v1739 = vmax.f32 %v1707, 0.0
      %v1740 = vmax.f32 %v1708, 0.0
      %v1741 = vmax.f32 %v1709, 0.0
      %v1742 = vmax.f32 %v1710, 0.0
      %v1743 = vmax.f32 %v1711, 0.0
      %v1744 = vmax.f32 %v1712, 0.0
      %v1745 = vmax.f32 %v1713, 0.0
      %v1746 = vmax.f32 %v1714, 0.0
      %v1747 = vmax.f32 %v1715, 0.0
      %v1748 = vmax.f32 %v1716, 0.0
      %v1749 = vmax.f32 %v1717, 0.0
      %v1750 = vmax.f32 %v1718, 0.0
      %v1751 = vmax.f32 %v1719, 0.0
      %v1752 = vmax.f32 %v1720, 0.0
      %v1753 = vmax.f32 %v1721, 0.0
      %v1754 = vmin.f32 %v1722, 6.0
      %v1755 = vmin.f32 %v1723, 6.0
      %v1756 = vmin.f32 %v1724, 6.0
      %v1757 = vmin.f32 %v1725, 6.0
      %v1758 = vmin.f32 %v1726, 6.0
      %v1759 = vmin.f32 %v1727, 6.0
      %v1760 = vmin.f32 %v1728, 6.0
      %v1761 = vmin.f32 %v1729, 6.0
      %v1762 = vmin.f32 %v1730, 6.0
      %v1763 = vmin.f32 %v1731, 6.0
      %v1764 = vmin.f32 %v1732, 6.0
      %v1765 = vmin.f32 %v1733, 6.0
      %v1766 = vmin.f32 %v1734, 6.0
      %v1767 = vmin.f32 %v1735, 6.0
      %v1768 = vmin.f32 %v1736, 6.0
      %v1769 = vmin.f32 %v1737, 6.0
      %v1770 = vmin.f32 %v1738, 6.0
      %v1771 = vmin.f32 %v1739, 6.0
      %v1772 = vmin.f32 %v1740, 6.0
      %v1773 = vmin.f32 %v1741, 6.0
      %v1774 = vmin.f32 %v1742, 6.0
      %v1775 = vmin.f32 %v1743, 6.0
      %v1776 = vmin.f32 %v1744, 6.0
      %v1777 = vmin.f32 %v1745, 6.0
      %v1778 = vmin.f32 %v1746, 6.0
      %v1779 = vmin.f32 %v1747, 6.0
      %v1780 = vmin.f32 %v1748, 6.0
      %v1781 = vmin.f32 %v1749, 6.0
      %v1782 = vmin.f32 %v1750, 6.0
      %v1783 = vmin.f32 %v1751, 6.0
      %v1784 = vmin.f32 %v1752, 6.0
      %v1785 = vmin.f32 %v1753, 6.0
      %v1786 = vpack.c.bf16 %v1754, %v1754
      %v1787 = vpack.c.bf16 %v1755, %v1755
      %v1788 = vpack.c.bf16 %v1756, %v1756
      %v1789 = vpack.c.bf16 %v1757, %v1757
      %v1790 = vpack.c.bf16 %v1758, %v1758
      %v1791 = vpack.c.bf16 %v1759, %v1759
      %v1792 = vpack.c.bf16 %v1760, %v1760
      %v1793 = vpack.c.bf16 %v1761, %v1761
      %v1794 = vpack.c.bf16 %v1762, %v1762
      %v1795 = vpack.c.bf16 %v1763, %v1763
      %v1796 = vpack.c.bf16 %v1764, %v1764
      %v1797 = vpack.c.bf16 %v1765, %v1765
      %v1798 = vpack.c.bf16 %v1766, %v1766
      %v1799 = vpack.c.bf16 %v1767, %v1767
      %v1800 = vpack.c.bf16 %v1768, %v1768
      %v1801 = vpack.c.bf16 %v1769, %v1769
      %v1802 = vpack.c.bf16 %v1770, %v1770
      %v1803 = vpack.c.bf16 %v1771, %v1771
      %v1804 = vpack.c.bf16 %v1772, %v1772
      %v1805 = vpack.c.bf16 %v1773, %v1773
      %v1806 = vpack.c.bf16 %v1774, %v1774
      %v1807 = vpack.c.bf16 %v1775, %v1775
      %v1808 = vpack.c.bf16 %v1776, %v1776
      %v1809 = vpack.c.bf16 %v1777, %v1777
      %v1810 = vpack.c.bf16 %v1778, %v1778
      %v1811 = vpack.c.bf16 %v1779, %v1779
      %v1812 = vpack.c.bf16 %v1780, %v1780
      %v1813 = vpack.c.bf16 %v1781, %v1781
      %v1814 = vpack.c.bf16 %v1782, %v1782
      %v1815 = vpack.c.bf16 %v1783, %v1783
      %v1816 = vpack.c.bf16 %v1784, %v1784
      %v1817 = vpack.c.bf16 %v1785, %v1785
      %1818 = vst [vmem:[%s232] sm:$0xf] %v1786
      %1819 = vst [vmem:[%s232 + $0x4] sm:$0xf] %v1787
      %1820 = vst [vmem:[%s232 + $0x8] sm:$0xf] %v1788
      %1821 = vst [vmem:[%s232 + $0xc] sm:$0xf] %v1789
      %1822 = vst [vmem:[%s232 + $0x10] sm:$0xf] %v1790
      %1823 = vst [vmem:[%s232 + $0x14] sm:$0xf] %v1791
      %1824 = vst [vmem:[%s232 + $0x18] sm:$0xf] %v1792
      %1825 = vst [vmem:[%s232 + $0x1c] sm:$0xf] %v1793
      %1826 = vst [vmem:[%s232 + $0x20] sm:$0xf] %v1794
      %1827 = vst [vmem:[%s232 + $0x24] sm:$0xf] %v1795
      %1828 = vst [vmem:[%s232 + $0x28] sm:$0xf] %v1796
      %1829 = vst [vmem:[%s232 + $0x2c] sm:$0xf] %v1797
      %1830 = vst [vmem:[%s232 + $0x30] sm:$0xf] %v1798
      %1831 = vst [vmem:[%s232 + $0x34] sm:$0xf] %v1799
      %1832 = vst [vmem:[%s232 + $0x38] sm:$0xf] %v1800
      %1833 = vst [vmem:[%s232 + $0x3c] sm:$0xf] %v1801
      %1834 = vst [vmem:[%s232 + $0x40] sm:$0xf] %v1802
      %1835 = vst [vmem:[%s232 + $0x44] sm:$0xf] %v1803
      %1836 = vst [vmem:[%s232 + $0x48] sm:$0xf] %v1804
      %1837 = vst [vmem:[%s232 + $0x4c] sm:$0xf] %v1805
      %1838 = vst [vmem:[%s232 + $0x50] sm:$0xf] %v1806
      %1839 = vst [vmem:[%s232 + $0x54] sm:$0xf] %v1807
      %1840 = vst [vmem:[%s232 + $0x58] sm:$0xf] %v1808
      %1841 = vst [vmem:[%s232 + $0x5c] sm:$0xf] %v1809
      %1842 = vst [vmem:[%s232 + $0x60] sm:$0xf] %v1810
      %1843 = vst [vmem:[%s232 + $0x64] sm:$0xf] %v1811
      %1844 = vst [vmem:[%s232 + $0x68] sm:$0xf] %v1812
      %1845 = vst [vmem:[%s232 + $0x6c] sm:$0xf] %v1813
      %1846 = vst [vmem:[%s232 + $0x70] sm:$0xf] %v1814
      %1847 = vst [vmem:[%s232 + $0x74] sm:$0xf] %v1815
      %1848 = vst [vmem:[%s232 + $0x78] sm:$0xf] %v1816
      %1849 = vst [vmem:[%s232 + $0x7c] sm:$0xf] %v1817
      %p1850 = scmp.lt.s32.totalorder %s18, 1
      %s1851 = scalar_select %p1850, %s18, 1
      %p1852 = scmp.lt.s32.totalorder %s19, 0
      %s1853 = scalar_select %p1852, %s19, 0
      %s1854 = smul.addr %s1851, 32
      %s1855 = sadd.s32 %s1853, %s1854
      %s1856 = smul.addr %s1855, 4
      %s1857 = scalar_lea.vmem %s3, %s1856
      // Predicated region
      $region33: #{inverted_residual_forward.4} parent=31 // pred_check
        %p1858 = pneg %p126
      $region34: #{inverted_residual_forward.4} parent=31 // pred_check_branch
        %1860 = sbr.rel (%p1858) target = $region36
      $region35: #{inverted_residual_forward.4} parent=31 // pred_region
        _
      $region36: #{inverted_residual_forward.4} parent=31 // pred_fallthru
        _
    $region32: #{inverted_residual_forward.4} parent=5 // pred_fallthru
      _
    %p1861 = scmp.le.s32.totalorder 2, %s9
    // Predicated region
    $region37: #{inverted_residual_forward.4} parent=5 // pred_check
      %p1862 = pneg %p1861
    $region38: #{inverted_residual_forward.4} parent=5 // pred_check_branch
      %1864 = sbr.rel (%p1862) target = $region40
    $region39: #{inverted_residual_forward.4} parent=5 // pred_region
      %s1865 = ssub.s32 %s9, 2
      // Predicated region
      $region41: #{inverted_residual_forward.4} parent=39 // pred_check
        %p1866 = pneg %p132
      $region42: #{inverted_residual_forward.4} parent=39 // pred_check_branch
        %1868 = sbr.rel (%p1866) target = $region44
      $region43: #{inverted_residual_forward.4} parent=39 // pred_region
        %p1869 = scmp.lt.s32.totalorder %s20, 1
        %s1870 = scalar_select %p1869, %s20, 1
        %p1871 = scmp.lt.s32.totalorder %s21, 0
        %s1872 = scalar_select %p1871, %s21, 0
        %s1873 = smul.addr %s1870, 32
        %s1874 = sadd.s32 %s1872, %s1873
        %s1875 = smul.addr %s1874, 4
        %s1876 = scalar_lea.vmem %s3, %s1875
      $region44: #{inverted_residual_forward.4} parent=39 // pred_fallthru
        _
    $region40: #{inverted_residual_forward.4} parent=5 // pred_fallthru
      _
  $region6: #{inverted_residual_forward.4} parent=0 // loop_footer
    %s13 = sadd.s32 1, %s9
  $region7: #{inverted_residual_forward.4} parent=0 // loop_footer_branch
    %8 = sbr.rel target = $region3
  $region8: #{inverted_residual_forward.4} parent=0 // loop_exit
    _

</llo_original>
